<compile_context>
chip_gen: v5e
topology: v5e:2x2
jax: 0.10.0
libtpu: 0.0.40
codegen_flags: <defaults>
</compile_context>

<pallas_src>
import functools
import math

import jax
import jax.numpy as jnp
from jax import lax
from jax.experimental import pallas as pl
from jax.experimental.pallas import tpu as pltpu


# ----------------------------- tiling helpers ------------------------------

def _round_up(n, m):
    return (n + m - 1) // m * m


def _pick_row_tile(M):
    """Row (M) tile: multiple of 8, >=2 grid steps when possible, cap at 512."""
    m8 = _round_up(M, 8)
    if m8 >= 1024:
        return 512
    t = _round_up(max(m8 // 2, 8), 8)
    return min(t, m8)


def _pick_k_tile(K):
    """Reduction tile: multiple of 128 when it divides K (256 preferred), else full K."""
    for c in (256, 512, 128):
        if K % c == 0:
            return c
    return K


def _pad_rows(x2, m_pad):
    m = x2.shape[0]
    if m_pad == m:
        return x2
    return jnp.pad(x2, ((0, m_pad - m), (0, 0)))


@functools.lru_cache(maxsize=None)
def _default_vmem_limit():
    """~3/4 of physical VMEM (128 MiB on v5e/v6e, 64 MiB on v7x)."""
    try:
        cap = int(pltpu.get_tpu_info().vmem_capacity_bytes)
    except Exception:
        cap = 64 * 1024 * 1024
    return (cap * 3) // 4


# ------------------------------ linear kernels ------------------------------

def _linear_kernel(x_ref, w_ref, b_ref, o_ref, acc_ref):
    k = pl.program_id(1)

    @pl.when(k == 0)
    def _():
        acc_ref[...] = jnp.zeros_like(acc_ref)

    acc_ref[...] += jnp.dot(x_ref[...], w_ref[...],
                            preferred_element_type=jnp.float32)

    @pl.when(k == pl.num_programs(1) - 1)
    def _():
        o_ref[...] = (acc_ref[...] + b_ref[...].astype(jnp.float32)).astype(o_ref.dtype)


def _linear_addln_kernel(x_ref, w_ref, b_ref, r_ref, g_ref, bt_ref, o_ref, acc_ref, *, eps):
    k = pl.program_id(1)

    @pl.when(k == 0)
    def _():
        acc_ref[...] = jnp.zeros_like(acc_ref)

    acc_ref[...] += jnp.dot(x_ref[...], w_ref[...],
                            preferred_element_type=jnp.float32)

    @pl.when(k == pl.num_programs(1) - 1)
    def _():
        # residual add + LayerNorm fused epilogue (full d_model row resident)
        v = acc_ref[...] + b_ref[...].astype(jnp.float32) + r_ref[...].astype(jnp.float32)
        mu = jnp.mean(v, axis=-1, keepdims=True)
        c = v - mu
        var = jnp.mean(c * c, axis=-1, keepdims=True)
        inv = lax.rsqrt(var + eps)
        o_ref[...] = (c * inv * g_ref[...].astype(jnp.float32)
                      + bt_ref[...].astype(jnp.float32)).astype(o_ref.dtype)


def linear(x2, w, b, *, compute_dtype=None, vmem_limit_bytes=None):
    """x2: [M, K] @ w: [K, N] + b: [1, N] -> [M, N]."""
    M, K = x2.shape
    N = w.shape[1]
    out_dtype = compute_dtype if compute_dtype is not None else x2.dtype
    if compute_dtype is not None:
        x2 = x2.astype(compute_dtype)
        w = w.astype(compute_dtype)
        b = b.astype(compute_dtype)

    tile_m = _pick_row_tile(M)
    tile_k = _pick_k_tile(K)
    num_m = pl.cdiv(M, tile_m)
    num_k = K // tile_k
    m_pad = num_m * tile_m
    x2 = _pad_rows(x2, m_pad)
    if vmem_limit_bytes is None:
        vmem_limit_bytes = _default_vmem_limit()

    itemsize = jnp.dtype(x2.dtype).itemsize
    cost = pl.CostEstimate(
        flops=2 * M * K * N, transcendentals=0,
        bytes_accessed=(M * K + K * N + N + M * N) * itemsize)

    out = pl.pallas_call(
        _linear_kernel,
        out_shape=jax.ShapeDtypeStruct((m_pad, N), out_dtype),
        grid_spec=pltpu.PrefetchScalarGridSpec(
            num_scalar_prefetch=0,
            grid=(num_m, num_k),
            in_specs=[
                pl.BlockSpec((tile_m, tile_k), lambda i, k: (i, k)),
                pl.BlockSpec((tile_k, N), lambda i, k: (k, 0)),
                pl.BlockSpec((1, N), lambda i, k: (0, 0)),
            ],
            out_specs=pl.BlockSpec((tile_m, N), lambda i, k: (i, 0)),
            scratch_shapes=[pltpu.VMEM((tile_m, N), jnp.float32)],
        ),
        compiler_params=pltpu.CompilerParams(
            dimension_semantics=("parallel", "arbitrary"),
            vmem_limit_bytes=vmem_limit_bytes),
        cost_estimate=cost,
    )(x2, w, b)
    return out[:M]


def linear_add_ln(x2, w, b, res2, gamma, beta, *, eps=1e-5,
                  compute_dtype=None, vmem_limit_bytes=None):
    """LayerNorm(res2 + (x2 @ w + b)) over the last dim.  x2/res2: [M, *], out: [M, N]."""
    M, K = x2.shape
    N = w.shape[1]
    out_dtype = compute_dtype if compute_dtype is not None else res2.dtype
    if compute_dtype is not None:
        x2 = x2.astype(compute_dtype)
        w = w.astype(compute_dtype)
        b = b.astype(compute_dtype)
        res2 = res2.astype(compute_dtype)
        gamma = gamma.astype(compute_dtype)
        beta = beta.astype(compute_dtype)

    tile_m = _pick_row_tile(M)
    tile_k = _pick_k_tile(K)
    num_m = pl.cdiv(M, tile_m)
    num_k = K // tile_k
    m_pad = num_m * tile_m
    x2 = _pad_rows(x2, m_pad)
    res2 = _pad_rows(res2, m_pad)
    if vmem_limit_bytes is None:
        vmem_limit_bytes = _default_vmem_limit()

    itemsize = jnp.dtype(x2.dtype).itemsize
    cost = pl.CostEstimate(
        flops=2 * M * K * N + 8 * M * N, transcendentals=M,
        bytes_accessed=(M * K + K * N + 3 * N + 2 * M * N) * itemsize)

    out = pl.pallas_call(
        functools.partial(_linear_addln_kernel, eps=eps),
        out_shape=jax.ShapeDtypeStruct((m_pad, N), out_dtype),
        grid_spec=pltpu.PrefetchScalarGridSpec(
            num_scalar_prefetch=0,
            grid=(num_m, num_k),
            in_specs=[
                pl.BlockSpec((tile_m, tile_k), lambda i, k: (i, k)),   # x rows / K tile
                pl.BlockSpec((tile_k, N), lambda i, k: (k, 0)),        # W K tile
                pl.BlockSpec((1, N), lambda i, k: (0, 0)),             # bias
                pl.BlockSpec((tile_m, N), lambda i, k: (i, 0)),        # residual
                pl.BlockSpec((1, N), lambda i, k: (0, 0)),             # gamma
                pl.BlockSpec((1, N), lambda i, k: (0, 0)),             # beta
            ],
            out_specs=pl.BlockSpec((tile_m, N), lambda i, k: (i, 0)),
            scratch_shapes=[pltpu.VMEM((tile_m, N), jnp.float32)],
        ),
        compiler_params=pltpu.CompilerParams(
            dimension_semantics=("parallel", "arbitrary"),
            vmem_limit_bytes=vmem_limit_bytes),
        cost_estimate=cost,
    )(x2, w, b, res2, gamma, beta)
    return out[:M]


# ------------------- fused FFN (d_ff tiled) + add + LayerNorm ----------------

def _ffn_addln_kernel(x_ref, w1_ref, b1_ref, w2_ref, b2_ref, g_ref, bt_ref,
                      o_ref, acc_ref, *, eps):
    k = pl.program_id(1)

    @pl.when(k == 0)
    def _():
        acc_ref[...] = jnp.zeros_like(acc_ref)

    # h_k = relu(x @ W1[:, k-tile] + b1[k-tile])  (elementwise -> exact per-tile)
    h = jnp.dot(x_ref[...], w1_ref[...], preferred_element_type=jnp.float32)
    h = jnp.maximum(h + b1_ref[...].astype(jnp.float32), 0.0)
    acc_ref[...] += jnp.dot(h.astype(w2_ref.dtype), w2_ref[...],
                            preferred_element_type=jnp.float32)

    @pl.when(k == pl.num_programs(1) - 1)
    def _():
        # residual is the FFN input itself -> reuse x_ref, then LayerNorm
        v = acc_ref[...] + b2_ref[...].astype(jnp.float32) + x_ref[...].astype(jnp.float32)
        mu = jnp.mean(v, axis=-1, keepdims=True)
        c = v - mu
        var = jnp.mean(c * c, axis=-1, keepdims=True)
        inv = lax.rsqrt(var + eps)
        o_ref[...] = (c * inv * g_ref[...].astype(jnp.float32)
                      + bt_ref[...].astype(jnp.float32)).astype(o_ref.dtype)


def position_wise_ffn_addln(x, w1, b1, w2, b2, gamma, beta, *, eps=1e-5,
                            compute_dtype=None, vmem_limit_bytes=None):
    """LayerNorm(x + (relu(x @ W1 + b1) @ W2 + b2)); x: [B, S, D]."""
    B, S, D = x.shape
    Dff = w1.shape[1]
    M = B * S
    out_dtype = compute_dtype if compute_dtype is not None else x.dtype
    x2 = x.reshape(M, D)
    if compute_dtype is not None:
        x2 = x2.astype(compute_dtype)
        w1 = w1.astype(compute_dtype)
        b1 = b1.astype(compute_dtype)
        w2 = w2.astype(compute_dtype)
        b2 = b2.astype(compute_dtype)
        gamma = gamma.astype(compute_dtype)
        beta = beta.astype(compute_dtype)

    tile_m = _pick_row_tile(M)
    tile_f = _pick_k_tile(Dff)
    num_m = pl.cdiv(M, tile_m)
    num_f = Dff // tile_f
    m_pad = num_m * tile_m
    x2 = _pad_rows(x2, m_pad)
    if vmem_limit_bytes is None:
        vmem_limit_bytes = _default_vmem_limit()

    itemsize = jnp.dtype(x2.dtype).itemsize
    cost = pl.CostEstimate(
        flops=4 * M * D * Dff + 8 * M * D, transcendentals=M,
        bytes_accessed=(2 * M * D + 2 * D * Dff + Dff + 3 * D) * itemsize)

    out2 = pl.pallas_call(
        functools.partial(_ffn_addln_kernel, eps=eps),
        out_shape=jax.ShapeDtypeStruct((m_pad, D), out_dtype),
        grid_spec=pltpu.PrefetchScalarGridSpec(
            num_scalar_prefetch=0,
            grid=(num_m, num_f),
            in_specs=[
                pl.BlockSpec((tile_m, D), lambda i, k: (i, 0)),   # x rows (also residual)
                pl.BlockSpec((D, tile_f), lambda i, k: (0, k)),   # W1 d_ff tile
                pl.BlockSpec((1, tile_f), lambda i, k: (0, k)),   # b1 d_ff tile
                pl.BlockSpec((tile_f, D), lambda i, k: (k, 0)),   # W2 d_ff tile
                pl.BlockSpec((1, D), lambda i, k: (0, 0)),        # b2
                pl.BlockSpec((1, D), lambda i, k: (0, 0)),        # gamma
                pl.BlockSpec((1, D), lambda i, k: (0, 0)),        # beta
            ],
            out_specs=pl.BlockSpec((tile_m, D), lambda i, k: (i, 0)),
            scratch_shapes=[pltpu.VMEM((tile_m, D), jnp.float32)],
        ),
        compiler_params=pltpu.CompilerParams(
            dimension_semantics=("parallel", "arbitrary"),
            vmem_limit_bytes=vmem_limit_bytes),
        cost_estimate=cost,
    )(x2, w1, b1, w2, b2, gamma, beta)
    return out2[:M].reshape(B, S, D)


# ------------------------- attention core kernel ----------------------------

def _attn_kernel(*refs, scale, hb, dk, have_mask):
    if have_mask:
        q_ref, k_ref, v_ref, m_ref, o_ref = refs
    else:
        q_ref, k_ref, v_ref, o_ref = refs
        m_ref = None

    q = q_ref[...]                 # (Sq, hb*dk), native (bf16/f32) dtype -> MXU native rate
    kk = k_ref[...]                # (Sk, hb*dk)
    vv = v_ref[...]                # (Sk, hb*dk)
    if m_ref is not None:
        mask0 = m_ref[...] == 0    # (Sq, Sk), shared across heads in this block

    outs = []
    for h in range(hb):            # static unroll over the heads packed in this block
        lo = h * dk
        qh = q[:, lo:lo + dk]
        kh = kk[:, lo:lo + dk]
        vh = vv[:, lo:lo + dk]
        # qh @ kh^T without materializing a transpose; f32 accumulation on the MXU
        s = lax.dot_general(qh, kh, (((1,), (1,)), ((), ())),
                            preferred_element_type=jnp.float32) * scale
        if m_ref is not None:
            s = jnp.where(mask0, -1e9, s)          # masked_fill(mask == 0, -1e9)
        s = s - jnp.max(s, axis=-1, keepdims=True)
        p = jnp.exp(s)
        l = jnp.sum(p, axis=-1, keepdims=True)
        # deferred softmax normalization: P @ V first, scale the (Sq, dk) result after
        oh = jnp.dot(p.astype(vv.dtype), vh, preferred_element_type=jnp.float32)
        outs.append(oh * (1.0 / l))
    o_ref[...] = jnp.concatenate(outs, axis=-1).astype(o_ref.dtype)


def _attn_head_plan(H, dk):
    """heads-per-block so the block lane width is 128 (or fall back to all heads)."""
    target = max(1, 128 // dk)
    hb = math.gcd(H, target)
    if (hb * dk) % 128 == 0:
        return hb, True            # packed-projection BlockSpec reads are layout-legal
    return H, False                # small models: whole-D blocks from sliced Q/K/V


def attention_core(q_src, k_src, v_src, mask3, *, H, dk, Sq, Sk,
                   q_blk0, k_blk0, v_blk0, hb):
    """Multi-head attention reading head-group column blocks directly out of the
    (possibly packed) projection outputs.  Returns [B, Sq, H*dk] (heads combined)."""
    B = q_src.shape[0]
    D = H * dk
    HB = hb * dk
    G = H // hb
    scale = 1.0 / math.sqrt(dk)
    have_mask = mask3 is not None

    in_specs = [
        pl.BlockSpec((None, Sq, HB), lambda b, g: (b, 0, q_blk0 + g)),
        pl.BlockSpec((None, Sk, HB), lambda b, g: (b, 0, k_blk0 + g)),
        pl.BlockSpec((None, Sk, HB), lambda b, g: (b, 0, v_blk0 + g)),
    ]
    args = [q_src, k_src, v_src]
    if have_mask:
        mb = 1 if mask3.shape[0] > 1 else 0        # broadcast batch-1 masks for free
        in_specs.append(pl.BlockSpec((None, Sq, Sk), lambda b, g: (b * mb, 0, 0)))
        args.append(mask3)

    itemsize = jnp.dtype(q_src.dtype).itemsize
    cost = pl.CostEstimate(
        flops=4 * B * H * Sq * Sk * dk,
        transcendentals=B * H * Sq * Sk,
        bytes_accessed=(B * H * (Sq + 2 * Sk) * dk + B * Sq * D) * itemsize
                       + (B * Sq * Sk * 4 if have_mask else 0))

    # TODO(synk): for long sequences switch to an Sk-tiled flash-style online softmax.
    return pl.pallas_call(
        functools.partial(_attn_kernel, scale=scale, hb=hb, dk=dk, have_mask=have_mask),
        out_shape=jax.ShapeDtypeStruct((B, Sq, D), q_src.dtype),
        grid_spec=pltpu.PrefetchScalarGridSpec(
            num_scalar_prefetch=0,
            grid=(B, G),
            in_specs=in_specs,
            out_specs=pl.BlockSpec((None, Sq, HB), lambda b, g: (b, 0, g)),
        ),
        compiler_params=pltpu.CompilerParams(
            dimension_semantics=("parallel", "parallel")),
        cost_estimate=cost,
    )(*args)


# ----------------------------- module wiring --------------------------------

def _prep_mask(mask, Sq, Sk):
    """Normalize torch-style masks (None / [Sq,Sk] / [B,1,Sq,Sk]) to [Bm,Sq,Sk] f32."""
    if mask is None:
        return None
    m = jnp.asarray(mask)
    if m.ndim == 4:
        # TODO(synk): head-varying masks not supported; mask assumed head-invariant.
        m = m[:, 0]
    if m.ndim == 2:
        m = m[None]
    return jnp.broadcast_to(m, (m.shape[0], Sq, Sk)).astype(jnp.float32)


def mha_add_ln(q_in, k_in, v_in, p, gamma, beta, mask=None, *, fuse_qkv,
               eps=1e-5, compute_dtype=None, vmem_limit_bytes=None):
    """LayerNorm(q_in + MHA(q_in, k_in, v_in)): projections fused (QKV or KV packed),
    attention reads head-group blocks straight from the packed arrays (no transposes),
    and the W_o projection carries the residual-add + LayerNorm in its epilogue."""
    B, Sq, D = q_in.shape
    Sk = k_in.shape[1]
    H = p["num_heads"]
    dk = D // H
    hb, packed_ok = _attn_head_plan(H, dk)
    HB = hb * dk
    G = D // HB

    q2 = q_in.reshape(B * Sq, D)

    if fuse_qkv:
        # self-attention: one projection pass over x with [D, 3D] weights
        wqkv = jnp.concatenate([p["wq"], p["wk"], p["wv"]], axis=1)
        bqkv = jnp.concatenate([p["bq"], p["bk"], p["bv"]], axis=1)
        qkv = linear(q2, wqkv, bqkv, compute_dtype=compute_dtype,
                     vmem_limit_bytes=vmem_limit_bytes).reshape(B, Sq, 3 * D)
        if packed_ok:
            q_src = k_src = v_src = qkv
            q_blk0, k_blk0, v_blk0 = 0, G, 2 * G
        else:
            q_src, k_src, v_src = qkv[..., :D], qkv[..., D:2 * D], qkv[..., 2 * D:]
            q_blk0 = k_blk0 = v_blk0 = 0
    else:
        # cross-attention: Q from decoder state, fused [D, 2D] K/V projection of enc_output
        e2 = k_in.reshape(B * Sk, D)
        q_src = linear(q2, p["wq"], p["bq"], compute_dtype=compute_dtype,
                       vmem_limit_bytes=vmem_limit_bytes).reshape(B, Sq, D)
        wkv = jnp.concatenate([p["wk"], p["wv"]], axis=1)
        bkv = jnp.concatenate([p["bk"], p["bv"]], axis=1)
        kv = linear(e2, wkv, bkv, compute_dtype=compute_dtype,
                    vmem_limit_bytes=vmem_limit_bytes).reshape(B, Sk, 2 * D)
        if packed_ok:
            k_src = v_src = kv
            q_blk0, k_blk0, v_blk0 = 0, 0, G
        else:
            k_src, v_src = kv[..., :D], kv[..., D:]
            q_blk0 = k_blk0 = v_blk0 = 0

    mask3 = _prep_mask(mask, Sq, Sk)
    attn = attention_core(q_src, k_src, v_src, mask3, H=H, dk=dk, Sq=Sq, Sk=Sk,
                          q_blk0=q_blk0, k_blk0=k_blk0, v_blk0=v_blk0, hb=hb)

    out2 = linear_add_ln(attn.reshape(B * Sq, D), p["wo"], p["bo"], q2, gamma, beta,
                         eps=eps, compute_dtype=compute_dtype,
                         vmem_limit_bytes=vmem_limit_bytes)
    return out2.reshape(B, Sq, D)


def decoder_layer(x, enc_output, params, src_mask=None, tgt_mask=None, *,
                  compute_dtype=None, vmem_limit_bytes=None):
    """Forward of the PyTorch DecoderLayer (dropout = identity, eval mode)."""
    x = mha_add_ln(x, x, x, params["self_attn"], *params["norm1"], mask=tgt_mask,
                   fuse_qkv=True, compute_dtype=compute_dtype,
                   vmem_limit_bytes=vmem_limit_bytes)
    x = mha_add_ln(x, enc_output, enc_output, params["cross_attn"], *params["norm2"],
                   mask=src_mask, fuse_qkv=False, compute_dtype=compute_dtype,
                   vmem_limit_bytes=vmem_limit_bytes)
    x = position_wise_ffn_addln(x, *params["ffn"], *params["norm3"],
                                compute_dtype=compute_dtype,
                                vmem_limit_bytes=vmem_limit_bytes)
    return x


# ----------------------------- parameter init -------------------------------

def _init_linear(key, d_in, d_out, dtype=jnp.float32):
    k1, k2 = jax.random.split(key)
    bound = 1.0 / math.sqrt(d_in)
    w = jax.random.uniform(k1, (d_in, d_out), dtype, -bound, bound)  # (in, out)
    b = jax.random.uniform(k2, (1, d_out), dtype, -bound, bound)
    return w, b


def init_decoder_params(key, d_model, num_heads, d_ff, dtype=jnp.float32):
    ks = jax.random.split(key, 4)

    def attn_params(k_attn):
        k = jax.random.split(k_attn, 4)
        wq, bq = _init_linear(k[0], d_model, d_model, dtype)
        wk, bk = _init_linear(k[1], d_model, d_model, dtype)
        wv, bv = _init_linear(k[2], d_model, d_model, dtype)
        wo, bo = _init_linear(k[3], d_model, d_model, dtype)
        return dict(wq=wq, bq=bq, wk=wk, bk=bk, wv=wv, bv=bv, wo=wo, bo=bo,
                    num_heads=num_heads)

    w1, b1 = _init_linear(ks[2], d_model, d_ff, dtype)
    w2, b2 = _init_linear(ks[3], d_ff, d_model, dtype)
    ln = lambda: (jnp.ones((1, d_model), dtype), jnp.zeros((1, d_model), dtype))
    return dict(
        self_attn=attn_params(ks[0]),
        cross_attn=attn_params(ks[1]),
        ffn=(w1, b1, w2, b2),
        norm1=ln(), norm2=ln(), norm3=ln(),
    )


# --------------------------- pure-JAX reference -----------------------------

def _ln_ref(v, gamma, beta, eps=1e-5):
    mu = v.mean(-1, keepdims=True)
    var = ((v - mu) ** 2).mean(-1, keepdims=True)
    return (v - mu) / jnp.sqrt(var + eps) * gamma[0] + beta[0]


def _mha_ref(q_in, k_in, v_in, p, mask):
    B, Sq, D = q_in.shape
    Sk = k_in.shape[1]
    H = p["num_heads"]
    dk = D // H
    proj = lambda x, w, b: x @ w + b[0]
    Q = proj(q_in, p["wq"], p["bq"]).reshape(B, Sq, H, dk).transpose(0, 2, 1, 3)
    K = proj(k_in, p["wk"], p["bk"]).reshape(B, Sk, H, dk).transpose(0, 2, 1, 3)
    V = proj(v_in, p["wv"], p["bv"]).reshape(B, Sk, H, dk).transpose(0, 2, 1, 3)
    s = jnp.einsum("bhqd,bhkd->bhqk", Q, K) / math.sqrt(dk)
    if mask is not None:
        s = jnp.where(jnp.broadcast_to(mask, s.shape) == 0, -1e9, s)
    a = jax.nn.softmax(s, axis=-1)
    o = jnp.einsum("bhqk,bhkd->bhqd", a, V).transpose(0, 2, 1, 3).reshape(B, Sq, D)
    return o @ p["wo"] + p["bo"][0]


def _decoder_layer_ref(x, enc, params, src_mask, tgt_mask):
    a = _mha_ref(x, x, x, params["self_attn"], tgt_mask)
    x = _ln_ref(x + a, *params["norm1"])
    a = _mha_ref(x, enc, enc, params["cross_attn"], src_mask)
    x = _ln_ref(x + a, *params["norm2"])
    w1, b1, w2, b2 = params["ffn"]
    f = jnp.maximum(x @ w1 + b1[0], 0.0) @ w2 + b2[0]
    return _ln_ref(x + f, *params["norm3"])


# ---------------------------------- demo ------------------------------------

if __name__ == "__main__":
    key = jax.random.PRNGKey(0)
    batch, tgt_seq, src_seq = 2, 8, 16
    d_model, num_heads, d_ff = 32, 4, 64

    kx, ke, kp = jax.random.split(key, 3)
    x = jax.random.normal(kx, (batch, tgt_seq, d_model), jnp.float32)
    enc_output = jax.random.normal(ke, (batch, src_seq, d_model), jnp.float32)
    params = init_decoder_params(kp, d_model, num_heads, d_ff)

    # causal target mask in torch masked_fill style (1 = keep, 0 = mask out)
    tgt_mask = jnp.tril(jnp.ones((tgt_seq, tgt_seq), jnp.float32))[None, None]
    src_mask = None

    # f32 path: checked tightly against the pure-JAX reference
    run = jax.jit(lambda xx, ee, mm: decoder_layer(xx, ee, params,
                                                   src_mask=None, tgt_mask=mm))
    out = jax.block_until_ready(run(x, enc_output, tgt_mask))

    ref = _decoder_layer_ref(x, enc_output, params, src_mask, tgt_mask)
    assert out.shape == x.shape
    err = jnp.max(jnp.abs(out - ref))
    assert jnp.allclose(out, ref, atol=1e-3, rtol=1e-3), f"mismatch vs reference: {err}"

    # bf16 compute path (f32 accumulation): smoke test that it compiles & stays finite
    run_bf16 = jax.jit(lambda xx, ee, mm: decoder_layer(
        xx, ee, params, src_mask=None, tgt_mask=mm, compute_dtype=jnp.bfloat16))
    out_bf16 = jax.block_until_ready(run_bf16(x, enc_output, tgt_mask))
    assert out_bf16.shape == x.shape
    assert bool(jnp.all(jnp.isfinite(out_bf16.astype(jnp.float32))))

    print("KERNEL_OK")
</pallas_src>

<mosaic_0001>
module attributes {stable_mosaic.version = 11 : i64} {
  func.func @_linear_kernel(%arg0: i32, %arg1: i32, %arg2: memref<8x32xf32, #tpu.memory_space<vmem>>, %arg3: memref<32x96xf32, #tpu.memory_space<vmem>>, %arg4: memref<1x96xf32, #tpu.memory_space<vmem>>, %arg5: memref<8x96xf32, #tpu.memory_space<vmem>>, %arg6: memref<8x96xf32, #tpu.memory_space<vmem>>) attributes {dimension_semantics = [#tpu.dimension_semantics<parallel>, #tpu.dimension_semantics<arbitrary>], iteration_bounds = array<i64: 2, 1>, scalar_prefetch = 0 : i64, scratch_operands = 1 : i64, tpu.core_type = #tpu.core_type<tc>, window_params = [{transform_indices = @transform_0, window_bounds = array<i64: 8, 32>}, {transform_indices = @transform_1, window_bounds = array<i64: 32, 96>}, {pipeline_mode = #tpu.pipeline_mode<synchronous>, transform_indices = @transform_2, window_bounds = array<i64: 1, 96>}, {transform_indices = @transform_3, window_bounds = array<i64: 8, 96>}]} {
    %c0_i32 = arith.constant 0 : i32
    %0 = arith.cmpi eq, %arg1, %c0_i32 : i32
    %1 = arith.extui %0 : i1 to i32
    %c0_i32_0 = arith.constant 0 : i32
    %2 = arith.cmpi ne, %1, %c0_i32_0 : i32
    scf.if %2 {
      %cst_10 = arith.constant 0.000000e+00 : f32
      %12 = vector.broadcast %cst_10 : f32 to vector<8x96xf32>
      %c0_11 = arith.constant 0 : index
      %c0_12 = arith.constant 0 : index
      %13 = vector.load %arg6[%c0_11, %c0_12] : memref<8x96xf32, #tpu.memory_space<vmem>>, vector<8x96xf32>
      tpu.vector_store %arg6[%c0_11, %c0_12], %12 {strides = array<i32>} : memref<8x96xf32, #tpu.memory_space<vmem>>, vector<8x96xf32>,
    } else {
    }
    %c0 = arith.constant 0 : index
    %c0_1 = arith.constant 0 : index
    %3 = vector.load %arg6[%c0, %c0_1] : memref<8x96xf32, #tpu.memory_space<vmem>>, vector<8x96xf32>
    %c0_2 = arith.constant 0 : index
    %c0_3 = arith.constant 0 : index
    %4 = vector.load %arg2[%c0_2, %c0_3] : memref<8x32xf32, #tpu.memory_space<vmem>>, vector<8x32xf32>
    %c0_4 = arith.constant 0 : index
    %c0_5 = arith.constant 0 : index
    %5 = vector.load %arg3[%c0_4, %c0_5] : memref<32x96xf32, #tpu.memory_space<vmem>>, vector<32x96xf32>
    %cst = arith.constant dense<0.000000e+00> : vector<8x96xf32>
    %6 = tpu.matmul %4, %5, %cst {dimension_numbers = #tpu.dot_dimension_numbers<[1], [0], [0], [1], [0, 0, 1, 1], [], []>} : vector<8x32xf32>, vector<32x96xf32>, vector<8x96xf32> -> vector<8x96xf32>
    %7 = arith.addf %3, %6 : vector<8x96xf32>
    %c0_6 = arith.constant 0 : index
    %c0_7 = arith.constant 0 : index
    %8 = vector.load %arg6[%c0_6, %c0_7] : memref<8x96xf32, #tpu.memory_space<vmem>>, vector<8x96xf32>
    tpu.vector_store %arg6[%c0_6, %c0_7], %7 {strides = array<i32>} : memref<8x96xf32, #tpu.memory_space<vmem>>, vector<8x96xf32>,
    %c0_i32_8 = arith.constant 0 : i32
    %9 = arith.cmpi eq, %arg1, %c0_i32_8 : i32
    %10 = arith.extui %9 : i1 to i32
    %c0_i32_9 = arith.constant 0 : i32
    %11 = arith.cmpi ne, %10, %c0_i32_9 : i32
    scf.if %11 {
      %c0_10 = arith.constant 0 : index
      %c0_11 = arith.constant 0 : index
      %12 = vector.load %arg6[%c0_10, %c0_11] : memref<8x96xf32, #tpu.memory_space<vmem>>, vector<8x96xf32>
      %c0_12 = arith.constant 0 : index
      %c0_13 = arith.constant 0 : index
      %13 = vector.load %arg4[%c0_12, %c0_13] : memref<1x96xf32, #tpu.memory_space<vmem>>, vector<1x96xf32>
      %14 = vector.broadcast %13 : vector<1x96xf32> to vector<8x96xf32>
      %15 = arith.addf %12, %14 : vector<8x96xf32>
      %c0_14 = arith.constant 0 : index
      %c0_15 = arith.constant 0 : index
      %16 = vector.load %arg5[%c0_14, %c0_15] : memref<8x96xf32, #tpu.memory_space<vmem>>, vector<8x96xf32>
      tpu.vector_store %arg5[%c0_14, %c0_15], %15 {strides = array<i32>} : memref<8x96xf32, #tpu.memory_space<vmem>>, vector<8x96xf32>,
    } else {
    }
    return
  }
  func.func @transform_0(%arg0: i32, %arg1: i32) -> (i32, i32) {
    %c0_i32 = arith.constant 0 : i32
    return %arg0, %arg1 : i32, i32
  }
  func.func @transform_1(%arg0: i32, %arg1: i32) -> (i32, i32) {
    %c0_i32 = arith.constant 0 : i32
    %c0_i32_0 = arith.constant 0 : i32
    return %arg1, %c0_i32 : i32, i32
  }
  func.func @transform_2(%arg0: i32, %arg1: i32) -> (i32, i32) {
    %c0_i32 = arith.constant 0 : i32
    %c0_i32_0 = arith.constant 0 : i32
    %c0_i32_1 = arith.constant 0 : i32
    return %c0_i32, %c0_i32_0 : i32, i32
  }
  func.func @transform_3(%arg0: i32, %arg1: i32) -> (i32, i32) {
    %c0_i32 = arith.constant 0 : i32
    %c0_i32_0 = arith.constant 0 : i32
    return %arg0, %c0_i32 : i32, i32
  }
}

module attributes {stable_mosaic.version = 11 : i64} {
  func.func @_linear_kernel(%arg0: i32, %arg1: i32, %arg2: memref<16x32xf32, #tpu.memory_space<vmem>>, %arg3: memref<32x64xf32, #tpu.memory_space<vmem>>, %arg4: memref<1x64xf32, #tpu.memory_space<vmem>>, %arg5: memref<16x64xf32, #tpu.memory_space<vmem>>, %arg6: memref<16x64xf32, #tpu.memory_space<vmem>>) attributes {dimension_semantics = [#tpu.dimension_semantics<parallel>, #tpu.dimension_semantics<arbitrary>], iteration_bounds = array<i64: 2, 1>, scalar_prefetch = 0 : i64, scratch_operands = 1 : i64, tpu.core_type = #tpu.core_type<tc>, window_params = [{transform_indices = @transform_0, window_bounds = array<i64: 16, 32>}, {transform_indices = @transform_1, window_bounds = array<i64: 32, 64>}, {pipeline_mode = #tpu.pipeline_mode<synchronous>, transform_indices = @transform_2, window_bounds = array<i64: 1, 64>}, {transform_indices = @transform_3, window_bounds = array<i64: 16, 64>}]} {
    %c0_i32 = arith.constant 0 : i32
    %0 = arith.cmpi eq, %arg1, %c0_i32 : i32
    %1 = arith.extui %0 : i1 to i32
    %c0_i32_0 = arith.constant 0 : i32
    %2 = arith.cmpi ne, %1, %c0_i32_0 : i32
    scf.if %2 {
      %cst_10 = arith.constant 0.000000e+00 : f32
      %12 = vector.broadcast %cst_10 : f32 to vector<16x64xf32>
      %c0_11 = arith.constant 0 : index
      %c0_12 = arith.constant 0 : index
      %13 = vector.load %arg6[%c0_11, %c0_12] : memref<16x64xf32, #tpu.memory_space<vmem>>, vector<16x64xf32>
      tpu.vector_store %arg6[%c0_11, %c0_12], %12 {strides = array<i32>} : memref<16x64xf32, #tpu.memory_space<vmem>>, vector<16x64xf32>,
    } else {
    }
    %c0 = arith.constant 0 : index
    %c0_1 = arith.constant 0 : index
    %3 = vector.load %arg6[%c0, %c0_1] : memref<16x64xf32, #tpu.memory_space<vmem>>, vector<16x64xf32>
    %c0_2 = arith.constant 0 : index
    %c0_3 = arith.constant 0 : index
    %4 = vector.load %arg2[%c0_2, %c0_3] : memref<16x32xf32, #tpu.memory_space<vmem>>, vector<16x32xf32>
    %c0_4 = arith.constant 0 : index
    %c0_5 = arith.constant 0 : index
    %5 = vector.load %arg3[%c0_4, %c0_5] : memref<32x64xf32, #tpu.memory_space<vmem>>, vector<32x64xf32>
    %cst = arith.constant dense<0.000000e+00> : vector<16x64xf32>
    %6 = tpu.matmul %4, %5, %cst {dimension_numbers = #tpu.dot_dimension_numbers<[1], [0], [0], [1], [0, 0, 1, 1], [], []>} : vector<16x32xf32>, vector<32x64xf32>, vector<16x64xf32> -> vector<16x64xf32>
    %7 = arith.addf %3, %6 : vector<16x64xf32>
    %c0_6 = arith.constant 0 : index
    %c0_7 = arith.constant 0 : index
    %8 = vector.load %arg6[%c0_6, %c0_7] : memref<16x64xf32, #tpu.memory_space<vmem>>, vector<16x64xf32>
    tpu.vector_store %arg6[%c0_6, %c0_7], %7 {strides = array<i32>} : memref<16x64xf32, #tpu.memory_space<vmem>>, vector<16x64xf32>,
    %c0_i32_8 = arith.constant 0 : i32
    %9 = arith.cmpi eq, %arg1, %c0_i32_8 : i32
    %10 = arith.extui %9 : i1 to i32
    %c0_i32_9 = arith.constant 0 : i32
    %11 = arith.cmpi ne, %10, %c0_i32_9 : i32
    scf.if %11 {
      %c0_10 = arith.constant 0 : index
      %c0_11 = arith.constant 0 : index
      %12 = vector.load %arg6[%c0_10, %c0_11] : memref<16x64xf32, #tpu.memory_space<vmem>>, vector<16x64xf32>
      %c0_12 = arith.constant 0 : index
      %c0_13 = arith.constant 0 : index
      %13 = vector.load %arg4[%c0_12, %c0_13] : memref<1x64xf32, #tpu.memory_space<vmem>>, vector<1x64xf32>
      %14 = vector.broadcast %13 : vector<1x64xf32> to vector<16x64xf32>
      %15 = arith.addf %12, %14 : vector<16x64xf32>
      %c0_14 = arith.constant 0 : index
      %c0_15 = arith.constant 0 : index
      %16 = vector.load %arg5[%c0_14, %c0_15] : memref<16x64xf32, #tpu.memory_space<vmem>>, vector<16x64xf32>
      tpu.vector_store %arg5[%c0_14, %c0_15], %15 {strides = array<i32>} : memref<16x64xf32, #tpu.memory_space<vmem>>, vector<16x64xf32>,
    } else {
    }
    return
  }
  func.func @transform_0(%arg0: i32, %arg1: i32) -> (i32, i32) {
    %c0_i32 = arith.constant 0 : i32
    return %arg0, %arg1 : i32, i32
  }
  func.func @transform_1(%arg0: i32, %arg1: i32) -> (i32, i32) {
    %c0_i32 = arith.constant 0 : i32
    %c0_i32_0 = arith.constant 0 : i32
    return %arg1, %c0_i32 : i32, i32
  }
  func.func @transform_2(%arg0: i32, %arg1: i32) -> (i32, i32) {
    %c0_i32 = arith.constant 0 : i32
    %c0_i32_0 = arith.constant 0 : i32
    %c0_i32_1 = arith.constant 0 : i32
    return %c0_i32, %c0_i32_0 : i32, i32
  }
  func.func @transform_3(%arg0: i32, %arg1: i32) -> (i32, i32) {
    %c0_i32 = arith.constant 0 : i32
    %c0_i32_0 = arith.constant 0 : i32
    return %arg0, %c0_i32 : i32, i32
  }
}

module attributes {stable_mosaic.version = 11 : i64} {
  func.func @_attn_kernel(%arg0: i32, %arg1: i32, %arg2: memref<1x8x32xf32, #tpu.memory_space<vmem>>, %arg3: memref<1x8x32xf32, #tpu.memory_space<vmem>>, %arg4: memref<1x8x32xf32, #tpu.memory_space<vmem>>, %arg5: memref<1x8x8xf32, #tpu.memory_space<vmem>>, %arg6: memref<1x8x32xf32, #tpu.memory_space<vmem>>) attributes {dimension_semantics = [#tpu.dimension_semantics<parallel>, #tpu.dimension_semantics<parallel>], iteration_bounds = array<i64: 2, 1>, scalar_prefetch = 0 : i64, scratch_operands = 0 : i64, tpu.core_type = #tpu.core_type<tc>, window_params = [{transform_indices = @transform_0, window_bounds = array<i64: 1, 8, 32>}, {transform_indices = @transform_1, window_bounds = array<i64: 1, 8, 32>}, {transform_indices = @transform_2, window_bounds = array<i64: 1, 8, 32>}, {transform_indices = @transform_3, window_bounds = array<i64: 1, 8, 8>}, {transform_indices = @transform_4, window_bounds = array<i64: 1, 8, 32>}]} {
    %c0 = arith.constant 0 : index
    %c0_0 = arith.constant 0 : index
    %c0_1 = arith.constant 0 : index
    %0 = vector.load %arg2[%c0, %c0_0, %c0_1] : memref<1x8x32xf32, #tpu.memory_space<vmem>>, vector<1x8x32xf32>
    %1 = vector.shape_cast %0 : vector<1x8x32xf32> to vector<8x32xf32>
    %c0_2 = arith.constant 0 : index
    %c0_3 = arith.constant 0 : index
    %c0_4 = arith.constant 0 : index
    %2 = vector.load %arg3[%c0_2, %c0_3, %c0_4] : memref<1x8x32xf32, #tpu.memory_space<vmem>>, vector<1x8x32xf32>
    %3 = vector.shape_cast %2 : vector<1x8x32xf32> to vector<8x32xf32>
    %c0_5 = arith.constant 0 : index
    %c0_6 = arith.constant 0 : index
    %c0_7 = arith.constant 0 : index
    %4 = vector.load %arg4[%c0_5, %c0_6, %c0_7] : memref<1x8x32xf32, #tpu.memory_space<vmem>>, vector<1x8x32xf32>
    %5 = vector.shape_cast %4 : vector<1x8x32xf32> to vector<8x32xf32>
    %c0_8 = arith.constant 0 : index
    %c0_9 = arith.constant 0 : index
    %c0_10 = arith.constant 0 : index
    %6 = vector.load %arg5[%c0_8, %c0_9, %c0_10] : memref<1x8x8xf32, #tpu.memory_space<vmem>>, vector<1x8x8xf32>
    %7 = vector.shape_cast %6 : vector<1x8x8xf32> to vector<8x8xf32>
    %cst = arith.constant 0.000000e+00 : f32
    %8 = vector.broadcast %cst : f32 to vector<8x8xf32>
    %9 = arith.cmpf oeq, %7, %8 : vector<8x8xf32>
    %10 = vector.extract_strided_slice %1 {offsets = [0, 0], sizes = [8, 8], strides = [1, 1]} : vector<8x32xf32> to vector<8x8xf32>
    %11 = vector.extract_strided_slice %3 {offsets = [0, 0], sizes = [8, 8], strides = [1, 1]} : vector<8x32xf32> to vector<8x8xf32>
    %12 = vector.extract_strided_slice %5 {offsets = [0, 0], sizes = [8, 8], strides = [1, 1]} : vector<8x32xf32> to vector<8x8xf32>
    %cst_11 = arith.constant dense<0.000000e+00> : vector<8x8xf32>
    %13 = tpu.matmul %10, %11, %cst_11 {dimension_numbers = #tpu.dot_dimension_numbers<[1], [1], [0], [0], [0, 0, 1, 0], [], []>} : vector<8x8xf32>, vector<8x8xf32>, vector<8x8xf32> -> vector<8x8xf32>
    %cst_12 = arith.constant 0.353553385 : f32
    %14 = vector.broadcast %cst_12 : f32 to vector<8x8xf32>
    %15 = arith.mulf %13, %14 : vector<8x8xf32>
    %cst_13 = arith.constant -1.000000e+09 : f32
    %16 = vector.broadcast %cst_13 : f32 to vector<8x8xf32>
    %17 = arith.select %9, %16, %15 : vector<8x8xi1>, vector<8x8xf32>
    %cst_14 = arith.constant dense<0xFF800000> : vector<8xf32>
    %18 = vector.multi_reduction <maximumf>, %17, %cst_14 [1] : vector<8x8xf32> to vector<8xf32>
    %19 = vector.shape_cast %18 : vector<8xf32> to vector<8x1xf32>
    %20 = vector.broadcast %19 : vector<8x1xf32> to vector<8x8xf32>
    %21 = arith.subf %17, %20 : vector<8x8xf32>
    %22 = math.exp %21 : vector<8x8xf32>
    %cst_15 = arith.constant dense<0.000000e+00> : vector<8xf32>
    %23 = vector.multi_reduction <add>, %22, %cst_15 [1] : vector<8x8xf32> to vector<8xf32>
    %24 = vector.shape_cast %23 : vector<8xf32> to vector<8x1xf32>
    %cst_16 = arith.constant dense<0.000000e+00> : vector<8x8xf32>
    %25 = tpu.matmul %22, %12, %cst_16 {dimension_numbers = #tpu.dot_dimension_numbers<[1], [0], [0], [1], [0, 0, 1, 1], [], []>} : vector<8x8xf32>, vector<8x8xf32>, vector<8x8xf32> -> vector<8x8xf32>
    %cst_17 = arith.constant 1.000000e+00 : f32
    %26 = vector.broadcast %cst_17 : f32 to vector<8x1xf32>
    %27 = arith.divf %26, %24 : vector<8x1xf32>
    %28 = vector.broadcast %27 : vector<8x1xf32> to vector<8x8xf32>
    %29 = arith.mulf %25, %28 : vector<8x8xf32>
    %30 = vector.extract_strided_slice %1 {offsets = [0, 8], sizes = [8, 8], strides = [1, 1]} : vector<8x32xf32> to vector<8x8xf32>
    %31 = vector.extract_strided_slice %3 {offsets = [0, 8], sizes = [8, 8], strides = [1, 1]} : vector<8x32xf32> to vector<8x8xf32>
    %32 = vector.extract_strided_slice %5 {offsets = [0, 8], sizes = [8, 8], strides = [1, 1]} : vector<8x32xf32> to vector<8x8xf32>
    %cst_18 = arith.constant dense<0.000000e+00> : vector<8x8xf32>
    %33 = tpu.matmul %30, %31, %cst_18 {dimension_numbers = #tpu.dot_dimension_numbers<[1], [1], [0], [0], [0, 0, 1, 0], [], []>} : vector<8x8xf32>, vector<8x8xf32>, vector<8x8xf32> -> vector<8x8xf32>
    %cst_19 = arith.constant 0.353553385 : f32
    %34 = vector.broadcast %cst_19 : f32 to vector<8x8xf32>
    %35 = arith.mulf %33, %34 : vector<8x8xf32>
    %cst_20 = arith.constant -1.000000e+09 : f32
    %36 = vector.broadcast %cst_20 : f32 to vector<8x8xf32>
    %37 = arith.select %9, %36, %35 : vector<8x8xi1>, vector<8x8xf32>
    %cst_21 = arith.constant dense<0xFF800000> : vector<8xf32>
    %38 = vector.multi_reduction <maximumf>, %37, %cst_21 [1] : vector<8x8xf32> to vector<8xf32>
    %39 = vector.shape_cast %38 : vector<8xf32> to vector<8x1xf32>
    %40 = vector.broadcast %39 : vector<8x1xf32> to vector<8x8xf32>
    %41 = arith.subf %37, %40 : vector<8x8xf32>
    %42 = math.exp %41 : vector<8x8xf32>
    %cst_22 = arith.constant dense<0.000000e+00> : vector<8xf32>
    %43 = vector.multi_reduction <add>, %42, %cst_22 [1] : vector<8x8xf32> to vector<8xf32>
    %44 = vector.shape_cast %43 : vector<8xf32> to vector<8x1xf32>
    %cst_23 = arith.constant dense<0.000000e+00> : vector<8x8xf32>
    %45 = tpu.matmul %42, %32, %cst_23 {dimension_numbers = #tpu.dot_dimension_numbers<[1], [0], [0], [1], [0, 0, 1, 1], [], []>} : vector<8x8xf32>, vector<8x8xf32>, vector<8x8xf32> -> vector<8x8xf32>
    %cst_24 = arith.constant 1.000000e+00 : f32
    %46 = vector.broadcast %cst_24 : f32 to vector<8x1xf32>
    %47 = arith.divf %46, %44 : vector<8x1xf32>
    %48 = vector.broadcast %47 : vector<8x1xf32> to vector<8x8xf32>
    %49 = arith.mulf %45, %48 : vector<8x8xf32>
    %50 = vector.extract_strided_slice %1 {offsets = [0, 16], sizes = [8, 8], strides = [1, 1]} : vector<8x32xf32> to vector<8x8xf32>
    %51 = vector.extract_strided_slice %3 {offsets = [0, 16], sizes = [8, 8], strides = [1, 1]} : vector<8x32xf32> to vector<8x8xf32>
    %52 = vector.extract_strided_slice %5 {offsets = [0, 16], sizes = [8, 8], strides = [1, 1]} : vector<8x32xf32> to vector<8x8xf32>
    %cst_25 = arith.constant dense<0.000000e+00> : vector<8x8xf32>
    %53 = tpu.matmul %50, %51, %cst_25 {dimension_numbers = #tpu.dot_dimension_numbers<[1], [1], [0], [0], [0, 0, 1, 0], [], []>} : vector<8x8xf32>, vector<8x8xf32>, vector<8x8xf32> -> vector<8x8xf32>
    %cst_26 = arith.constant 0.353553385 : f32
    %54 = vector.broadcast %cst_26 : f32 to vector<8x8xf32>
    %55 = arith.mulf %53, %54 : vector<8x8xf32>
    %cst_27 = arith.constant -1.000000e+09 : f32
    %56 = vector.broadcast %cst_27 : f32 to vector<8x8xf32>
    %57 = arith.select %9, %56, %55 : vector<8x8xi1>, vector<8x8xf32>
    %cst_28 = arith.constant dense<0xFF800000> : vector<8xf32>
    %58 = vector.multi_reduction <maximumf>, %57, %cst_28 [1] : vector<8x8xf32> to vector<8xf32>
    %59 = vector.shape_cast %58 : vector<8xf32> to vector<8x1xf32>
    %60 = vector.broadcast %59 : vector<8x1xf32> to vector<8x8xf32>
    %61 = arith.subf %57, %60 : vector<8x8xf32>
    %62 = math.exp %61 : vector<8x8xf32>
    %cst_29 = arith.constant dense<0.000000e+00> : vector<8xf32>
    %63 = vector.multi_reduction <add>, %62, %cst_29 [1] : vector<8x8xf32> to vector<8xf32>
    %64 = vector.shape_cast %63 : vector<8xf32> to vector<8x1xf32>
    %cst_30 = arith.constant dense<0.000000e+00> : vector<8x8xf32>
    %65 = tpu.matmul %62, %52, %cst_30 {dimension_numbers = #tpu.dot_dimension_numbers<[1], [0], [0], [1], [0, 0, 1, 1], [], []>} : vector<8x8xf32>, vector<8x8xf32>, vector<8x8xf32> -> vector<8x8xf32>
    %cst_31 = arith.constant 1.000000e+00 : f32
    %66 = vector.broadcast %cst_31 : f32 to vector<8x1xf32>
    %67 = arith.divf %66, %64 : vector<8x1xf32>
    %68 = vector.broadcast %67 : vector<8x1xf32> to vector<8x8xf32>
    %69 = arith.mulf %65, %68 : vector<8x8xf32>
    %70 = vector.extract_strided_slice %1 {offsets = [0, 24], sizes = [8, 8], strides = [1, 1]} : vector<8x32xf32> to vector<8x8xf32>
    %71 = vector.extract_strided_slice %3 {offsets = [0, 24], sizes = [8, 8], strides = [1, 1]} : vector<8x32xf32> to vector<8x8xf32>
    %72 = vector.extract_strided_slice %5 {offsets = [0, 24], sizes = [8, 8], strides = [1, 1]} : vector<8x32xf32> to vector<8x8xf32>
    %cst_32 = arith.constant dense<0.000000e+00> : vector<8x8xf32>
    %73 = tpu.matmul %70, %71, %cst_32 {dimension_numbers = #tpu.dot_dimension_numbers<[1], [1], [0], [0], [0, 0, 1, 0], [], []>} : vector<8x8xf32>, vector<8x8xf32>, vector<8x8xf32> -> vector<8x8xf32>
    %cst_33 = arith.constant 0.353553385 : f32
    %74 = vector.broadcast %cst_33 : f32 to vector<8x8xf32>
    %75 = arith.mulf %73, %74 : vector<8x8xf32>
    %cst_34 = arith.constant -1.000000e+09 : f32
    %76 = vector.broadcast %cst_34 : f32 to vector<8x8xf32>
    %77 = arith.select %9, %76, %75 : vector<8x8xi1>, vector<8x8xf32>
    %cst_35 = arith.constant dense<0xFF800000> : vector<8xf32>
    %78 = vector.multi_reduction <maximumf>, %77, %cst_35 [1] : vector<8x8xf32> to vector<8xf32>
    %79 = vector.shape_cast %78 : vector<8xf32> to vector<8x1xf32>
    %80 = vector.broadcast %79 : vector<8x1xf32> to vector<8x8xf32>
    %81 = arith.subf %77, %80 : vector<8x8xf32>
    %82 = math.exp %81 : vector<8x8xf32>
    %cst_36 = arith.constant dense<0.000000e+00> : vector<8xf32>
    %83 = vector.multi_reduction <add>, %82, %cst_36 [1] : vector<8x8xf32> to vector<8xf32>
    %84 = vector.shape_cast %83 : vector<8xf32> to vector<8x1xf32>
    %cst_37 = arith.constant dense<0.000000e+00> : vector<8x8xf32>
    %85 = tpu.matmul %82, %72, %cst_37 {dimension_numbers = #tpu.dot_dimension_numbers<[1], [0], [0], [1], [0, 0, 1, 1], [], []>} : vector<8x8xf32>, vector<8x8xf32>, vector<8x8xf32> -> vector<8x8xf32>
    %cst_38 = arith.constant 1.000000e+00 : f32
    %86 = vector.broadcast %cst_38 : f32 to vector<8x1xf32>
    %87 = arith.divf %86, %84 : vector<8x1xf32>
    %88 = vector.broadcast %87 : vector<8x1xf32> to vector<8x8xf32>
    %89 = arith.mulf %85, %88 : vector<8x8xf32>
    %90 = tpu.concatenate %29, %49, %69, %89 in 1 : vector<8x8xf32>, vector<8x8xf32>, vector<8x8xf32>, vector<8x8xf32> -> vector<8x32xf32>
    %c0_39 = arith.constant 0 : index
    %c0_40 = arith.constant 0 : index
    %c0_41 = arith.constant 0 : index
    %91 = vector.load %arg6[%c0_39, %c0_40, %c0_41] : memref<1x8x32xf32, #tpu.memory_space<vmem>>, vector<1x8x32xf32>
    %92 = vector.shape_cast %91 : vector<1x8x32xf32> to vector<8x32xf32>
    %93 = vector.shape_cast %90 : vector<8x32xf32> to vector<1x8x32xf32>
    tpu.vector_store %arg6[%c0_39, %c0_40, %c0_41], %93 {strides = array<i32>} : memref<1x8x32xf32, #tpu.memory_space<vmem>>, vector<1x8x32xf32>,
    return
  }
  func.func @transform_0(%arg0: i32, %arg1: i32) -> (i32, i32, i32) {
    %c0_i32 = arith.constant 0 : i32
    %0 = arith.addi %c0_i32, %arg1 : i32
    %c0_i32_0 = arith.constant 0 : i32
    %c0_i32_1 = arith.constant 0 : i32
    return %arg0, %c0_i32_0, %0 : i32, i32, i32
  }
  func.func @transform_1(%arg0: i32, %arg1: i32) -> (i32, i32, i32) {
    %c0_i32 = arith.constant 0 : i32
    %0 = arith.addi %c0_i32, %arg1 : i32
    %c0_i32_0 = arith.constant 0 : i32
    %c0_i32_1 = arith.constant 0 : i32
    return %arg0, %c0_i32_0, %0 : i32, i32, i32
  }
  func.func @transform_2(%arg0: i32, %arg1: i32) -> (i32, i32, i32) {
    %c0_i32 = arith.constant 0 : i32
    %0 = arith.addi %c0_i32, %arg1 : i32
    %c0_i32_0 = arith.constant 0 : i32
    %c0_i32_1 = arith.constant 0 : i32
    return %arg0, %c0_i32_0, %0 : i32, i32, i32
  }
  func.func @transform_3(%arg0: i32, %arg1: i32) -> (i32, i32, i32) {
    %c0_i32 = arith.constant 0 : i32
    %0 = arith.muli %arg0, %c0_i32 : i32
    %c0_i32_0 = arith.constant 0 : i32
    %c0_i32_1 = arith.constant 0 : i32
    %c0_i32_2 = arith.constant 0 : i32
    return %0, %c0_i32_0, %c0_i32_1 : i32, i32, i32
  }
  func.func @transform_4(%arg0: i32, %arg1: i32) -> (i32, i32, i32) {
    %c0_i32 = arith.constant 0 : i32
    %c0_i32_0 = arith.constant 0 : i32
    return %arg0, %c0_i32, %arg1 : i32, i32, i32
  }
}

module attributes {stable_mosaic.version = 11 : i64} {
  func.func @_linear_addln_kernel(%arg0: i32, %arg1: i32, %arg2: memref<8x32xf32, #tpu.memory_space<vmem>>, %arg3: memref<32x32xf32, #tpu.memory_space<vmem>>, %arg4: memref<1x32xf32, #tpu.memory_space<vmem>>, %arg5: memref<8x32xf32, #tpu.memory_space<vmem>>, %arg6: memref<1x32xf32, #tpu.memory_space<vmem>>, %arg7: memref<1x32xf32, #tpu.memory_space<vmem>>, %arg8: memref<8x32xf32, #tpu.memory_space<vmem>>, %arg9: memref<8x32xf32, #tpu.memory_space<vmem>>) attributes {dimension_semantics = [#tpu.dimension_semantics<parallel>, #tpu.dimension_semantics<arbitrary>], iteration_bounds = array<i64: 2, 1>, scalar_prefetch = 0 : i64, scratch_operands = 1 : i64, tpu.core_type = #tpu.core_type<tc>, window_params = [{transform_indices = @transform_0, window_bounds = array<i64: 8, 32>}, {transform_indices = @transform_1, window_bounds = array<i64: 32, 32>}, {pipeline_mode = #tpu.pipeline_mode<synchronous>, transform_indices = @transform_2, window_bounds = array<i64: 1, 32>}, {transform_indices = @transform_3, window_bounds = array<i64: 8, 32>}, {pipeline_mode = #tpu.pipeline_mode<synchronous>, transform_indices = @transform_4, window_bounds = array<i64: 1, 32>}, {pipeline_mode = #tpu.pipeline_mode<synchronous>, transform_indices = @transform_5, window_bounds = array<i64: 1, 32>}, {transform_indices = @transform_6, window_bounds = array<i64: 8, 32>}]} {
    %c0_i32 = arith.constant 0 : i32
    %0 = arith.cmpi eq, %arg1, %c0_i32 : i32
    %1 = arith.extui %0 : i1 to i32
    %c0_i32_0 = arith.constant 0 : i32
    %2 = arith.cmpi ne, %1, %c0_i32_0 : i32
    scf.if %2 {
      %cst_10 = arith.constant 0.000000e+00 : f32
      %12 = vector.broadcast %cst_10 : f32 to vector<8x32xf32>
      %c0_11 = arith.constant 0 : index
      %c0_12 = arith.constant 0 : index
      %13 = vector.load %arg9[%c0_11, %c0_12] : memref<8x32xf32, #tpu.memory_space<vmem>>, vector<8x32xf32>
      tpu.vector_store %arg9[%c0_11, %c0_12], %12 {strides = array<i32>} : memref<8x32xf32, #tpu.memory_space<vmem>>, vector<8x32xf32>,
    } else {
    }
    %c0 = arith.constant 0 : index
    %c0_1 = arith.constant 0 : index
    %3 = vector.load %arg9[%c0, %c0_1] : memref<8x32xf32, #tpu.memory_space<vmem>>, vector<8x32xf32>
    %c0_2 = arith.constant 0 : index
    %c0_3 = arith.constant 0 : index
    %4 = vector.load %arg2[%c0_2, %c0_3] : memref<8x32xf32, #tpu.memory_space<vmem>>, vector<8x32xf32>
    %c0_4 = arith.constant 0 : index
    %c0_5 = arith.constant 0 : index
    %5 = vector.load %arg3[%c0_4, %c0_5] : memref<32x32xf32, #tpu.memory_space<vmem>>, vector<32x32xf32>
    %cst = arith.constant dense<0.000000e+00> : vector<8x32xf32>
    %6 = tpu.matmul %4, %5, %cst {dimension_numbers = #tpu.dot_dimension_numbers<[1], [0], [0], [1], [0, 0, 1, 1], [], []>} : vector<8x32xf32>, vector<32x32xf32>, vector<8x32xf32> -> vector<8x32xf32>
    %7 = arith.addf %3, %6 : vector<8x32xf32>
    %c0_6 = arith.constant 0 : index
    %c0_7 = arith.constant 0 : index
    %8 = vector.load %arg9[%c0_6, %c0_7] : memref<8x32xf32, #tpu.memory_space<vmem>>, vector<8x32xf32>
    tpu.vector_store %arg9[%c0_6, %c0_7], %7 {strides = array<i32>} : memref<8x32xf32, #tpu.memory_space<vmem>>, vector<8x32xf32>,
    %c0_i32_8 = arith.constant 0 : i32
    %9 = arith.cmpi eq, %arg1, %c0_i32_8 : i32
    %10 = arith.extui %9 : i1 to i32
    %c0_i32_9 = arith.constant 0 : i32
    %11 = arith.cmpi ne, %10, %c0_i32_9 : i32
    scf.if %11 {
      %c0_10 = arith.constant 0 : index
      %c0_11 = arith.constant 0 : index
      %12 = vector.load %arg9[%c0_10, %c0_11] : memref<8x32xf32, #tpu.memory_space<vmem>>, vector<8x32xf32>
      %c0_12 = arith.constant 0 : index
      %c0_13 = arith.constant 0 : index
      %13 = vector.load %arg4[%c0_12, %c0_13] : memref<1x32xf32, #tpu.memory_space<vmem>>, vector<1x32xf32>
      %14 = vector.broadcast %13 : vector<1x32xf32> to vector<8x32xf32>
      %15 = arith.addf %12, %14 : vector<8x32xf32>
      %c0_14 = arith.constant 0 : index
      %c0_15 = arith.constant 0 : index
      %16 = vector.load %arg5[%c0_14, %c0_15] : memref<8x32xf32, #tpu.memory_space<vmem>>, vector<8x32xf32>
      %17 = arith.addf %15, %16 : vector<8x32xf32>
      %cst_16 = arith.constant dense<0.000000e+00> : vector<8xf32>
      %18 = vector.multi_reduction <add>, %17, %cst_16 [1] : vector<8x32xf32> to vector<8xf32>
      %19 = vector.shape_cast %18 : vector<8xf32> to vector<8x1xf32>
      %cst_17 = arith.constant 3.200000e+01 : f32
      %20 = vector.broadcast %cst_17 : f32 to vector<8x1xf32>
      %21 = arith.divf %19, %20 : vector<8x1xf32>
      %22 = vector.broadcast %21 : vector<8x1xf32> to vector<8x32xf32>
      %23 = arith.subf %17, %22 : vector<8x32xf32>
      %24 = arith.mulf %23, %23 : vector<8x32xf32>
      %cst_18 = arith.constant dense<0.000000e+00> : vector<8xf32>
      %25 = vector.multi_reduction <add>, %24, %cst_18 [1] : vector<8x32xf32> to vector<8xf32>
      %26 = vector.shape_cast %25 : vector<8xf32> to vector<8x1xf32>
      %cst_19 = arith.constant 3.200000e+01 : f32
      %27 = vector.broadcast %cst_19 : f32 to vector<8x1xf32>
      %28 = arith.divf %26, %27 : vector<8x1xf32>
      %cst_20 = arith.constant 9.99999974E-6 : f32
      %29 = vector.broadcast %cst_20 : f32 to vector<8x1xf32>
      %30 = arith.addf %28, %29 : vector<8x1xf32>
      %31 = math.rsqrt %30 : vector<8x1xf32>
      %32 = vector.broadcast %31 : vector<8x1xf32> to vector<8x32xf32>
      %33 = arith.mulf %23, %32 : vector<8x32xf32>
      %c0_21 = arith.constant 0 : index
      %c0_22 = arith.constant 0 : index
      %34 = vector.load %arg6[%c0_21, %c0_22] : memref<1x32xf32, #tpu.memory_space<vmem>>, vector<1x32xf32>
      %35 = vector.broadcast %34 : vector<1x32xf32> to vector<8x32xf32>
      %36 = arith.mulf %33, %35 : vector<8x32xf32>
      %c0_23 = arith.constant 0 : index
      %c0_24 = arith.constant 0 : index
      %37 = vector.load %arg7[%c0_23, %c0_24] : memref<1x32xf32, #tpu.memory_space<vmem>>, vector<1x32xf32>
      %38 = vector.broadcast %37 : vector<1x32xf32> to vector<8x32xf32>
      %39 = arith.addf %36, %38 : vector<8x32xf32>
      %c0_25 = arith.constant 0 : index
      %c0_26 = arith.constant 0 : index
      %40 = vector.load %arg8[%c0_25, %c0_26] : memref<8x32xf32, #tpu.memory_space<vmem>>, vector<8x32xf32>
      tpu.vector_store %arg8[%c0_25, %c0_26], %39 {strides = array<i32>} : memref<8x32xf32, #tpu.memory_space<vmem>>, vector<8x32xf32>,
    } else {
    }
    return
  }
  func.func @transform_0(%arg0: i32, %arg1: i32) -> (i32, i32) {
    %c0_i32 = arith.constant 0 : i32
    return %arg0, %arg1 : i32, i32
  }
  func.func @transform_1(%arg0: i32, %arg1: i32) -> (i32, i32) {
    %c0_i32 = arith.constant 0 : i32
    %c0_i32_0 = arith.constant 0 : i32
    return %arg1, %c0_i32 : i32, i32
  }
  func.func @transform_2(%arg0: i32, %arg1: i32) -> (i32, i32) {
    %c0_i32 = arith.constant 0 : i32
    %c0_i32_0 = arith.constant 0 : i32
    %c0_i32_1 = arith.constant 0 : i32
    return %c0_i32, %c0_i32_0 : i32, i32
  }
  func.func @transform_3(%arg0: i32, %arg1: i32) -> (i32, i32) {
    %c0_i32 = arith.constant 0 : i32
    %c0_i32_0 = arith.constant 0 : i32
    return %arg0, %c0_i32 : i32, i32
  }
  func.func @transform_4(%arg0: i32, %arg1: i32) -> (i32, i32) {
    %c0_i32 = arith.constant 0 : i32
    %c0_i32_0 = arith.constant 0 : i32
    %c0_i32_1 = arith.constant 0 : i32
    return %c0_i32, %c0_i32_0 : i32, i32
  }
  func.func @transform_5(%arg0: i32, %arg1: i32) -> (i32, i32) {
    %c0_i32 = arith.constant 0 : i32
    %c0_i32_0 = arith.constant 0 : i32
    %c0_i32_1 = arith.constant 0 : i32
    return %c0_i32, %c0_i32_0 : i32, i32
  }
  func.func @transform_6(%arg0: i32, %arg1: i32) -> (i32, i32) {
    %c0_i32 = arith.constant 0 : i32
    %c0_i32_0 = arith.constant 0 : i32
    return %arg0, %c0_i32 : i32, i32
  }
}

module attributes {stable_mosaic.version = 11 : i64} {
  func.func @_attn_kernel(%arg0: i32, %arg1: i32, %arg2: memref<1x8x32xf32, #tpu.memory_space<vmem>>, %arg3: memref<1x16x32xf32, #tpu.memory_space<vmem>>, %arg4: memref<1x16x32xf32, #tpu.memory_space<vmem>>, %arg5: memref<1x8x32xf32, #tpu.memory_space<vmem>>) attributes {dimension_semantics = [#tpu.dimension_semantics<parallel>, #tpu.dimension_semantics<parallel>], iteration_bounds = array<i64: 2, 1>, scalar_prefetch = 0 : i64, scratch_operands = 0 : i64, tpu.core_type = #tpu.core_type<tc>, window_params = [{transform_indices = @transform_0, window_bounds = array<i64: 1, 8, 32>}, {transform_indices = @transform_1, window_bounds = array<i64: 1, 16, 32>}, {transform_indices = @transform_2, window_bounds = array<i64: 1, 16, 32>}, {transform_indices = @transform_3, window_bounds = array<i64: 1, 8, 32>}]} {
    %c0 = arith.constant 0 : index
    %c0_0 = arith.constant 0 : index
    %c0_1 = arith.constant 0 : index
    %0 = vector.load %arg2[%c0, %c0_0, %c0_1] : memref<1x8x32xf32, #tpu.memory_space<vmem>>, vector<1x8x32xf32>
    %1 = vector.shape_cast %0 : vector<1x8x32xf32> to vector<8x32xf32>
    %c0_2 = arith.constant 0 : index
    %c0_3 = arith.constant 0 : index
    %c0_4 = arith.constant 0 : index
    %2 = vector.load %arg3[%c0_2, %c0_3, %c0_4] : memref<1x16x32xf32, #tpu.memory_space<vmem>>, vector<1x16x32xf32>
    %3 = vector.shape_cast %2 : vector<1x16x32xf32> to vector<16x32xf32>
    %c0_5 = arith.constant 0 : index
    %c0_6 = arith.constant 0 : index
    %c0_7 = arith.constant 0 : index
    %4 = vector.load %arg4[%c0_5, %c0_6, %c0_7] : memref<1x16x32xf32, #tpu.memory_space<vmem>>, vector<1x16x32xf32>
    %5 = vector.shape_cast %4 : vector<1x16x32xf32> to vector<16x32xf32>
    %6 = vector.extract_strided_slice %1 {offsets = [0, 0], sizes = [8, 8], strides = [1, 1]} : vector<8x32xf32> to vector<8x8xf32>
    %7 = vector.extract_strided_slice %3 {offsets = [0, 0], sizes = [16, 8], strides = [1, 1]} : vector<16x32xf32> to vector<16x8xf32>
    %8 = vector.extract_strided_slice %5 {offsets = [0, 0], sizes = [16, 8], strides = [1, 1]} : vector<16x32xf32> to vector<16x8xf32>
    %cst = arith.constant dense<0.000000e+00> : vector<8x16xf32>
    %9 = tpu.matmul %6, %7, %cst {dimension_numbers = #tpu.dot_dimension_numbers<[1], [1], [0], [0], [0, 0, 1, 0], [], []>} : vector<8x8xf32>, vector<16x8xf32>, vector<8x16xf32> -> vector<8x16xf32>
    %cst_8 = arith.constant 0.353553385 : f32
    %10 = vector.broadcast %cst_8 : f32 to vector<8x16xf32>
    %11 = arith.mulf %9, %10 : vector<8x16xf32>
    %cst_9 = arith.constant dense<0xFF800000> : vector<8xf32>
    %12 = vector.multi_reduction <maximumf>, %11, %cst_9 [1] : vector<8x16xf32> to vector<8xf32>
    %13 = vector.shape_cast %12 : vector<8xf32> to vector<8x1xf32>
    %14 = vector.broadcast %13 : vector<8x1xf32> to vector<8x16xf32>
    %15 = arith.subf %11, %14 : vector<8x16xf32>
    %16 = math.exp %15 : vector<8x16xf32>
    %cst_10 = arith.constant dense<0.000000e+00> : vector<8xf32>
    %17 = vector.multi_reduction <add>, %16, %cst_10 [1] : vector<8x16xf32> to vector<8xf32>
    %18 = vector.shape_cast %17 : vector<8xf32> to vector<8x1xf32>
    %cst_11 = arith.constant dense<0.000000e+00> : vector<8x8xf32>
    %19 = tpu.matmul %16, %8, %cst_11 {dimension_numbers = #tpu.dot_dimension_numbers<[1], [0], [0], [1], [0, 0, 1, 1], [], []>} : vector<8x16xf32>, vector<16x8xf32>, vector<8x8xf32> -> vector<8x8xf32>
    %cst_12 = arith.constant 1.000000e+00 : f32
    %20 = vector.broadcast %cst_12 : f32 to vector<8x1xf32>
    %21 = arith.divf %20, %18 : vector<8x1xf32>
    %22 = vector.broadcast %21 : vector<8x1xf32> to vector<8x8xf32>
    %23 = arith.mulf %19, %22 : vector<8x8xf32>
    %24 = vector.extract_strided_slice %1 {offsets = [0, 8], sizes = [8, 8], strides = [1, 1]} : vector<8x32xf32> to vector<8x8xf32>
    %25 = vector.extract_strided_slice %3 {offsets = [0, 8], sizes = [16, 8], strides = [1, 1]} : vector<16x32xf32> to vector<16x8xf32>
    %26 = vector.extract_strided_slice %5 {offsets = [0, 8], sizes = [16, 8], strides = [1, 1]} : vector<16x32xf32> to vector<16x8xf32>
    %cst_13 = arith.constant dense<0.000000e+00> : vector<8x16xf32>
    %27 = tpu.matmul %24, %25, %cst_13 {dimension_numbers = #tpu.dot_dimension_numbers<[1], [1], [0], [0], [0, 0, 1, 0], [], []>} : vector<8x8xf32>, vector<16x8xf32>, vector<8x16xf32> -> vector<8x16xf32>
    %cst_14 = arith.constant 0.353553385 : f32
    %28 = vector.broadcast %cst_14 : f32 to vector<8x16xf32>
    %29 = arith.mulf %27, %28 : vector<8x16xf32>
    %cst_15 = arith.constant dense<0xFF800000> : vector<8xf32>
    %30 = vector.multi_reduction <maximumf>, %29, %cst_15 [1] : vector<8x16xf32> to vector<8xf32>
    %31 = vector.shape_cast %30 : vector<8xf32> to vector<8x1xf32>
    %32 = vector.broadcast %31 : vector<8x1xf32> to vector<8x16xf32>
    %33 = arith.subf %29, %32 : vector<8x16xf32>
    %34 = math.exp %33 : vector<8x16xf32>
    %cst_16 = arith.constant dense<0.000000e+00> : vector<8xf32>
    %35 = vector.multi_reduction <add>, %34, %cst_16 [1] : vector<8x16xf32> to vector<8xf32>
    %36 = vector.shape_cast %35 : vector<8xf32> to vector<8x1xf32>
    %cst_17 = arith.constant dense<0.000000e+00> : vector<8x8xf32>
    %37 = tpu.matmul %34, %26, %cst_17 {dimension_numbers = #tpu.dot_dimension_numbers<[1], [0], [0], [1], [0, 0, 1, 1], [], []>} : vector<8x16xf32>, vector<16x8xf32>, vector<8x8xf32> -> vector<8x8xf32>
    %cst_18 = arith.constant 1.000000e+00 : f32
    %38 = vector.broadcast %cst_18 : f32 to vector<8x1xf32>
    %39 = arith.divf %38, %36 : vector<8x1xf32>
    %40 = vector.broadcast %39 : vector<8x1xf32> to vector<8x8xf32>
    %41 = arith.mulf %37, %40 : vector<8x8xf32>
    %42 = vector.extract_strided_slice %1 {offsets = [0, 16], sizes = [8, 8], strides = [1, 1]} : vector<8x32xf32> to vector<8x8xf32>
    %43 = vector.extract_strided_slice %3 {offsets = [0, 16], sizes = [16, 8], strides = [1, 1]} : vector<16x32xf32> to vector<16x8xf32>
    %44 = vector.extract_strided_slice %5 {offsets = [0, 16], sizes = [16, 8], strides = [1, 1]} : vector<16x32xf32> to vector<16x8xf32>
    %cst_19 = arith.constant dense<0.000000e+00> : vector<8x16xf32>
    %45 = tpu.matmul %42, %43, %cst_19 {dimension_numbers = #tpu.dot_dimension_numbers<[1], [1], [0], [0], [0, 0, 1, 0], [], []>} : vector<8x8xf32>, vector<16x8xf32>, vector<8x16xf32> -> vector<8x16xf32>
    %cst_20 = arith.constant 0.353553385 : f32
    %46 = vector.broadcast %cst_20 : f32 to vector<8x16xf32>
    %47 = arith.mulf %45, %46 : vector<8x16xf32>
    %cst_21 = arith.constant dense<0xFF800000> : vector<8xf32>
    %48 = vector.multi_reduction <maximumf>, %47, %cst_21 [1] : vector<8x16xf32> to vector<8xf32>
    %49 = vector.shape_cast %48 : vector<8xf32> to vector<8x1xf32>
    %50 = vector.broadcast %49 : vector<8x1xf32> to vector<8x16xf32>
    %51 = arith.subf %47, %50 : vector<8x16xf32>
    %52 = math.exp %51 : vector<8x16xf32>
    %cst_22 = arith.constant dense<0.000000e+00> : vector<8xf32>
    %53 = vector.multi_reduction <add>, %52, %cst_22 [1] : vector<8x16xf32> to vector<8xf32>
    %54 = vector.shape_cast %53 : vector<8xf32> to vector<8x1xf32>
    %cst_23 = arith.constant dense<0.000000e+00> : vector<8x8xf32>
    %55 = tpu.matmul %52, %44, %cst_23 {dimension_numbers = #tpu.dot_dimension_numbers<[1], [0], [0], [1], [0, 0, 1, 1], [], []>} : vector<8x16xf32>, vector<16x8xf32>, vector<8x8xf32> -> vector<8x8xf32>
    %cst_24 = arith.constant 1.000000e+00 : f32
    %56 = vector.broadcast %cst_24 : f32 to vector<8x1xf32>
    %57 = arith.divf %56, %54 : vector<8x1xf32>
    %58 = vector.broadcast %57 : vector<8x1xf32> to vector<8x8xf32>
    %59 = arith.mulf %55, %58 : vector<8x8xf32>
    %60 = vector.extract_strided_slice %1 {offsets = [0, 24], sizes = [8, 8], strides = [1, 1]} : vector<8x32xf32> to vector<8x8xf32>
    %61 = vector.extract_strided_slice %3 {offsets = [0, 24], sizes = [16, 8], strides = [1, 1]} : vector<16x32xf32> to vector<16x8xf32>
    %62 = vector.extract_strided_slice %5 {offsets = [0, 24], sizes = [16, 8], strides = [1, 1]} : vector<16x32xf32> to vector<16x8xf32>
    %cst_25 = arith.constant dense<0.000000e+00> : vector<8x16xf32>
    %63 = tpu.matmul %60, %61, %cst_25 {dimension_numbers = #tpu.dot_dimension_numbers<[1], [1], [0], [0], [0, 0, 1, 0], [], []>} : vector<8x8xf32>, vector<16x8xf32>, vector<8x16xf32> -> vector<8x16xf32>
    %cst_26 = arith.constant 0.353553385 : f32
    %64 = vector.broadcast %cst_26 : f32 to vector<8x16xf32>
    %65 = arith.mulf %63, %64 : vector<8x16xf32>
    %cst_27 = arith.constant dense<0xFF800000> : vector<8xf32>
    %66 = vector.multi_reduction <maximumf>, %65, %cst_27 [1] : vector<8x16xf32> to vector<8xf32>
    %67 = vector.shape_cast %66 : vector<8xf32> to vector<8x1xf32>
    %68 = vector.broadcast %67 : vector<8x1xf32> to vector<8x16xf32>
    %69 = arith.subf %65, %68 : vector<8x16xf32>
    %70 = math.exp %69 : vector<8x16xf32>
    %cst_28 = arith.constant dense<0.000000e+00> : vector<8xf32>
    %71 = vector.multi_reduction <add>, %70, %cst_28 [1] : vector<8x16xf32> to vector<8xf32>
    %72 = vector.shape_cast %71 : vector<8xf32> to vector<8x1xf32>
    %cst_29 = arith.constant dense<0.000000e+00> : vector<8x8xf32>
    %73 = tpu.matmul %70, %62, %cst_29 {dimension_numbers = #tpu.dot_dimension_numbers<[1], [0], [0], [1], [0, 0, 1, 1], [], []>} : vector<8x16xf32>, vector<16x8xf32>, vector<8x8xf32> -> vector<8x8xf32>
    %cst_30 = arith.constant 1.000000e+00 : f32
    %74 = vector.broadcast %cst_30 : f32 to vector<8x1xf32>
    %75 = arith.divf %74, %72 : vector<8x1xf32>
    %76 = vector.broadcast %75 : vector<8x1xf32> to vector<8x8xf32>
    %77 = arith.mulf %73, %76 : vector<8x8xf32>
    %78 = tpu.concatenate %23, %41, %59, %77 in 1 : vector<8x8xf32>, vector<8x8xf32>, vector<8x8xf32>, vector<8x8xf32> -> vector<8x32xf32>
    %c0_31 = arith.constant 0 : index
    %c0_32 = arith.constant 0 : index
    %c0_33 = arith.constant 0 : index
    %79 = vector.load %arg5[%c0_31, %c0_32, %c0_33] : memref<1x8x32xf32, #tpu.memory_space<vmem>>, vector<1x8x32xf32>
    %80 = vector.shape_cast %79 : vector<1x8x32xf32> to vector<8x32xf32>
    %81 = vector.shape_cast %78 : vector<8x32xf32> to vector<1x8x32xf32>
    tpu.vector_store %arg5[%c0_31, %c0_32, %c0_33], %81 {strides = array<i32>} : memref<1x8x32xf32, #tpu.memory_space<vmem>>, vector<1x8x32xf32>,
    return
  }
  func.func @transform_0(%arg0: i32, %arg1: i32) -> (i32, i32, i32) {
    %c0_i32 = arith.constant 0 : i32
    %0 = arith.addi %c0_i32, %arg1 : i32
    %c0_i32_0 = arith.constant 0 : i32
    %c0_i32_1 = arith.constant 0 : i32
    return %arg0, %c0_i32_0, %0 : i32, i32, i32
  }
  func.func @transform_1(%arg0: i32, %arg1: i32) -> (i32, i32, i32) {
    %c0_i32 = arith.constant 0 : i32
    %0 = arith.addi %c0_i32, %arg1 : i32
    %c0_i32_0 = arith.constant 0 : i32
    %c0_i32_1 = arith.constant 0 : i32
    return %arg0, %c0_i32_0, %0 : i32, i32, i32
  }
  func.func @transform_2(%arg0: i32, %arg1: i32) -> (i32, i32, i32) {
    %c0_i32 = arith.constant 0 : i32
    %0 = arith.addi %c0_i32, %arg1 : i32
    %c0_i32_0 = arith.constant 0 : i32
    %c0_i32_1 = arith.constant 0 : i32
    return %arg0, %c0_i32_0, %0 : i32, i32, i32
  }
  func.func @transform_3(%arg0: i32, %arg1: i32) -> (i32, i32, i32) {
    %c0_i32 = arith.constant 0 : i32
    %c0_i32_0 = arith.constant 0 : i32
    return %arg0, %c0_i32, %arg1 : i32, i32, i32
  }
}

module attributes {stable_mosaic.version = 11 : i64} {
  func.func @_ffn_addln_kernel(%arg0: i32, %arg1: i32, %arg2: memref<8x32xf32, #tpu.memory_space<vmem>>, %arg3: memref<32x64xf32, #tpu.memory_space<vmem>>, %arg4: memref<1x64xf32, #tpu.memory_space<vmem>>, %arg5: memref<64x32xf32, #tpu.memory_space<vmem>>, %arg6: memref<1x32xf32, #tpu.memory_space<vmem>>, %arg7: memref<1x32xf32, #tpu.memory_space<vmem>>, %arg8: memref<1x32xf32, #tpu.memory_space<vmem>>, %arg9: memref<8x32xf32, #tpu.memory_space<vmem>>, %arg10: memref<8x32xf32, #tpu.memory_space<vmem>>) attributes {dimension_semantics = [#tpu.dimension_semantics<parallel>, #tpu.dimension_semantics<arbitrary>], iteration_bounds = array<i64: 2, 1>, scalar_prefetch = 0 : i64, scratch_operands = 1 : i64, tpu.core_type = #tpu.core_type<tc>, window_params = [{transform_indices = @transform_0, window_bounds = array<i64: 8, 32>}, {transform_indices = @transform_1, window_bounds = array<i64: 32, 64>}, {transform_indices = @transform_2, window_bounds = array<i64: 1, 64>}, {transform_indices = @transform_3, window_bounds = array<i64: 64, 32>}, {pipeline_mode = #tpu.pipeline_mode<synchronous>, transform_indices = @transform_4, window_bounds = array<i64: 1, 32>}, {pipeline_mode = #tpu.pipeline_mode<synchronous>, transform_indices = @transform_5, window_bounds = array<i64: 1, 32>}, {pipeline_mode = #tpu.pipeline_mode<synchronous>, transform_indices = @transform_6, window_bounds = array<i64: 1, 32>}, {transform_indices = @transform_7, window_bounds = array<i64: 8, 32>}]} {
    %c0_i32 = arith.constant 0 : i32
    %0 = arith.cmpi eq, %arg1, %c0_i32 : i32
    %1 = arith.extui %0 : i1 to i32
    %c0_i32_0 = arith.constant 0 : i32
    %2 = arith.cmpi ne, %1, %c0_i32_0 : i32
    scf.if %2 {
      %cst_16 = arith.constant 0.000000e+00 : f32
      %19 = vector.broadcast %cst_16 : f32 to vector<8x32xf32>
      %c0_17 = arith.constant 0 : index
      %c0_18 = arith.constant 0 : index
      %20 = vector.load %arg10[%c0_17, %c0_18] : memref<8x32xf32, #tpu.memory_space<vmem>>, vector<8x32xf32>
      tpu.vector_store %arg10[%c0_17, %c0_18], %19 {strides = array<i32>} : memref<8x32xf32, #tpu.memory_space<vmem>>, vector<8x32xf32>,
    } else {
    }
    %c0 = arith.constant 0 : index
    %c0_1 = arith.constant 0 : index
    %3 = vector.load %arg2[%c0, %c0_1] : memref<8x32xf32, #tpu.memory_space<vmem>>, vector<8x32xf32>
    %c0_2 = arith.constant 0 : index
    %c0_3 = arith.constant 0 : index
    %4 = vector.load %arg3[%c0_2, %c0_3] : memref<32x64xf32, #tpu.memory_space<vmem>>, vector<32x64xf32>
    %cst = arith.constant dense<0.000000e+00> : vector<8x64xf32>
    %5 = tpu.matmul %3, %4, %cst {dimension_numbers = #tpu.dot_dimension_numbers<[1], [0], [0], [1], [0, 0, 1, 1], [], []>} : vector<8x32xf32>, vector<32x64xf32>, vector<8x64xf32> -> vector<8x64xf32>
    %c0_4 = arith.constant 0 : index
    %c0_5 = arith.constant 0 : index
    %6 = vector.load %arg4[%c0_4, %c0_5] : memref<1x64xf32, #tpu.memory_space<vmem>>, vector<1x64xf32>
    %7 = vector.broadcast %6 : vector<1x64xf32> to vector<8x64xf32>
    %8 = arith.addf %5, %7 : vector<8x64xf32>
    %cst_6 = arith.constant 0.000000e+00 : f32
    %9 = vector.broadcast %cst_6 : f32 to vector<8x64xf32>
    %10 = arith.maximumf %8, %9 : vector<8x64xf32>
    %c0_7 = arith.constant 0 : index
    %c0_8 = arith.constant 0 : index
    %11 = vector.load %arg10[%c0_7, %c0_8] : memref<8x32xf32, #tpu.memory_space<vmem>>, vector<8x32xf32>
    %c0_9 = arith.constant 0 : index
    %c0_10 = arith.constant 0 : index
    %12 = vector.load %arg5[%c0_9, %c0_10] : memref<64x32xf32, #tpu.memory_space<vmem>>, vector<64x32xf32>
    %cst_11 = arith.constant dense<0.000000e+00> : vector<8x32xf32>
    %13 = tpu.matmul %10, %12, %cst_11 {dimension_numbers = #tpu.dot_dimension_numbers<[1], [0], [0], [1], [0, 0, 1, 1], [], []>} : vector<8x64xf32>, vector<64x32xf32>, vector<8x32xf32> -> vector<8x32xf32>
    %14 = arith.addf %11, %13 : vector<8x32xf32>
    %c0_12 = arith.constant 0 : index
    %c0_13 = arith.constant 0 : index
    %15 = vector.load %arg10[%c0_12, %c0_13] : memref<8x32xf32, #tpu.memory_space<vmem>>, vector<8x32xf32>
    tpu.vector_store %arg10[%c0_12, %c0_13], %14 {strides = array<i32>} : memref<8x32xf32, #tpu.memory_space<vmem>>, vector<8x32xf32>,
    %c0_i32_14 = arith.constant 0 : i32
    %16 = arith.cmpi eq, %arg1, %c0_i32_14 : i32
    %17 = arith.extui %16 : i1 to i32
    %c0_i32_15 = arith.constant 0 : i32
    %18 = arith.cmpi ne, %17, %c0_i32_15 : i32
    scf.if %18 {
      %c0_16 = arith.constant 0 : index
      %c0_17 = arith.constant 0 : index
      %19 = vector.load %arg10[%c0_16, %c0_17] : memref<8x32xf32, #tpu.memory_space<vmem>>, vector<8x32xf32>
      %c0_18 = arith.constant 0 : index
      %c0_19 = arith.constant 0 : index
      %20 = vector.load %arg6[%c0_18, %c0_19] : memref<1x32xf32, #tpu.memory_space<vmem>>, vector<1x32xf32>
      %21 = vector.broadcast %20 : vector<1x32xf32> to vector<8x32xf32>
      %22 = arith.addf %19, %21 : vector<8x32xf32>
      %c0_20 = arith.constant 0 : index
      %c0_21 = arith.constant 0 : index
      %23 = vector.load %arg2[%c0_20, %c0_21] : memref<8x32xf32, #tpu.memory_space<vmem>>, vector<8x32xf32>
      %24 = arith.addf %22, %23 : vector<8x32xf32>
      %cst_22 = arith.constant dense<0.000000e+00> : vector<8xf32>
      %25 = vector.multi_reduction <add>, %24, %cst_22 [1] : vector<8x32xf32> to vector<8xf32>
      %26 = vector.shape_cast %25 : vector<8xf32> to vector<8x1xf32>
      %cst_23 = arith.constant 3.200000e+01 : f32
      %27 = vector.broadcast %cst_23 : f32 to vector<8x1xf32>
      %28 = arith.divf %26, %27 : vector<8x1xf32>
      %29 = vector.broadcast %28 : vector<8x1xf32> to vector<8x32xf32>
      %30 = arith.subf %24, %29 : vector<8x32xf32>
      %31 = arith.mulf %30, %30 : vector<8x32xf32>
      %cst_24 = arith.constant dense<0.000000e+00> : vector<8xf32>
      %32 = vector.multi_reduction <add>, %31, %cst_24 [1] : vector<8x32xf32> to vector<8xf32>
      %33 = vector.shape_cast %32 : vector<8xf32> to vector<8x1xf32>
      %cst_25 = arith.constant 3.200000e+01 : f32
      %34 = vector.broadcast %cst_25 : f32 to vector<8x1xf32>
      %35 = arith.divf %33, %34 : vector<8x1xf32>
      %cst_26 = arith.constant 9.99999974E-6 : f32
      %36 = vector.broadcast %cst_26 : f32 to vector<8x1xf32>
      %37 = arith.addf %35, %36 : vector<8x1xf32>
      %38 = math.rsqrt %37 : vector<8x1xf32>
      %39 = vector.broadcast %38 : vector<8x1xf32> to vector<8x32xf32>
      %40 = arith.mulf %30, %39 : vector<8x32xf32>
      %c0_27 = arith.constant 0 : index
      %c0_28 = arith.constant 0 : index
      %41 = vector.load %arg7[%c0_27, %c0_28] : memref<1x32xf32, #tpu.memory_space<vmem>>, vector<1x32xf32>
      %42 = vector.broadcast %41 : vector<1x32xf32> to vector<8x32xf32>
      %43 = arith.mulf %40, %42 : vector<8x32xf32>
      %c0_29 = arith.constant 0 : index
      %c0_30 = arith.constant 0 : index
      %44 = vector.load %arg8[%c0_29, %c0_30] : memref<1x32xf32, #tpu.memory_space<vmem>>, vector<1x32xf32>
      %45 = vector.broadcast %44 : vector<1x32xf32> to vector<8x32xf32>
      %46 = arith.addf %43, %45 : vector<8x32xf32>
      %c0_31 = arith.constant 0 : index
      %c0_32 = arith.constant 0 : index
      %47 = vector.load %arg9[%c0_31, %c0_32] : memref<8x32xf32, #tpu.memory_space<vmem>>, vector<8x32xf32>
      tpu.vector_store %arg9[%c0_31, %c0_32], %46 {strides = array<i32>} : memref<8x32xf32, #tpu.memory_space<vmem>>, vector<8x32xf32>,
    } else {
    }
    return
  }
  func.func @transform_0(%arg0: i32, %arg1: i32) -> (i32, i32) {
    %c0_i32 = arith.constant 0 : i32
    %c0_i32_0 = arith.constant 0 : i32
    return %arg0, %c0_i32 : i32, i32
  }
  func.func @transform_1(%arg0: i32, %arg1: i32) -> (i32, i32) {
    %c0_i32 = arith.constant 0 : i32
    %c0_i32_0 = arith.constant 0 : i32
    return %c0_i32, %arg1 : i32, i32
  }
  func.func @transform_2(%arg0: i32, %arg1: i32) -> (i32, i32) {
    %c0_i32 = arith.constant 0 : i32
    %c0_i32_0 = arith.constant 0 : i32
    return %c0_i32, %arg1 : i32, i32
  }
  func.func @transform_3(%arg0: i32, %arg1: i32) -> (i32, i32) {
    %c0_i32 = arith.constant 0 : i32
    %c0_i32_0 = arith.constant 0 : i32
    return %arg1, %c0_i32 : i32, i32
  }
  func.func @transform_4(%arg0: i32, %arg1: i32) -> (i32, i32) {
    %c0_i32 = arith.constant 0 : i32
    %c0_i32_0 = arith.constant 0 : i32
    %c0_i32_1 = arith.constant 0 : i32
    return %c0_i32, %c0_i32_0 : i32, i32
  }
  func.func @transform_5(%arg0: i32, %arg1: i32) -> (i32, i32) {
    %c0_i32 = arith.constant 0 : i32
    %c0_i32_0 = arith.constant 0 : i32
    %c0_i32_1 = arith.constant 0 : i32
    return %c0_i32, %c0_i32_0 : i32, i32
  }
  func.func @transform_6(%arg0: i32, %arg1: i32) -> (i32, i32) {
    %c0_i32 = arith.constant 0 : i32
    %c0_i32_0 = arith.constant 0 : i32
    %c0_i32_1 = arith.constant 0 : i32
    return %c0_i32, %c0_i32_0 : i32, i32
  }
  func.func @transform_7(%arg0: i32, %arg1: i32) -> (i32, i32) {
    %c0_i32 = arith.constant 0 : i32
    %c0_i32_0 = arith.constant 0 : i32
    return %arg0, %c0_i32 : i32, i32
  }
}

module attributes {stable_mosaic.version = 11 : i64} {
  func.func @_linear_kernel(%arg0: i32, %arg1: i32, %arg2: memref<8x32xf32, #tpu.memory_space<vmem>>, %arg3: memref<32x32xf32, #tpu.memory_space<vmem>>, %arg4: memref<1x32xf32, #tpu.memory_space<vmem>>, %arg5: memref<8x32xf32, #tpu.memory_space<vmem>>, %arg6: memref<8x32xf32, #tpu.memory_space<vmem>>) attributes {dimension_semantics = [#tpu.dimension_semantics<parallel>, #tpu.dimension_semantics<arbitrary>], iteration_bounds = array<i64: 2, 1>, scalar_prefetch = 0 : i64, scratch_operands = 1 : i64, tpu.core_type = #tpu.core_type<tc>, window_params = [{transform_indices = @transform_0, window_bounds = array<i64: 8, 32>}, {transform_indices = @transform_1, window_bounds = array<i64: 32, 32>}, {pipeline_mode = #tpu.pipeline_mode<synchronous>, transform_indices = @transform_2, window_bounds = array<i64: 1, 32>}, {transform_indices = @transform_3, window_bounds = array<i64: 8, 32>}]} {
    %c0_i32 = arith.constant 0 : i32
    %0 = arith.cmpi eq, %arg1, %c0_i32 : i32
    %1 = arith.extui %0 : i1 to i32
    %c0_i32_0 = arith.constant 0 : i32
    %2 = arith.cmpi ne, %1, %c0_i32_0 : i32
    scf.if %2 {
      %cst_10 = arith.constant 0.000000e+00 : f32
      %12 = vector.broadcast %cst_10 : f32 to vector<8x32xf32>
      %c0_11 = arith.constant 0 : index
      %c0_12 = arith.constant 0 : index
      %13 = vector.load %arg6[%c0_11, %c0_12] : memref<8x32xf32, #tpu.memory_space<vmem>>, vector<8x32xf32>
      tpu.vector_store %arg6[%c0_11, %c0_12], %12 {strides = array<i32>} : memref<8x32xf32, #tpu.memory_space<vmem>>, vector<8x32xf32>,
    } else {
    }
    %c0 = arith.constant 0 : index
    %c0_1 = arith.constant 0 : index
    %3 = vector.load %arg6[%c0, %c0_1] : memref<8x32xf32, #tpu.memory_space<vmem>>, vector<8x32xf32>
    %c0_2 = arith.constant 0 : index
    %c0_3 = arith.constant 0 : index
    %4 = vector.load %arg2[%c0_2, %c0_3] : memref<8x32xf32, #tpu.memory_space<vmem>>, vector<8x32xf32>
    %c0_4 = arith.constant 0 : index
    %c0_5 = arith.constant 0 : index
    %5 = vector.load %arg3[%c0_4, %c0_5] : memref<32x32xf32, #tpu.memory_space<vmem>>, vector<32x32xf32>
    %cst = arith.constant dense<0.000000e+00> : vector<8x32xf32>
    %6 = tpu.matmul %4, %5, %cst {dimension_numbers = #tpu.dot_dimension_numbers<[1], [0], [0], [1], [0, 0, 1, 1], [], []>} : vector<8x32xf32>, vector<32x32xf32>, vector<8x32xf32> -> vector<8x32xf32>
    %7 = arith.addf %3, %6 : vector<8x32xf32>
    %c0_6 = arith.constant 0 : index
    %c0_7 = arith.constant 0 : index
    %8 = vector.load %arg6[%c0_6, %c0_7] : memref<8x32xf32, #tpu.memory_space<vmem>>, vector<8x32xf32>
    tpu.vector_store %arg6[%c0_6, %c0_7], %7 {strides = array<i32>} : memref<8x32xf32, #tpu.memory_space<vmem>>, vector<8x32xf32>,
    %c0_i32_8 = arith.constant 0 : i32
    %9 = arith.cmpi eq, %arg1, %c0_i32_8 : i32
    %10 = arith.extui %9 : i1 to i32
    %c0_i32_9 = arith.constant 0 : i32
    %11 = arith.cmpi ne, %10, %c0_i32_9 : i32
    scf.if %11 {
      %c0_10 = arith.constant 0 : index
      %c0_11 = arith.constant 0 : index
      %12 = vector.load %arg6[%c0_10, %c0_11] : memref<8x32xf32, #tpu.memory_space<vmem>>, vector<8x32xf32>
      %c0_12 = arith.constant 0 : index
      %c0_13 = arith.constant 0 : index
      %13 = vector.load %arg4[%c0_12, %c0_13] : memref<1x32xf32, #tpu.memory_space<vmem>>, vector<1x32xf32>
      %14 = vector.broadcast %13 : vector<1x32xf32> to vector<8x32xf32>
      %15 = arith.addf %12, %14 : vector<8x32xf32>
      %c0_14 = arith.constant 0 : index
      %c0_15 = arith.constant 0 : index
      %16 = vector.load %arg5[%c0_14, %c0_15] : memref<8x32xf32, #tpu.memory_space<vmem>>, vector<8x32xf32>
      tpu.vector_store %arg5[%c0_14, %c0_15], %15 {strides = array<i32>} : memref<8x32xf32, #tpu.memory_space<vmem>>, vector<8x32xf32>,
    } else {
    }
    return
  }
  func.func @transform_0(%arg0: i32, %arg1: i32) -> (i32, i32) {
    %c0_i32 = arith.constant 0 : i32
    return %arg0, %arg1 : i32, i32
  }
  func.func @transform_1(%arg0: i32, %arg1: i32) -> (i32, i32) {
    %c0_i32 = arith.constant 0 : i32
    %c0_i32_0 = arith.constant 0 : i32
    return %arg1, %c0_i32 : i32, i32
  }
  func.func @transform_2(%arg0: i32, %arg1: i32) -> (i32, i32) {
    %c0_i32 = arith.constant 0 : i32
    %c0_i32_0 = arith.constant 0 : i32
    %c0_i32_1 = arith.constant 0 : i32
    return %c0_i32, %c0_i32_0 : i32, i32
  }
  func.func @transform_3(%arg0: i32, %arg1: i32) -> (i32, i32) {
    %c0_i32 = arith.constant 0 : i32
    %c0_i32_0 = arith.constant 0 : i32
    return %arg0, %c0_i32 : i32, i32
  }
}

</mosaic_0001>

<llo_original>
// kernel: _lambda_.12
$region0: #{_lambda_.12}
  #allocation0 [shape = 'u32[]', space=smem, size = 0x4, offset = 0x4, fixed_abs, tag = 'smem constant byte address 0x4 - core index']
  #allocation1 [shape = 'u32[72,128]{1,0:T(1,128)}', space=vmem, size = 0x9000, scoped, tag = 'internal scratch']
  #allocation2 [shape = 'f32[16,64]{1,0:T(8,128)}', space=vmem, size = 0x2000, scoped, tag = 'scratch operand']
  %s0 = inlined_call_operand.vmem [shape: f32[32,32], index: 0, kind: input, shape index: {}]
  %s1 = inlined_call_operand.hbm [shape: f32[32,64], index: 1, kind: input, shape index: {}]
  %s2 = inlined_call_operand.vmem [shape: f32[1,64], index: 2, kind: input, shape index: {}]
  %s3 = inlined_call_operand.vmem [shape: f32[32,64], index: 3, kind: output, shape index: {}]
  %s4 = sld [smem:[#allocation0]]
  $region57: #{_lambda_.12} parent=0
    _
  %s6 = ssub.s32 1, %s4
  %s7 = scalar_select 0, %s6, %s4
  $region1: #{_lambda_.12} parent=0
    #allocation3 [shape = 'u8[16384]{0}', space=vmem, size = 0x4000, scoped, tag = 'input window, operand 1, single buffered']
    #allocation4 [shape = 's32[2]{0}', space=sflag, size = 0x8, scoped, tag = 'scoped memory for _lambda_.12']
    %8 = vsyncpa [#allocation4], 0
    loop: start=0, step=1, limit=4
    $region2: #{_lambda_.12} parent=1 // loop_pre_header
      _
    $region3: #{_lambda_.12} parent=1 // loop_header
      %s10 = sphi 0, %s14
      %p11 = scmp.ge.s32.totalorder %s10, 4
      %s17 = sphi 0, %s29
      %s18 = sphi 0, %s25
      %s19 = sphi 0, %s17
      %s20 = sphi 0, %s18
      %s21 = sphi 0, %s19
      %s22 = sphi 0, %s20
      %s34 = sphi 0, %s36
      %s37 = sphi 0, %s34
      %s38 = sphi 0, %s37
      %s54 = sphi 0, %s38
      %s60 = sphi 0, %s62
      %s63 = sphi 0, %s60
      %s64 = sphi 0, %s63
      %s80 = sphi 0, %s64
      %s84 = sphi 0, %s84
      %s86 = sphi 0, %s84
      %s87 = sphi 0, %s86
      %s101 = sphi 0, %s87
      %s107 = sphi 0, %s109
      %s110 = sphi 0, %s107
      %s111 = sphi 0, %s110
      %s127 = sphi 0, %s111
    $region4: #{_lambda_.12} parent=1 // loop_header_branch
      %13 = sbr.rel (%p11) target = $region8
    $region5: #{_lambda_.12} parent=1 // loop_body
      %s15 = ssub.s32 %s10, 1
      %s16 = ssub.s32 %s10, 2
      %s23 = sadd.s32 1, %s18
      %p24 = scmp.ge.s32.totalorder %s23, 1
      %s25 = scalar_select %p24, 0, %s23
      %s26 = sadd.s32 1, %s17
      %s27 = scalar_select %p24, %s26, %s17
      %p28 = scmp.ge.s32.totalorder %s27, 2
      %s29 = scalar_select %p28, 0, %s27
      %s30 = ssub.s32 %s17, %s29
      %s31 = ssub.s32 %s18, %s25
      %s32 = sor.u32 %s30, %s31
      %p33 = scmp.eq.s32.totalorder %s32, 0
      %s35 = sadd.s32 %s34, 1
      %s36 = scalar_select %p33, %s34, %s35
      %p39 = pneg %p33
      %p40 = scmp.eq.s32.totalorder %s10, 1
      %p41 = por %p39, %p40
      %p42 = scmp.ne.s32.totalorder %s34, %s37
      %p43 = scmp.eq.s32.totalorder %s10, 0
      %p44 = por %p42, %p43
      %p45 = scmp.ne.s32.totalorder %s34, %s37
      %p46 = scmp.eq.s32.totalorder %s15, 1
      %p47 = por %p45, %p46
      %p48 = scmp.ne.s32.totalorder %s37, %s38
      %p49 = scmp.eq.s32.totalorder %s15, 0
      %p50 = por %p48, %p49
      %p51 = scmp.ne.s32.totalorder %s37, %s38
      %p52 = scmp.eq.s32.totalorder %s16, 1
      %p53 = por %p51, %p52
      %p55 = scmp.ne.s32.totalorder %s38, %s54
      %p56 = scmp.eq.s32.totalorder %s16, 0
      %p57 = por %p55, %p56
      %s58 = ssub.s32 %s18, %s25
      %p59 = scmp.eq.s32.totalorder %s58, 0
      %s61 = sadd.s32 %s60, 1
      %s62 = scalar_select %p59, %s60, %s61
      %p65 = pneg %p59
      %p66 = scmp.eq.s32.totalorder %s10, 1
      %p67 = por %p65, %p66
      %p68 = scmp.ne.s32.totalorder %s60, %s63
      %p69 = scmp.eq.s32.totalorder %s10, 0
      %p70 = por %p68, %p69
      %p71 = scmp.ne.s32.totalorder %s60, %s63
      %p72 = scmp.eq.s32.totalorder %s15, 1
      %p73 = por %p71, %p72
      %p74 = scmp.ne.s32.totalorder %s63, %s64
      %p75 = scmp.eq.s32.totalorder %s15, 0
      %p76 = por %p74, %p75
      %p77 = scmp.ne.s32.totalorder %s63, %s64
      %p78 = scmp.eq.s32.totalorder %s16, 1
      %p79 = por %p77, %p78
      %p81 = scmp.ne.s32.totalorder %s64, %s80
      %p82 = scmp.eq.s32.totalorder %s16, 0
      %p83 = por %p81, %p82
      %s85 = sadd.s32 %s84, 1
      %p88 = scmp.eq.s32.totalorder %s10, 1
      %p89 = scmp.ne.s32.totalorder %s84, %s86
      %p90 = scmp.eq.s32.totalorder %s10, 0
      %p91 = por %p89, %p90
      %p92 = scmp.ne.s32.totalorder %s84, %s86
      %p93 = scmp.eq.s32.totalorder %s15, 1
      %p94 = por %p92, %p93
      %p95 = scmp.ne.s32.totalorder %s86, %s87
      %p96 = scmp.eq.s32.totalorder %s15, 0
      %p97 = por %p95, %p96
      %p98 = scmp.ne.s32.totalorder %s86, %s87
      %p99 = scmp.eq.s32.totalorder %s16, 1
      %p100 = por %p98, %p99
      %p102 = scmp.ne.s32.totalorder %s87, %s101
      %p103 = scmp.eq.s32.totalorder %s16, 0
      %p104 = por %p102, %p103
      %s105 = ssub.s32 %s17, %s29
      %p106 = scmp.eq.s32.totalorder %s105, 0
      %s108 = sadd.s32 %s107, 1
      %s109 = scalar_select %p106, %s107, %s108
      %p112 = pneg %p106
      %p113 = scmp.eq.s32.totalorder %s10, 1
      %p114 = por %p112, %p113
      %p115 = scmp.ne.s32.totalorder %s107, %s110
      %p116 = scmp.eq.s32.totalorder %s10, 0
      %p117 = por %p115, %p116
      %p118 = scmp.ne.s32.totalorder %s107, %s110
      %p119 = scmp.eq.s32.totalorder %s15, 1
      %p120 = por %p118, %p119
      %p121 = scmp.ne.s32.totalorder %s110, %s111
      %p122 = scmp.eq.s32.totalorder %s15, 0
      %p123 = por %p121, %p122
      %p124 = scmp.ne.s32.totalorder %s110, %s111
      %p125 = scmp.eq.s32.totalorder %s16, 1
      %p126 = por %p124, %p125
      %p128 = scmp.ne.s32.totalorder %s111, %s127
      %p129 = scmp.eq.s32.totalorder %s16, 0
      %p130 = por %p128, %p129
      %p131 = scmp.le.s32.totalorder 1, %s10
      %p132 = scmp.lt.s32.totalorder %s10, 3
      %p133 = pnand %p131, %p132
      %p134 = pneg %p133
      // Predicated region
      $region9: #{_lambda_.12} parent=5 // pred_check
        _
      $region10: #{_lambda_.12} parent=5 // pred_check_branch
        %136 = sbr.rel (%p133) target = $region12
      $region11: #{_lambda_.12} parent=5 // pred_region
        %s137 = ssub.s32 %s10, 1
        // Predicated region
        $region13: #{_lambda_.12} parent=11 // pred_check
          %p138 = pneg %p76
        $region14: #{_lambda_.12} parent=11 // pred_check_branch
          %140 = sbr.rel (%p138) target = $region16
        $region15: #{_lambda_.12} parent=11 // pred_region
          %s141 = smul.u32 4, %s20
          %143 = vsyncadd [#allocation4], 0
          %s144 = smul.addr %s141, 8
          %s145 = scalar_lea.hbm %s1, %s144
          %s146 = sshll.u32 %s145, 4
          %s147 = int_to_ptr.hbm [resolvable:$true] %s146
          %s148 = sshll.u32 [#allocation3], 4
          %s149 = int_to_ptr.vmem [resolvable:$true] %s148
          %154 = dma.hbm_to_vmem [thread:$0]  %s147, 512, %s149, [#allocation4], 128, 128, 8
        $region16: #{_lambda_.12} parent=11 // pred_fallthru
          _
        // Predicated region
        $region17: #{_lambda_.12} parent=11 // pred_check
          %p155 = pneg %p97
        $region18: #{_lambda_.12} parent=11 // pred_check_branch
          %157 = sbr.rel (%p155) target = $region20
        $region19: #{_lambda_.12} parent=11 // pred_region
          _
        $region20: #{_lambda_.12} parent=11 // pred_fallthru
          _
      $region12: #{_lambda_.12} parent=5 // pred_fallthru
        _
      %p158 = scmp.lt.s32.totalorder %s10, 2
      // Predicated region
      $region21: #{_lambda_.12} parent=5 // pred_check
        %p159 = pneg %p158
      $region22: #{_lambda_.12} parent=5 // pred_check_branch
        %161 = sbr.rel (%p159) target = $region24
      $region23: #{_lambda_.12} parent=5 // pred_region
        // Predicated region
        $region25: #{_lambda_.12} parent=23 // pred_check
          %p162 = pneg %p44
        $region26: #{_lambda_.12} parent=23 // pred_check_branch
          %164 = sbr.rel (%p162) target = $region28
        $region27: #{_lambda_.12} parent=23 // pred_region
          %s165 = smul.u32 2, %s17
          %p166 = scmp.lt.s32.totalorder %s165, 3
          %s167 = scalar_select %p166, %s165, 3
          %p168 = scmp.lt.s32.totalorder %s18, 0
          %s169 = scalar_select %p168, %s18, 0
          %s170 = sadd.s32 %s169, %s167
          %s171 = smul.addr %s170, 8
          %s172 = scalar_lea.vmem %s0, %s171
          %s173 = smul.u32 2, %s17
        $region28: #{_lambda_.12} parent=23 // pred_fallthru
          _
      $region24: #{_lambda_.12} parent=5 // pred_fallthru
        _
      %p174 = scmp.le.s32.totalorder 1, %s10
      %p175 = scmp.lt.s32.totalorder %s10, 3
      %p176 = pnand %p174, %p175
      %p177 = pneg %p176
      // Predicated region
      $region29: #{_lambda_.12} parent=5 // pred_check
        _
      $region30: #{_lambda_.12} parent=5 // pred_check_branch
        %179 = sbr.rel (%p176) target = $region32
      $region31: #{_lambda_.12} parent=5 // pred_region
        %s180 = ssub.s32 %s10, 1
        // Predicated region
        $region33: #{_lambda_.12} parent=31 // pred_check
          %p181 = pneg %p76
        $region34: #{_lambda_.12} parent=31 // pred_check_branch
          %183 = sbr.rel (%p181) target = $region36
        $region35: #{_lambda_.12} parent=31 // pred_region
          %185 = dma.done [#allocation4], 512
        $region36: #{_lambda_.12} parent=31 // pred_fallthru
          _
        %s186 = smul.u32 2, %s19
        %p187 = scmp.lt.s32.totalorder %s186, 3
        %s188 = scalar_select %p187, %s186, 3
        %p189 = scmp.lt.s32.totalorder %s20, 0
        %s190 = scalar_select %p189, %s20, 0
        %s191 = sadd.s32 %s190, %s188
        %s192 = smul.addr %s191, 8
        %s193 = scalar_lea.vmem %s0, %s192
        %p194 = pneg %p50
        %p195 = pneg %p47
        %p196 = pneg %p76
        %p197 = pneg %p73
        %p198 = pneg %p97
        %p199 = pneg %p94
        %p200 = pneg %p123
        %p201 = pneg %p120
        %s202 = smul.u32 2, %s19
        %p203 = scmp.lt.s32.totalorder %s202, 3
        %s204 = scalar_select %p203, %s202, 3
        %s205 = smul.addr %s204, 8
        %s206 = scalar_lea.vmem %s3, %s205
        %s207 = smul.u32 2, %s19
        %p208 = scmp.lt.s32.totalorder %s207, 3
        %s209 = scalar_select %p208, %s207, 3
        %p210 = scmp.lt.s32.totalorder %s20, 0
        %s211 = scalar_select %p210, %s20, 0
        %s212 = sadd.s32 %s211, %s209
        %s213 = smul.addr %s212, 8
        %s214 = scalar_lea.vmem %s0, %s213
        %s215 = smul.u32 2, %s19
        %s216 = smul.u32 4, %s20
        %s217 = smul.u32 2, %s19
        %p218 = scmp.lt.s32.totalorder %s217, 3
        %s219 = scalar_select %p218, %s217, 3
        %s220 = smul.addr %s219, 8
        %s221 = scalar_lea.vmem %s3, %s220
        %s222 = smul.u32 2, %s19
        %p223 = scmp.eq.s32.totalorder %s20, 0
        // Predicated region
        $region37: #{_lambda_.12} parent=31 // pred_check
          %p224 = pneg %p223
        $region38: #{_lambda_.12} parent=31 // pred_check_branch
          %226 = sbr.rel (%p224) target = $region40
        $region39: #{_lambda_.12} parent=31 // pred_region
          %vm227 = vcmask 523264
          %228 = vst.msk [vmem:[#allocation2] sm:$0xff] %vm227, 0.0
          %229 = vst.msk [vmem:[#allocation2 + $0x8] sm:$0xff] %vm227, 0.0
        $region40: #{_lambda_.12} parent=31 // pred_fallthru
          _
        %v230 = vld [vmem:[#allocation2] sm:$0xff]
        %v231 = vld [vmem:[#allocation2 + $0x8] sm:$0xff]
        %v232 = vld [vmem:[%s214] sm:$0xff]
        %v233 = vld [vmem:[%s214 + $0x8] sm:$0xff]
        %v234 = vld [vmem:[#allocation3] sm:$0xff]
        %v235 = vld [vmem:[#allocation3 + $0x8] sm:$0xff]
        %v236 = vld [vmem:[#allocation3 + $0x10] sm:$0xff]
        %v237 = vld [vmem:[#allocation3 + $0x18] sm:$0xff]
        %vm238 = vcmask 261120
        %v240 = vsel %vm238, %v232, 0
        %v243 = vsel %vm238, %v233, 0
        %245 = vmatpush.msra.mxu0 0.0
        %246 = vmatpush.msra.mxu0 0.0
        %247 = vmatpush.msra.mxu0 0.0
        %248 = vmatpush.msra.mxu0 0.0
        %249 = vmatpush.msra.mxu0 0.0
        %250 = vmatpush.msra.mxu0 0.0
        %251 = vmatpush.msra.mxu0 0.0
        %252 = vmatpush.msra.mxu0 0.0
        %253 = vmatpush.msra.mxu0 0.0
        %254 = vmatpush.msra.mxu0 0.0
        %255 = vmatpush.msra.mxu0 0.0
        %256 = vmatpush.msra.mxu0 0.0
        %257 = vmatpush.msra.mxu0 %v237
        %258 = vmatpush.msra.mxu0 %v236
        %259 = vmatpush.msra.mxu0 %v235
        %260 = vmatpush.msra.mxu0 %v234
        %261 = vmatmul.f32.gmra.mxu0 %v240
        %v262 = vpop.f32.mrf.mxu0
        %v263 = vadd.f32 0.0, %v262
        %264 = vmatmul.f32.gmra.mxu0 %v243
        %v265 = vpop.f32.mrf.mxu0
        %v266 = vadd.f32 0.0, %v265
        %267 = vdwg.mxu0
        %v268 = vadd.f32 %v230, %v263
        %v269 = vadd.f32 %v231, %v266
        %vm270 = vcmask 523264
        %271 = vst.msk [vmem:[#allocation2] sm:$0xff] %vm270, %v268
        %272 = vst.msk [vmem:[#allocation2 + $0x8] sm:$0xff] %vm270, %v269
        // Predicated region
        $region41: #{_lambda_.12} parent=31 // pred_check
          %p273 = pneg %p223
        $region42: #{_lambda_.12} parent=31 // pred_check_branch
          %275 = sbr.rel (%p273) target = $region44
        $region43: #{_lambda_.12} parent=31 // pred_region
          %v276 = vld [vmem:[#allocation2] sm:$0xff]
          %v277 = vld [vmem:[#allocation2 + $0x8] sm:$0xff]
          %v278 = vld [vmem:[%s2] sm:$0x1]
          %v280 = vperm.slane %v278, 0
          %v282 = vadd.f32 %v276, %v280
          %v283 = vadd.f32 %v277, %v280
          %284 = vst.msk [vmem:[%s221] sm:$0xff] %vm270, %v282
          %285 = vst.msk [vmem:[%s221 + $0x8] sm:$0xff] %vm270, %v283
        $region44: #{_lambda_.12} parent=31 // pred_fallthru
          _
        %s286 = smul.u32 2, %s19
        %p287 = scmp.lt.s32.totalorder %s286, 3
        %s288 = scalar_select %p287, %s286, 3
        %s289 = smul.addr %s288, 8
        %s290 = scalar_lea.vmem %s3, %s289
        // Predicated region
        $region45: #{_lambda_.12} parent=31 // pred_check
          %p291 = pneg %p120
        $region46: #{_lambda_.12} parent=31 // pred_check_branch
          %293 = sbr.rel (%p291) target = $region48
        $region47: #{_lambda_.12} parent=31 // pred_region
          %s294 = smul.u32 2, %s19
        $region48: #{_lambda_.12} parent=31 // pred_fallthru
          _
      $region32: #{_lambda_.12} parent=5 // pred_fallthru
        _
      %p295 = scmp.le.s32.totalorder 2, %s10
      // Predicated region
      $region49: #{_lambda_.12} parent=5 // pred_check
        %p296 = pneg %p295
      $region50: #{_lambda_.12} parent=5 // pred_check_branch
        %298 = sbr.rel (%p296) target = $region52
      $region51: #{_lambda_.12} parent=5 // pred_region
        %s299 = ssub.s32 %s10, 2
        // Predicated region
        $region53: #{_lambda_.12} parent=51 // pred_check
          %p300 = pneg %p126
        $region54: #{_lambda_.12} parent=51 // pred_check_branch
          %302 = sbr.rel (%p300) target = $region56
        $region55: #{_lambda_.12} parent=51 // pred_region
          %s303 = smul.u32 2, %s21
          %p304 = scmp.lt.s32.totalorder %s303, 3
          %s305 = scalar_select %p304, %s303, 3
          %s306 = smul.addr %s305, 8
          %s307 = scalar_lea.vmem %s3, %s306
        $region56: #{_lambda_.12} parent=51 // pred_fallthru
          _
      $region52: #{_lambda_.12} parent=5 // pred_fallthru
        _
    $region6: #{_lambda_.12} parent=1 // loop_footer
      %s14 = sadd.s32 1, %s10
    $region7: #{_lambda_.12} parent=1 // loop_footer_branch
      %9 = sbr.rel target = $region3
    $region8: #{_lambda_.12} parent=1 // loop_exit
      _
    %308 = vsyncpa [#allocation4], 1
    %s309 = scalar_lea.sflag [#allocation4], 1
    %310 = vsyncpa %s309, 1

// kernel: _lambda_.8
$region0: #{_lambda_.8}
  #allocation0 [shape = 'u32[]', space=smem, size = 0x4, offset = 0x4, fixed_abs, tag = 'smem constant byte address 0x4 - core index']
  #allocation1 [shape = 'u32[72,128]{1,0:T(1,128)}', space=vmem, size = 0x9000, scoped, tag = 'internal scratch']
  #allocation2 [shape = 'f32[8,96]{1,0:T(8,128)}', space=vmem, size = 0x1000, scoped, tag = 'scratch operand']
  %s0 = inlined_call_operand.hbm [shape: f32[16,32], index: 0, kind: input, shape index: {}]
  %s1 = inlined_call_operand.hbm [shape: f32[32,96], index: 1, kind: input, shape index: {}]
  %s2 = inlined_call_operand.vmem [shape: f32[1,96], index: 2, kind: input, shape index: {}]
  %s3 = inlined_call_operand.vmem [shape: f32[16,96], index: 3, kind: output, shape index: {}]
  %s4 = sld [smem:[#allocation0]]
  $region61: #{_lambda_.8} parent=0
    _
  %s6 = ssub.s32 1, %s4
  %s7 = scalar_select 0, %s6, %s4
  $region1: #{_lambda_.8} parent=0
    #allocation3 [shape = 'u8[8192]{0}', space=vmem, size = 0x2000, scoped, tag = 'input window, operand 0']
    #allocation4 [shape = 's32[2]{0}', space=sflag, size = 0x8, scoped, tag = 'scoped memory for _lambda_.8']
    #allocation5 [shape = 'u8[16384]{0}', space=vmem, size = 0x4000, scoped, tag = 'input window, operand 1, single buffered']
    #allocation6 [shape = 's32[1]{0}', space=sflag, size = 0x4, scoped, tag = 'scoped memory for _lambda_.8']
    %8 = vsyncpa [#allocation4], 0
    %s9 = scalar_lea.sflag [#allocation4], 1
    %10 = vsyncpa %s9, 0
    %11 = vsyncpa [#allocation6], 0
    loop: start=0, step=1, limit=4
    $region2: #{_lambda_.8} parent=1 // loop_pre_header
      _
    $region3: #{_lambda_.8} parent=1 // loop_header
      %s13 = sphi 0, %s17
      %p14 = scmp.ge.s32.totalorder %s13, 4
      %s20 = sphi 0, %s32
      %s21 = sphi 0, %s28
      %s22 = sphi 0, %s20
      %s23 = sphi 0, %s21
      %s24 = sphi 0, %s22
      %s25 = sphi 0, %s23
      %s37 = sphi 0, %s39
      %s40 = sphi 0, %s37
      %s41 = sphi 0, %s40
      %s57 = sphi 0, %s41
      %s63 = sphi 0, %s65
      %s66 = sphi 0, %s63
      %s67 = sphi 0, %s66
      %s83 = sphi 0, %s67
      %s87 = sphi 0, %s87
      %s89 = sphi 0, %s87
      %s90 = sphi 0, %s89
      %s104 = sphi 0, %s90
      %s110 = sphi 0, %s112
      %s113 = sphi 0, %s110
      %s114 = sphi 0, %s113
      %s130 = sphi 0, %s114
    $region4: #{_lambda_.8} parent=1 // loop_header_branch
      %16 = sbr.rel (%p14) target = $region8
    $region5: #{_lambda_.8} parent=1 // loop_body
      %s18 = ssub.s32 %s13, 1
      %s19 = ssub.s32 %s13, 2
      %s26 = sadd.s32 1, %s21
      %p27 = scmp.ge.s32.totalorder %s26, 1
      %s28 = scalar_select %p27, 0, %s26
      %s29 = sadd.s32 1, %s20
      %s30 = scalar_select %p27, %s29, %s20
      %p31 = scmp.ge.s32.totalorder %s30, 2
      %s32 = scalar_select %p31, 0, %s30
      %s33 = ssub.s32 %s20, %s32
      %s34 = ssub.s32 %s21, %s28
      %s35 = sor.u32 %s33, %s34
      %p36 = scmp.eq.s32.totalorder %s35, 0
      %s38 = sadd.s32 %s37, 1
      %s39 = scalar_select %p36, %s37, %s38
      %p42 = pneg %p36
      %p43 = scmp.eq.s32.totalorder %s13, 1
      %p44 = por %p42, %p43
      %p45 = scmp.ne.s32.totalorder %s37, %s40
      %p46 = scmp.eq.s32.totalorder %s13, 0
      %p47 = por %p45, %p46
      %p48 = scmp.ne.s32.totalorder %s37, %s40
      %p49 = scmp.eq.s32.totalorder %s18, 1
      %p50 = por %p48, %p49
      %p51 = scmp.ne.s32.totalorder %s40, %s41
      %p52 = scmp.eq.s32.totalorder %s18, 0
      %p53 = por %p51, %p52
      %p54 = scmp.ne.s32.totalorder %s40, %s41
      %p55 = scmp.eq.s32.totalorder %s19, 1
      %p56 = por %p54, %p55
      %p58 = scmp.ne.s32.totalorder %s41, %s57
      %p59 = scmp.eq.s32.totalorder %s19, 0
      %p60 = por %p58, %p59
      %s61 = ssub.s32 %s21, %s28
      %p62 = scmp.eq.s32.totalorder %s61, 0
      %s64 = sadd.s32 %s63, 1
      %s65 = scalar_select %p62, %s63, %s64
      %p68 = pneg %p62
      %p69 = scmp.eq.s32.totalorder %s13, 1
      %p70 = por %p68, %p69
      %p71 = scmp.ne.s32.totalorder %s63, %s66
      %p72 = scmp.eq.s32.totalorder %s13, 0
      %p73 = por %p71, %p72
      %p74 = scmp.ne.s32.totalorder %s63, %s66
      %p75 = scmp.eq.s32.totalorder %s18, 1
      %p76 = por %p74, %p75
      %p77 = scmp.ne.s32.totalorder %s66, %s67
      %p78 = scmp.eq.s32.totalorder %s18, 0
      %p79 = por %p77, %p78
      %p80 = scmp.ne.s32.totalorder %s66, %s67
      %p81 = scmp.eq.s32.totalorder %s19, 1
      %p82 = por %p80, %p81
      %p84 = scmp.ne.s32.totalorder %s67, %s83
      %p85 = scmp.eq.s32.totalorder %s19, 0
      %p86 = por %p84, %p85
      %s88 = sadd.s32 %s87, 1
      %p91 = scmp.eq.s32.totalorder %s13, 1
      %p92 = scmp.ne.s32.totalorder %s87, %s89
      %p93 = scmp.eq.s32.totalorder %s13, 0
      %p94 = por %p92, %p93
      %p95 = scmp.ne.s32.totalorder %s87, %s89
      %p96 = scmp.eq.s32.totalorder %s18, 1
      %p97 = por %p95, %p96
      %p98 = scmp.ne.s32.totalorder %s89, %s90
      %p99 = scmp.eq.s32.totalorder %s18, 0
      %p100 = por %p98, %p99
      %p101 = scmp.ne.s32.totalorder %s89, %s90
      %p102 = scmp.eq.s32.totalorder %s19, 1
      %p103 = por %p101, %p102
      %p105 = scmp.ne.s32.totalorder %s90, %s104
      %p106 = scmp.eq.s32.totalorder %s19, 0
      %p107 = por %p105, %p106
      %s108 = ssub.s32 %s20, %s32
      %p109 = scmp.eq.s32.totalorder %s108, 0
      %s111 = sadd.s32 %s110, 1
      %s112 = scalar_select %p109, %s110, %s111
      %p115 = pneg %p109
      %p116 = scmp.eq.s32.totalorder %s13, 1
      %p117 = por %p115, %p116
      %p118 = scmp.ne.s32.totalorder %s110, %s113
      %p119 = scmp.eq.s32.totalorder %s13, 0
      %p120 = por %p118, %p119
      %p121 = scmp.ne.s32.totalorder %s110, %s113
      %p122 = scmp.eq.s32.totalorder %s18, 1
      %p123 = por %p121, %p122
      %p124 = scmp.ne.s32.totalorder %s113, %s114
      %p125 = scmp.eq.s32.totalorder %s18, 0
      %p126 = por %p124, %p125
      %p127 = scmp.ne.s32.totalorder %s113, %s114
      %p128 = scmp.eq.s32.totalorder %s19, 1
      %p129 = por %p127, %p128
      %p131 = scmp.ne.s32.totalorder %s114, %s130
      %p132 = scmp.eq.s32.totalorder %s19, 0
      %p133 = por %p131, %p132
      %p134 = scmp.le.s32.totalorder 1, %s13
      %p135 = scmp.lt.s32.totalorder %s13, 3
      %p136 = pnand %p134, %p135
      %p137 = pneg %p136
      // Predicated region
      $region9: #{_lambda_.8} parent=5 // pred_check
        _
      $region10: #{_lambda_.8} parent=5 // pred_check_branch
        %139 = sbr.rel (%p136) target = $region12
      $region11: #{_lambda_.8} parent=5 // pred_region
        %s140 = ssub.s32 %s13, 1
        // Predicated region
        $region13: #{_lambda_.8} parent=11 // pred_check
          %p141 = pneg %p79
        $region14: #{_lambda_.8} parent=11 // pred_check_branch
          %143 = sbr.rel (%p141) target = $region16
        $region15: #{_lambda_.8} parent=11 // pred_region
          %s144 = smul.u32 4, %s23
          %146 = vsyncadd [#allocation6], 0
          %s147 = smul.addr %s144, 8
          %s148 = scalar_lea.hbm %s1, %s147
          %s149 = sshll.u32 %s148, 4
          %s150 = int_to_ptr.hbm [resolvable:$true] %s149
          %s151 = sshll.u32 [#allocation5], 4
          %s152 = int_to_ptr.vmem [resolvable:$true] %s151
          %157 = dma.hbm_to_vmem [thread:$0]  %s150, 512, %s152, [#allocation6], 128, 128, 8
        $region16: #{_lambda_.8} parent=11 // pred_fallthru
          _
        // Predicated region
        $region17: #{_lambda_.8} parent=11 // pred_check
          %p158 = pneg %p100
        $region18: #{_lambda_.8} parent=11 // pred_check_branch
          %160 = sbr.rel (%p158) target = $region20
        $region19: #{_lambda_.8} parent=11 // pred_region
          _
        $region20: #{_lambda_.8} parent=11 // pred_fallthru
          _
      $region12: #{_lambda_.8} parent=5 // pred_fallthru
        _
      %p161 = scmp.lt.s32.totalorder %s13, 2
      // Predicated region
      $region21: #{_lambda_.8} parent=5 // pred_check
        %p162 = pneg %p161
      $region22: #{_lambda_.8} parent=5 // pred_check_branch
        %164 = sbr.rel (%p162) target = $region24
      $region23: #{_lambda_.8} parent=5 // pred_region
        // Predicated region
        $region25: #{_lambda_.8} parent=23 // pred_check
          %p165 = pneg %p47
        $region26: #{_lambda_.8} parent=23 // pred_check_branch
          %167 = sbr.rel (%p165) target = $region28
        $region27: #{_lambda_.8} parent=23 // pred_region
          %s168 = sand.u32 %s37, 1
          %s169 = scalar_lea.sflag [#allocation4], %s168
          %s170 = sand.u32 %s37, 1
          %s171 = smul.addr %s170, 8
          %s172 = scalar_lea.vmem [#allocation3], %s171
          %174 = vsyncadd %s169, 0
          %s175 = sadd.s32 %s21, %s20
          %s176 = smul.addr %s175, 8
          %s177 = scalar_lea.hbm %s0, %s176
          %s179 = sshll.u32 %s177, 4
          %s180 = int_to_ptr.hbm [resolvable:$true] %s179
          %s181 = sshll.u32 %s172, 4
          %s182 = int_to_ptr.vmem [resolvable:$true] %s181
          %184 = dma.hbm_to_vmem [thread:$0]  %s180, 128, %s182, %s169
        $region28: #{_lambda_.8} parent=23 // pred_fallthru
          _
      $region24: #{_lambda_.8} parent=5 // pred_fallthru
        _
      %p185 = scmp.le.s32.totalorder 1, %s13
      %p186 = scmp.lt.s32.totalorder %s13, 3
      %p187 = pnand %p185, %p186
      %p188 = pneg %p187
      // Predicated region
      $region29: #{_lambda_.8} parent=5 // pred_check
        _
      $region30: #{_lambda_.8} parent=5 // pred_check_branch
        %190 = sbr.rel (%p187) target = $region32
      $region31: #{_lambda_.8} parent=5 // pred_region
        %s191 = ssub.s32 %s13, 1
        %s192 = sand.u32 %s40, 1
        %s193 = scalar_lea.sflag [#allocation4], %s192
        %s194 = sand.u32 %s40, 1
        %s195 = smul.addr %s194, 8
        %s196 = scalar_lea.vmem [#allocation3], %s195
        // Predicated region
        $region33: #{_lambda_.8} parent=31 // pred_check
          %p197 = pneg %p53
        $region34: #{_lambda_.8} parent=31 // pred_check_branch
          %199 = sbr.rel (%p197) target = $region36
        $region35: #{_lambda_.8} parent=31 // pred_region
          %201 = dma.done %s193, 128
        $region36: #{_lambda_.8} parent=31 // pred_fallthru
          _
        // Predicated region
        $region37: #{_lambda_.8} parent=31 // pred_check
          %p202 = pneg %p79
        $region38: #{_lambda_.8} parent=31 // pred_check_branch
          %204 = sbr.rel (%p202) target = $region40
        $region39: #{_lambda_.8} parent=31 // pred_region
          %206 = dma.done [#allocation6], 512
        $region40: #{_lambda_.8} parent=31 // pred_fallthru
          _
        %s207 = sand.u32 %s40, 1
        %s208 = scalar_lea.sflag [#allocation4], %s207
        %s209 = sand.u32 %s40, 1
        %s210 = smul.addr %s209, 8
        %s211 = scalar_lea.vmem [#allocation3], %s210
        %p212 = pneg %p53
        %p213 = pneg %p50
        %p214 = pneg %p79
        %p215 = pneg %p76
        %p216 = pneg %p100
        %p217 = pneg %p97
        %p218 = pneg %p126
        %p219 = pneg %p123
        %p220 = scmp.lt.s32.totalorder %s22, 1
        %s221 = scalar_select %p220, %s22, 1
        %s222 = smul.addr %s221, 8
        %s223 = scalar_lea.vmem %s3, %s222
        %s224 = smul.u32 4, %s23
        %p225 = scmp.lt.s32.totalorder %s22, 1
        %s226 = scalar_select %p225, %s22, 1
        %s227 = smul.addr %s226, 8
        %s228 = scalar_lea.vmem %s3, %s227
        %p229 = scmp.eq.s32.totalorder %s23, 0
        // Predicated region
        $region41: #{_lambda_.8} parent=31 // pred_check
          %p230 = pneg %p229
        $region42: #{_lambda_.8} parent=31 // pred_check_branch
          %232 = sbr.rel (%p230) target = $region44
        $region43: #{_lambda_.8} parent=31 // pred_region
          %vm233 = vcmask 785408
          %234 = vst.msk [vmem:[#allocation2] sm:$0xff] %vm233, 0.0
        $region44: #{_lambda_.8} parent=31 // pred_fallthru
          _
        %v235 = vld [vmem:[#allocation2] sm:$0xff]
        %v236 = vld [vmem:[%s196] sm:$0xff]
        %v237 = vld [vmem:[#allocation5] sm:$0xff]
        %v238 = vld [vmem:[#allocation5 + $0x8] sm:$0xff]
        %v239 = vld [vmem:[#allocation5 + $0x10] sm:$0xff]
        %v240 = vld [vmem:[#allocation5 + $0x18] sm:$0xff]
        %vm241 = vcmask 261120
        %v243 = vsel %vm241, %v236, 0
        %245 = vmatpush.msra.mxu0 0.0
        %246 = vmatpush.msra.mxu0 0.0
        %247 = vmatpush.msra.mxu0 0.0
        %248 = vmatpush.msra.mxu0 0.0
        %249 = vmatpush.msra.mxu0 0.0
        %250 = vmatpush.msra.mxu0 0.0
        %251 = vmatpush.msra.mxu0 0.0
        %252 = vmatpush.msra.mxu0 0.0
        %253 = vmatpush.msra.mxu0 0.0
        %254 = vmatpush.msra.mxu0 0.0
        %255 = vmatpush.msra.mxu0 0.0
        %256 = vmatpush.msra.mxu0 0.0
        %257 = vmatpush.msra.mxu0 %v240
        %258 = vmatpush.msra.mxu0 %v239
        %259 = vmatpush.msra.mxu0 %v238
        %260 = vmatpush.msra.mxu0 %v237
        %261 = vmatmul.f32.gmra.mxu0 %v243
        %v262 = vpop.f32.mrf.mxu0
        %v263 = vadd.f32 0.0, %v262
        %264 = vdwg.mxu0
        %v265 = vadd.f32 %v235, %v263
        %vm266 = vcmask 785408
        %267 = vst.msk [vmem:[#allocation2] sm:$0xff] %vm266, %v265
        // Predicated region
        $region45: #{_lambda_.8} parent=31 // pred_check
          %p268 = pneg %p229
        $region46: #{_lambda_.8} parent=31 // pred_check_branch
          %270 = sbr.rel (%p268) target = $region48
        $region47: #{_lambda_.8} parent=31 // pred_region
          %v271 = vld [vmem:[#allocation2] sm:$0xff]
          %v272 = vld [vmem:[%s2] sm:$0x1]
          %v274 = vperm.slane %v272, 0
          %v276 = vadd.f32 %v271, %v274
          %277 = vst.msk [vmem:[%s228] sm:$0xff] %vm266, %v276
        $region48: #{_lambda_.8} parent=31 // pred_fallthru
          _
        %p278 = scmp.lt.s32.totalorder %s22, 1
        %s279 = scalar_select %p278, %s22, 1
        %s280 = smul.addr %s279, 8
        %s281 = scalar_lea.vmem %s3, %s280
        // Predicated region
        $region49: #{_lambda_.8} parent=31 // pred_check
          %p282 = pneg %p123
        $region50: #{_lambda_.8} parent=31 // pred_check_branch
          %284 = sbr.rel (%p282) target = $region52
        $region51: #{_lambda_.8} parent=31 // pred_region
          _
        $region52: #{_lambda_.8} parent=31 // pred_fallthru
          _
      $region32: #{_lambda_.8} parent=5 // pred_fallthru
        _
      %p285 = scmp.le.s32.totalorder 2, %s13
      // Predicated region
      $region53: #{_lambda_.8} parent=5 // pred_check
        %p286 = pneg %p285
      $region54: #{_lambda_.8} parent=5 // pred_check_branch
        %288 = sbr.rel (%p286) target = $region56
      $region55: #{_lambda_.8} parent=5 // pred_region
        %s289 = ssub.s32 %s13, 2
        // Predicated region
        $region57: #{_lambda_.8} parent=55 // pred_check
          %p290 = pneg %p129
        $region58: #{_lambda_.8} parent=55 // pred_check_branch
          %292 = sbr.rel (%p290) target = $region60
        $region59: #{_lambda_.8} parent=55 // pred_region
          %p293 = scmp.lt.s32.totalorder %s24, 1
          %s294 = scalar_select %p293, %s24, 1
          %s295 = smul.addr %s294, 8
          %s296 = scalar_lea.vmem %s3, %s295
        $region60: #{_lambda_.8} parent=55 // pred_fallthru
          _
      $region56: #{_lambda_.8} parent=5 // pred_fallthru
        _
    $region6: #{_lambda_.8} parent=1 // loop_footer
      %s17 = sadd.s32 1, %s13
    $region7: #{_lambda_.8} parent=1 // loop_footer_branch
      %12 = sbr.rel target = $region3
    $region8: #{_lambda_.8} parent=1 // loop_exit
      _
    %297 = vsyncpa [#allocation4], 1
    %s298 = scalar_lea.sflag [#allocation4], 1
    %299 = vsyncpa %s298, 1
    %300 = vsyncpa [#allocation6], 1

// kernel: _lambda_.9
$region0: #{_lambda_.9}
  #allocation0 [shape = 'u32[]', space=smem, size = 0x4, offset = 0x4, fixed_abs, tag = 'smem constant byte address 0x4 - core index']
  #allocation1 [shape = 'u32[72,128]{1,0:T(1,128)}', space=vmem, size = 0x9000, scoped, tag = 'internal scratch']
  %s0 = inlined_call_operand.vmem [shape: f32[2,8,32], index: 0, kind: input, shape index: {}]
  %s1 = inlined_call_operand.vmem [shape: f32[2,8,32], index: 1, kind: input, shape index: {}]
  %s2 = inlined_call_operand.vmem [shape: f32[2,8,32], index: 2, kind: input, shape index: {}]
  %s3 = inlined_call_operand.vmem [shape: f32[1,8,8], index: 3, kind: input, shape index: {}]
  %s4 = inlined_call_operand.vmem [shape: f32[2,8,32], index: 4, kind: output, shape index: {}]
  %s5 = sld [smem:[#allocation0]]
  $region49: #{_lambda_.9} parent=0
    _
  %s7 = ssub.s32 1, %s5
  %s8 = scalar_select 0, %s7, %s5
  loop: start=0, step=1, limit=4
  $region2: #{_lambda_.9} parent=0 // loop_pre_header
    _
  $region3: #{_lambda_.9} parent=0 // loop_header
    %s10 = sphi 0, %s14
    %p11 = scmp.ge.s32.totalorder %s10, 4
    %s17 = sphi 0, %s29
    %s18 = sphi 0, %s25
    %s19 = sphi 0, %s17
    %s20 = sphi 0, %s18
    %s21 = sphi 0, %s19
    %s22 = sphi 0, %s20
    %s34 = sphi 0, %s36
    %s37 = sphi 0, %s34
    %s38 = sphi 0, %s37
    %s54 = sphi 0, %s38
    %s62 = sphi 0, %s64
    %s65 = sphi 0, %s62
    %s66 = sphi 0, %s65
    %s82 = sphi 0, %s66
    %s90 = sphi 0, %s92
    %s93 = sphi 0, %s90
    %s94 = sphi 0, %s93
    %s110 = sphi 0, %s94
    %s114 = sphi 0, %s114
    %s116 = sphi 0, %s114
    %s117 = sphi 0, %s116
    %s131 = sphi 0, %s117
    %s139 = sphi 0, %s141
    %s142 = sphi 0, %s139
    %s143 = sphi 0, %s142
    %s159 = sphi 0, %s143
  $region4: #{_lambda_.9} parent=0 // loop_header_branch
    %13 = sbr.rel (%p11) target = $region8
  $region5: #{_lambda_.9} parent=0 // loop_body
    %s15 = ssub.s32 %s10, 1
    %s16 = ssub.s32 %s10, 2
    %s23 = sadd.s32 1, %s18
    %p24 = scmp.ge.s32.totalorder %s23, 1
    %s25 = scalar_select %p24, 0, %s23
    %s26 = sadd.s32 1, %s17
    %s27 = scalar_select %p24, %s26, %s17
    %p28 = scmp.ge.s32.totalorder %s27, 2
    %s29 = scalar_select %p28, 0, %s27
    %s30 = ssub.s32 %s17, %s29
    %s31 = ssub.s32 %s18, %s25
    %s32 = sor.u32 %s30, %s31
    %p33 = scmp.eq.s32.totalorder %s32, 0
    %s35 = sadd.s32 %s34, 1
    %s36 = scalar_select %p33, %s34, %s35
    %p39 = pneg %p33
    %p40 = scmp.eq.s32.totalorder %s10, 1
    %p41 = por %p39, %p40
    %p42 = scmp.ne.s32.totalorder %s34, %s37
    %p43 = scmp.eq.s32.totalorder %s10, 0
    %p44 = por %p42, %p43
    %p45 = scmp.ne.s32.totalorder %s34, %s37
    %p46 = scmp.eq.s32.totalorder %s15, 1
    %p47 = por %p45, %p46
    %p48 = scmp.ne.s32.totalorder %s37, %s38
    %p49 = scmp.eq.s32.totalorder %s15, 0
    %p50 = por %p48, %p49
    %p51 = scmp.ne.s32.totalorder %s37, %s38
    %p52 = scmp.eq.s32.totalorder %s16, 1
    %p53 = por %p51, %p52
    %p55 = scmp.ne.s32.totalorder %s38, %s54
    %p56 = scmp.eq.s32.totalorder %s16, 0
    %p57 = por %p55, %p56
    %s58 = ssub.s32 %s17, %s29
    %s59 = ssub.s32 %s18, %s25
    %s60 = sor.u32 %s58, %s59
    %p61 = scmp.eq.s32.totalorder %s60, 0
    %s63 = sadd.s32 %s62, 1
    %s64 = scalar_select %p61, %s62, %s63
    %p67 = pneg %p61
    %p68 = scmp.eq.s32.totalorder %s10, 1
    %p69 = por %p67, %p68
    %p70 = scmp.ne.s32.totalorder %s62, %s65
    %p71 = scmp.eq.s32.totalorder %s10, 0
    %p72 = por %p70, %p71
    %p73 = scmp.ne.s32.totalorder %s62, %s65
    %p74 = scmp.eq.s32.totalorder %s15, 1
    %p75 = por %p73, %p74
    %p76 = scmp.ne.s32.totalorder %s65, %s66
    %p77 = scmp.eq.s32.totalorder %s15, 0
    %p78 = por %p76, %p77
    %p79 = scmp.ne.s32.totalorder %s65, %s66
    %p80 = scmp.eq.s32.totalorder %s16, 1
    %p81 = por %p79, %p80
    %p83 = scmp.ne.s32.totalorder %s66, %s82
    %p84 = scmp.eq.s32.totalorder %s16, 0
    %p85 = por %p83, %p84
    %s86 = ssub.s32 %s17, %s29
    %s87 = ssub.s32 %s18, %s25
    %s88 = sor.u32 %s86, %s87
    %p89 = scmp.eq.s32.totalorder %s88, 0
    %s91 = sadd.s32 %s90, 1
    %s92 = scalar_select %p89, %s90, %s91
    %p95 = pneg %p89
    %p96 = scmp.eq.s32.totalorder %s10, 1
    %p97 = por %p95, %p96
    %p98 = scmp.ne.s32.totalorder %s90, %s93
    %p99 = scmp.eq.s32.totalorder %s10, 0
    %p100 = por %p98, %p99
    %p101 = scmp.ne.s32.totalorder %s90, %s93
    %p102 = scmp.eq.s32.totalorder %s15, 1
    %p103 = por %p101, %p102
    %p104 = scmp.ne.s32.totalorder %s93, %s94
    %p105 = scmp.eq.s32.totalorder %s15, 0
    %p106 = por %p104, %p105
    %p107 = scmp.ne.s32.totalorder %s93, %s94
    %p108 = scmp.eq.s32.totalorder %s16, 1
    %p109 = por %p107, %p108
    %p111 = scmp.ne.s32.totalorder %s94, %s110
    %p112 = scmp.eq.s32.totalorder %s16, 0
    %p113 = por %p111, %p112
    %s115 = sadd.s32 %s114, 1
    %p118 = scmp.eq.s32.totalorder %s10, 1
    %p119 = scmp.ne.s32.totalorder %s114, %s116
    %p120 = scmp.eq.s32.totalorder %s10, 0
    %p121 = por %p119, %p120
    %p122 = scmp.ne.s32.totalorder %s114, %s116
    %p123 = scmp.eq.s32.totalorder %s15, 1
    %p124 = por %p122, %p123
    %p125 = scmp.ne.s32.totalorder %s116, %s117
    %p126 = scmp.eq.s32.totalorder %s15, 0
    %p127 = por %p125, %p126
    %p128 = scmp.ne.s32.totalorder %s116, %s117
    %p129 = scmp.eq.s32.totalorder %s16, 1
    %p130 = por %p128, %p129
    %p132 = scmp.ne.s32.totalorder %s117, %s131
    %p133 = scmp.eq.s32.totalorder %s16, 0
    %p134 = por %p132, %p133
    %s135 = ssub.s32 %s17, %s29
    %s136 = ssub.s32 %s18, %s25
    %s137 = sor.u32 %s135, %s136
    %p138 = scmp.eq.s32.totalorder %s137, 0
    %s140 = sadd.s32 %s139, 1
    %s141 = scalar_select %p138, %s139, %s140
    %p144 = pneg %p138
    %p145 = scmp.eq.s32.totalorder %s10, 1
    %p146 = por %p144, %p145
    %p147 = scmp.ne.s32.totalorder %s139, %s142
    %p148 = scmp.eq.s32.totalorder %s10, 0
    %p149 = por %p147, %p148
    %p150 = scmp.ne.s32.totalorder %s139, %s142
    %p151 = scmp.eq.s32.totalorder %s15, 1
    %p152 = por %p150, %p151
    %p153 = scmp.ne.s32.totalorder %s142, %s143
    %p154 = scmp.eq.s32.totalorder %s15, 0
    %p155 = por %p153, %p154
    %p156 = scmp.ne.s32.totalorder %s142, %s143
    %p157 = scmp.eq.s32.totalorder %s16, 1
    %p158 = por %p156, %p157
    %p160 = scmp.ne.s32.totalorder %s143, %s159
    %p161 = scmp.eq.s32.totalorder %s16, 0
    %p162 = por %p160, %p161
    %p163 = scmp.le.s32.totalorder 1, %s10
    %p164 = scmp.lt.s32.totalorder %s10, 3
    %p165 = pnand %p163, %p164
    %p166 = pneg %p165
    // Predicated region
    $region9: #{_lambda_.9} parent=5 // pred_check
      _
    $region10: #{_lambda_.9} parent=5 // pred_check_branch
      %168 = sbr.rel (%p165) target = $region12
    $region11: #{_lambda_.9} parent=5 // pred_region
      %s169 = ssub.s32 %s10, 1
      // Predicated region
      $region13: #{_lambda_.9} parent=11 // pred_check
        %p170 = pneg %p127
      $region14: #{_lambda_.9} parent=11 // pred_check_branch
        %172 = sbr.rel (%p170) target = $region16
      $region15: #{_lambda_.9} parent=11 // pred_region
        _
      $region16: #{_lambda_.9} parent=11 // pred_fallthru
        _
    $region12: #{_lambda_.9} parent=5 // pred_fallthru
      _
    %p173 = scmp.lt.s32.totalorder %s10, 2
    // Predicated region
    $region17: #{_lambda_.9} parent=5 // pred_check
      %p174 = pneg %p173
    $region18: #{_lambda_.9} parent=5 // pred_check_branch
      %176 = sbr.rel (%p174) target = $region20
    $region19: #{_lambda_.9} parent=5 // pred_region
      // Predicated region
      $region21: #{_lambda_.9} parent=19 // pred_check
        %p177 = pneg %p44
      $region22: #{_lambda_.9} parent=19 // pred_check_branch
        %179 = sbr.rel (%p177) target = $region24
      $region23: #{_lambda_.9} parent=19 // pred_region
        %p180 = scmp.lt.s32.totalorder %s17, 1
        %s181 = scalar_select %p180, %s17, 1
        %p182 = scmp.lt.s32.totalorder %s18, 0
        %s183 = scalar_select %p182, %s18, 0
        %s184 = sadd.s32 %s183, %s181
        %s185 = smul.addr %s184, 8
        %s186 = scalar_lea.vmem %s0, %s185
      $region24: #{_lambda_.9} parent=19 // pred_fallthru
        _
      // Predicated region
      $region25: #{_lambda_.9} parent=19 // pred_check
        %p187 = pneg %p72
      $region26: #{_lambda_.9} parent=19 // pred_check_branch
        %189 = sbr.rel (%p187) target = $region28
      $region27: #{_lambda_.9} parent=19 // pred_region
        %p190 = scmp.lt.s32.totalorder %s17, 1
        %s191 = scalar_select %p190, %s17, 1
        %p192 = scmp.lt.s32.totalorder %s18, 0
        %s193 = scalar_select %p192, %s18, 0
        %s194 = sadd.s32 %s193, %s191
        %s195 = smul.addr %s194, 8
        %s196 = scalar_lea.vmem %s1, %s195
      $region28: #{_lambda_.9} parent=19 // pred_fallthru
        _
      // Predicated region
      $region29: #{_lambda_.9} parent=19 // pred_check
        %p197 = pneg %p100
      $region30: #{_lambda_.9} parent=19 // pred_check_branch
        %199 = sbr.rel (%p197) target = $region32
      $region31: #{_lambda_.9} parent=19 // pred_region
        %p200 = scmp.lt.s32.totalorder %s17, 1
        %s201 = scalar_select %p200, %s17, 1
        %p202 = scmp.lt.s32.totalorder %s18, 0
        %s203 = scalar_select %p202, %s18, 0
        %s204 = sadd.s32 %s203, %s201
        %s205 = smul.addr %s204, 8
        %s206 = scalar_lea.vmem %s2, %s205
      $region32: #{_lambda_.9} parent=19 // pred_fallthru
        _
    $region20: #{_lambda_.9} parent=5 // pred_fallthru
      _
    %p207 = scmp.le.s32.totalorder 1, %s10
    %p208 = scmp.lt.s32.totalorder %s10, 3
    %p209 = pnand %p207, %p208
    %p210 = pneg %p209
    // Predicated region
    $region33: #{_lambda_.9} parent=5 // pred_check
      _
    $region34: #{_lambda_.9} parent=5 // pred_check_branch
      %212 = sbr.rel (%p209) target = $region36
    $region35: #{_lambda_.9} parent=5 // pred_region
      %s213 = ssub.s32 %s10, 1
      %p214 = scmp.lt.s32.totalorder %s19, 1
      %s215 = scalar_select %p214, %s19, 1
      %p216 = scmp.lt.s32.totalorder %s20, 0
      %s217 = scalar_select %p216, %s20, 0
      %s218 = sadd.s32 %s217, %s215
      %s219 = smul.addr %s218, 8
      %s220 = scalar_lea.vmem %s0, %s219
      %p221 = pneg %p50
      %p222 = pneg %p47
      %p223 = scmp.lt.s32.totalorder %s19, 1
      %s224 = scalar_select %p223, %s19, 1
      %p225 = scmp.lt.s32.totalorder %s20, 0
      %s226 = scalar_select %p225, %s20, 0
      %s227 = sadd.s32 %s226, %s224
      %s228 = smul.addr %s227, 8
      %s229 = scalar_lea.vmem %s1, %s228
      %p230 = pneg %p78
      %p231 = pneg %p75
      %p232 = scmp.lt.s32.totalorder %s19, 1
      %s233 = scalar_select %p232, %s19, 1
      %p234 = scmp.lt.s32.totalorder %s20, 0
      %s235 = scalar_select %p234, %s20, 0
      %s236 = sadd.s32 %s235, %s233
      %s237 = smul.addr %s236, 8
      %s238 = scalar_lea.vmem %s2, %s237
      %p239 = pneg %p106
      %p240 = pneg %p103
      %p241 = pneg %p127
      %p242 = pneg %p124
      %p243 = pneg %p155
      %p244 = pneg %p152
      %p245 = scmp.lt.s32.totalorder %s19, 1
      %s246 = scalar_select %p245, %s19, 1
      %p247 = scmp.lt.s32.totalorder %s20, 0
      %s248 = scalar_select %p247, %s20, 0
      %s249 = sadd.s32 %s248, %s246
      %s250 = smul.addr %s249, 8
      %s251 = scalar_lea.vmem %s4, %s250
      %p252 = scmp.lt.s32.totalorder %s19, 1
      %s253 = scalar_select %p252, %s19, 1
      %p254 = scmp.lt.s32.totalorder %s20, 0
      %s255 = scalar_select %p254, %s20, 0
      %s256 = sadd.s32 %s255, %s253
      %s257 = smul.addr %s256, 8
      %s258 = scalar_lea.vmem %s0, %s257
      %p259 = scmp.lt.s32.totalorder %s19, 1
      %s260 = scalar_select %p259, %s19, 1
      %p261 = scmp.lt.s32.totalorder %s20, 0
      %s262 = scalar_select %p261, %s20, 0
      %s263 = sadd.s32 %s262, %s260
      %s264 = smul.addr %s263, 8
      %s265 = scalar_lea.vmem %s1, %s264
      %p266 = scmp.lt.s32.totalorder %s19, 1
      %s267 = scalar_select %p266, %s19, 1
      %p268 = scmp.lt.s32.totalorder %s20, 0
      %s269 = scalar_select %p268, %s20, 0
      %s270 = sadd.s32 %s269, %s267
      %s271 = smul.addr %s270, 8
      %s272 = scalar_lea.vmem %s2, %s271
      %p273 = scmp.lt.s32.totalorder %s19, 1
      %s274 = scalar_select %p273, %s19, 1
      %p275 = scmp.lt.s32.totalorder %s20, 0
      %s276 = scalar_select %p275, %s20, 0
      %s277 = sadd.s32 %s276, %s274
      %s278 = smul.addr %s277, 8
      %s279 = scalar_lea.vmem %s4, %s278
      %v280 = vld [vmem:[%s258] sm:$0xff]
      %v281 = vld [vmem:[%s265] sm:$0xff]
      %v282 = vld [vmem:[%s272] sm:$0xff]
      %v283 = vld [vmem:[%s3] sm:$0xff]
      %vm284 = vcmp.eq.f32.partialorder %v283, 0.0
      %vm285 = vcmask 64512
      %v287 = vsel %vm285, %v280, 0
      %v290 = vsel %vm285, %v281, 0
      %292 = vmatpush.xpose.msra.mxu0 0.0
      %293 = vmatpush.xpose.msra.mxu0 0.0
      %294 = vmatpush.xpose.msra.mxu0 0.0
      %295 = vmatpush.xpose.msra.mxu0 0.0
      %296 = vmatpush.xpose.msra.mxu0 0.0
      %297 = vmatpush.xpose.msra.mxu0 0.0
      %298 = vmatpush.xpose.msra.mxu0 0.0
      %299 = vmatpush.xpose.msra.mxu0 0.0
      %300 = vmatpush.xpose.msra.mxu0 0.0
      %301 = vmatpush.xpose.msra.mxu0 0.0
      %302 = vmatpush.xpose.msra.mxu0 0.0
      %303 = vmatpush.xpose.msra.mxu0 0.0
      %304 = vmatpush.xpose.msra.mxu0 0.0
      %305 = vmatpush.xpose.msra.mxu0 0.0
      %306 = vmatpush.xpose.msra.mxu0 0.0
      %307 = vmatpush.xpose.msra.mxu0 %v290
      %308 = vmatmul.f32.gmra.mxu0 %v287
      %v309 = vpop.f32.mrf.mxu0
      %v310 = vadd.f32 0.0, %v309
      %311 = vdwg.mxu0
      %v312 = vmul.f32 %v310, 0.35355338
      %v313 = vsel %vm284, -1e+09, %v312
      %v314 = vsel %vm285, %v313, -inf
      %315 = vmax.xlane.f32.xlu0 %v314
      %v316 = vpop.xlane.xlu0 %315
      %v317 = vsub.f32 %v313, %v316
      %v318 = vmul.f32 %v317, 1.442695
      %v319 = vpow.pop %v318
      %v320 = vsel %vm285, %v319, 0.0
      %321 = vadd.xlane.f32.xlu0 %v320
      %v322 = vpop.xlane.xlu0 %321
      %v324 = vsel %vm285, %v319, 0
      %326 = vmatpush.msra.mxu0 0.0
      %327 = vmatpush.msra.mxu0 0.0
      %328 = vmatpush.msra.mxu0 0.0
      %329 = vmatpush.msra.mxu0 0.0
      %330 = vmatpush.msra.mxu0 0.0
      %331 = vmatpush.msra.mxu0 0.0
      %332 = vmatpush.msra.mxu0 0.0
      %333 = vmatpush.msra.mxu0 0.0
      %334 = vmatpush.msra.mxu0 0.0
      %335 = vmatpush.msra.mxu0 0.0
      %336 = vmatpush.msra.mxu0 0.0
      %337 = vmatpush.msra.mxu0 0.0
      %338 = vmatpush.msra.mxu0 0.0
      %339 = vmatpush.msra.mxu0 0.0
      %340 = vmatpush.msra.mxu0 0.0
      %341 = vmatpush.msra.mxu0 %v282
      %342 = vmatmul.f32.gmra.mxu0 %v324
      %v343 = vpop.f32.mrf.mxu0
      %v344 = vadd.f32 0.0, %v343
      %345 = vdwg.mxu0
      %v346 = vrcp.pop %v322
      %v347 = vmul.f32 %v322, %v346
      %v348 = vsub.f32 1.0, %v347
      %v349 = vmul.f32 %v346, %v348
      %v350 = vadd.f32 %v346, %v349
      %vm351 = vweird.f32 %v322
      %vm352 = vweird.f32 %v346
      %vm353 = vmor %vm351, %vm352
      %v354 = vsel %vm353, %v346, %v350
      %v355 = vand.u32 2147483647, %v322
      %vm356 = vcmp.eq.f32.partialorder %v355, 8.507059e+37
      %v357 = vand.u32 %v322, 2147483648
      %v358 = vor.u32 1.1754944e-38, %v357
      %v359 = vsel %vm356, %v358, %v354
      %v360 = vmul.f32 1.0, %v359
      %v361 = vmul.f32 %v344, %v360
      %362 = vrot.lane.b32.xlu0 %v280, 120
      %v363 = vpop.permute.xlu0 %362
      %364 = vrot.lane.b32.xlu0 %v281, 120
      %v365 = vpop.permute.xlu0 %364
      %v366 = vsel %vm285, %v363, 0
      %v368 = vsel %vm285, %v365, 0
      %370 = vmatpush.xpose.msra.mxu0 0.0
      %371 = vmatpush.xpose.msra.mxu0 0.0
      %372 = vmatpush.xpose.msra.mxu0 0.0
      %373 = vmatpush.xpose.msra.mxu0 0.0
      %374 = vmatpush.xpose.msra.mxu0 0.0
      %375 = vmatpush.xpose.msra.mxu0 0.0
      %376 = vmatpush.xpose.msra.mxu0 0.0
      %377 = vmatpush.xpose.msra.mxu0 0.0
      %378 = vmatpush.xpose.msra.mxu0 0.0
      %379 = vmatpush.xpose.msra.mxu0 0.0
      %380 = vmatpush.xpose.msra.mxu0 0.0
      %381 = vmatpush.xpose.msra.mxu0 0.0
      %382 = vmatpush.xpose.msra.mxu0 0.0
      %383 = vmatpush.xpose.msra.mxu0 0.0
      %384 = vmatpush.xpose.msra.mxu0 0.0
      %385 = vmatpush.xpose.msra.mxu0 %v368
      %386 = vmatmul.f32.gmra.mxu0 %v366
      %v387 = vpop.f32.mrf.mxu0
      %v388 = vadd.f32 0.0, %v387
      %389 = vdwg.mxu0
      %v390 = vmul.f32 %v388, 0.35355338
      %v391 = vsel %vm284, -1e+09, %v390
      %v392 = vsel %vm285, %v391, -inf
      %393 = vmax.xlane.f32.xlu0 %v392
      %v394 = vpop.xlane.xlu0 %393
      %v395 = vsub.f32 %v391, %v394
      %v396 = vmul.f32 %v395, 1.442695
      %v397 = vpow.pop %v396
      %v398 = vsel %vm285, %v397, 0.0
      %399 = vadd.xlane.f32.xlu0 %v398
      %v400 = vpop.xlane.xlu0 %399
      %402 = vrot.lane.b32.xlu0 %v282, 120
      %v403 = vpop.permute.xlu0 %402
      %v406 = vsel %vm285, %v397, 0
      %408 = vmatpush.msra.mxu0 0.0
      %409 = vmatpush.msra.mxu0 0.0
      %410 = vmatpush.msra.mxu0 0.0
      %411 = vmatpush.msra.mxu0 0.0
      %412 = vmatpush.msra.mxu0 0.0
      %413 = vmatpush.msra.mxu0 0.0
      %414 = vmatpush.msra.mxu0 0.0
      %415 = vmatpush.msra.mxu0 0.0
      %416 = vmatpush.msra.mxu0 0.0
      %417 = vmatpush.msra.mxu0 0.0
      %418 = vmatpush.msra.mxu0 0.0
      %419 = vmatpush.msra.mxu0 0.0
      %420 = vmatpush.msra.mxu0 0.0
      %421 = vmatpush.msra.mxu0 0.0
      %422 = vmatpush.msra.mxu0 0.0
      %423 = vmatpush.msra.mxu0 %v403
      %424 = vmatmul.f32.gmra.mxu0 %v406
      %v425 = vpop.f32.mrf.mxu0
      %v426 = vadd.f32 0.0, %v425
      %427 = vdwg.mxu0
      %v428 = vrcp.pop %v400
      %v429 = vmul.f32 %v400, %v428
      %v430 = vsub.f32 1.0, %v429
      %v431 = vmul.f32 %v428, %v430
      %v432 = vadd.f32 %v428, %v431
      %vm433 = vweird.f32 %v400
      %vm434 = vweird.f32 %v428
      %vm435 = vmor %vm433, %vm434
      %v436 = vsel %vm435, %v428, %v432
      %v437 = vand.u32 2147483647, %v400
      %vm438 = vcmp.eq.f32.partialorder %v437, 8.507059e+37
      %v439 = vand.u32 %v400, 2147483648
      %v440 = vor.u32 1.1754944e-38, %v439
      %v441 = vsel %vm438, %v440, %v436
      %v442 = vmul.f32 1.0, %v441
      %v443 = vmul.f32 %v426, %v442
      %444 = vrot.lane.b32.xlu0 %v280, 112
      %v445 = vpop.permute.xlu0 %444
      %446 = vrot.lane.b32.xlu0 %v281, 112
      %v447 = vpop.permute.xlu0 %446
      %v448 = vsel %vm285, %v445, 0
      %v450 = vsel %vm285, %v447, 0
      %452 = vmatpush.xpose.msra.mxu0 0.0
      %453 = vmatpush.xpose.msra.mxu0 0.0
      %454 = vmatpush.xpose.msra.mxu0 0.0
      %455 = vmatpush.xpose.msra.mxu0 0.0
      %456 = vmatpush.xpose.msra.mxu0 0.0
      %457 = vmatpush.xpose.msra.mxu0 0.0
      %458 = vmatpush.xpose.msra.mxu0 0.0
      %459 = vmatpush.xpose.msra.mxu0 0.0
      %460 = vmatpush.xpose.msra.mxu0 0.0
      %461 = vmatpush.xpose.msra.mxu0 0.0
      %462 = vmatpush.xpose.msra.mxu0 0.0
      %463 = vmatpush.xpose.msra.mxu0 0.0
      %464 = vmatpush.xpose.msra.mxu0 0.0
      %465 = vmatpush.xpose.msra.mxu0 0.0
      %466 = vmatpush.xpose.msra.mxu0 0.0
      %467 = vmatpush.xpose.msra.mxu0 %v450
      %468 = vmatmul.f32.gmra.mxu0 %v448
      %v469 = vpop.f32.mrf.mxu0
      %v470 = vadd.f32 0.0, %v469
      %471 = vdwg.mxu0
      %v472 = vmul.f32 %v470, 0.35355338
      %v473 = vsel %vm284, -1e+09, %v472
      %v474 = vsel %vm285, %v473, -inf
      %475 = vmax.xlane.f32.xlu0 %v474
      %v476 = vpop.xlane.xlu0 %475
      %v477 = vsub.f32 %v473, %v476
      %v478 = vmul.f32 %v477, 1.442695
      %v479 = vpow.pop %v478
      %v480 = vsel %vm285, %v479, 0.0
      %481 = vadd.xlane.f32.xlu0 %v480
      %v482 = vpop.xlane.xlu0 %481
      %483 = vrot.lane.b32.xlu0 %v282, 112
      %v484 = vpop.permute.xlu0 %483
      %v487 = vsel %vm285, %v479, 0
      %489 = vmatpush.msra.mxu0 0.0
      %490 = vmatpush.msra.mxu0 0.0
      %491 = vmatpush.msra.mxu0 0.0
      %492 = vmatpush.msra.mxu0 0.0
      %493 = vmatpush.msra.mxu0 0.0
      %494 = vmatpush.msra.mxu0 0.0
      %495 = vmatpush.msra.mxu0 0.0
      %496 = vmatpush.msra.mxu0 0.0
      %497 = vmatpush.msra.mxu0 0.0
      %498 = vmatpush.msra.mxu0 0.0
      %499 = vmatpush.msra.mxu0 0.0
      %500 = vmatpush.msra.mxu0 0.0
      %501 = vmatpush.msra.mxu0 0.0
      %502 = vmatpush.msra.mxu0 0.0
      %503 = vmatpush.msra.mxu0 0.0
      %504 = vmatpush.msra.mxu0 %v484
      %505 = vmatmul.f32.gmra.mxu0 %v487
      %v506 = vpop.f32.mrf.mxu0
      %v507 = vadd.f32 0.0, %v506
      %508 = vdwg.mxu0
      %v509 = vrcp.pop %v482
      %v510 = vmul.f32 %v482, %v509
      %v511 = vsub.f32 1.0, %v510
      %v512 = vmul.f32 %v509, %v511
      %v513 = vadd.f32 %v509, %v512
      %vm514 = vweird.f32 %v482
      %vm515 = vweird.f32 %v509
      %vm516 = vmor %vm514, %vm515
      %v517 = vsel %vm516, %v509, %v513
      %v518 = vand.u32 2147483647, %v482
      %vm519 = vcmp.eq.f32.partialorder %v518, 8.507059e+37
      %v520 = vand.u32 %v482, 2147483648
      %v521 = vor.u32 1.1754944e-38, %v520
      %v522 = vsel %vm519, %v521, %v517
      %v523 = vmul.f32 1.0, %v522
      %v524 = vmul.f32 %v507, %v523
      %525 = vrot.lane.b32.xlu0 %v280, 104
      %v526 = vpop.permute.xlu0 %525
      %527 = vrot.lane.b32.xlu0 %v281, 104
      %v528 = vpop.permute.xlu0 %527
      %v529 = vsel %vm285, %v526, 0
      %v531 = vsel %vm285, %v528, 0
      %533 = vmatpush.xpose.msra.mxu0 0.0
      %534 = vmatpush.xpose.msra.mxu0 0.0
      %535 = vmatpush.xpose.msra.mxu0 0.0
      %536 = vmatpush.xpose.msra.mxu0 0.0
      %537 = vmatpush.xpose.msra.mxu0 0.0
      %538 = vmatpush.xpose.msra.mxu0 0.0
      %539 = vmatpush.xpose.msra.mxu0 0.0
      %540 = vmatpush.xpose.msra.mxu0 0.0
      %541 = vmatpush.xpose.msra.mxu0 0.0
      %542 = vmatpush.xpose.msra.mxu0 0.0
      %543 = vmatpush.xpose.msra.mxu0 0.0
      %544 = vmatpush.xpose.msra.mxu0 0.0
      %545 = vmatpush.xpose.msra.mxu0 0.0
      %546 = vmatpush.xpose.msra.mxu0 0.0
      %547 = vmatpush.xpose.msra.mxu0 0.0
      %548 = vmatpush.xpose.msra.mxu0 %v531
      %549 = vmatmul.f32.gmra.mxu0 %v529
      %v550 = vpop.f32.mrf.mxu0
      %v551 = vadd.f32 0.0, %v550
      %552 = vdwg.mxu0
      %v553 = vmul.f32 %v551, 0.35355338
      %v554 = vsel %vm284, -1e+09, %v553
      %v555 = vsel %vm285, %v554, -inf
      %556 = vmax.xlane.f32.xlu0 %v555
      %v557 = vpop.xlane.xlu0 %556
      %v558 = vsub.f32 %v554, %v557
      %v559 = vmul.f32 %v558, 1.442695
      %v560 = vpow.pop %v559
      %v561 = vsel %vm285, %v560, 0.0
      %562 = vadd.xlane.f32.xlu0 %v561
      %v563 = vpop.xlane.xlu0 %562
      %564 = vrot.lane.b32.xlu0 %v282, 104
      %v565 = vpop.permute.xlu0 %564
      %v568 = vsel %vm285, %v560, 0
      %570 = vmatpush.msra.mxu0 0.0
      %571 = vmatpush.msra.mxu0 0.0
      %572 = vmatpush.msra.mxu0 0.0
      %573 = vmatpush.msra.mxu0 0.0
      %574 = vmatpush.msra.mxu0 0.0
      %575 = vmatpush.msra.mxu0 0.0
      %576 = vmatpush.msra.mxu0 0.0
      %577 = vmatpush.msra.mxu0 0.0
      %578 = vmatpush.msra.mxu0 0.0
      %579 = vmatpush.msra.mxu0 0.0
      %580 = vmatpush.msra.mxu0 0.0
      %581 = vmatpush.msra.mxu0 0.0
      %582 = vmatpush.msra.mxu0 0.0
      %583 = vmatpush.msra.mxu0 0.0
      %584 = vmatpush.msra.mxu0 0.0
      %585 = vmatpush.msra.mxu0 %v565
      %586 = vmatmul.f32.gmra.mxu0 %v568
      %v587 = vpop.f32.mrf.mxu0
      %v588 = vadd.f32 0.0, %v587
      %589 = vdwg.mxu0
      %v590 = vrcp.pop %v563
      %v591 = vmul.f32 %v563, %v590
      %v592 = vsub.f32 1.0, %v591
      %v593 = vmul.f32 %v590, %v592
      %v594 = vadd.f32 %v590, %v593
      %vm595 = vweird.f32 %v563
      %vm596 = vweird.f32 %v590
      %vm597 = vmor %vm595, %vm596
      %v598 = vsel %vm597, %v590, %v594
      %v599 = vand.u32 2147483647, %v563
      %vm600 = vcmp.eq.f32.partialorder %v599, 8.507059e+37
      %v601 = vand.u32 %v563, 2147483648
      %v602 = vor.u32 1.1754944e-38, %v601
      %v603 = vsel %vm600, %v602, %v598
      %v604 = vmul.f32 1.0, %v603
      %v605 = vmul.f32 %v588, %v604
      %607 = vrot.lane.b32.xlu0 %v443, 8
      %v608 = vpop.permute.xlu0 %607
      %611 = vrot.lane.b32.xlu0 %v524, 16
      %v612 = vpop.permute.xlu0 %611
      %615 = vrot.lane.b32.xlu0 %v605, 24
      %v616 = vpop.permute.xlu0 %615
      %v618 = vsel %vm285, %v361, %v608
      %vm619 = vcmask 130048
      %v620 = vsel %vm619, %v618, %v612
      %vm621 = vcmask 195584
      %v622 = vsel %vm621, %v620, %v616
      %vm623 = vcmask 261120
      %624 = vst.msk [vmem:[%s279] sm:$0xff] %vm623, %v622
      %p625 = scmp.lt.s32.totalorder %s19, 1
      %s626 = scalar_select %p625, %s19, 1
      %p627 = scmp.lt.s32.totalorder %s20, 0
      %s628 = scalar_select %p627, %s20, 0
      %s629 = sadd.s32 %s628, %s626
      %s630 = smul.addr %s629, 8
      %s631 = scalar_lea.vmem %s4, %s630
      // Predicated region
      $region37: #{_lambda_.9} parent=35 // pred_check
        %p632 = pneg %p152
      $region38: #{_lambda_.9} parent=35 // pred_check_branch
        %634 = sbr.rel (%p632) target = $region40
      $region39: #{_lambda_.9} parent=35 // pred_region
        _
      $region40: #{_lambda_.9} parent=35 // pred_fallthru
        _
    $region36: #{_lambda_.9} parent=5 // pred_fallthru
      _
    %p635 = scmp.le.s32.totalorder 2, %s10
    // Predicated region
    $region41: #{_lambda_.9} parent=5 // pred_check
      %p636 = pneg %p635
    $region42: #{_lambda_.9} parent=5 // pred_check_branch
      %638 = sbr.rel (%p636) target = $region44
    $region43: #{_lambda_.9} parent=5 // pred_region
      %s639 = ssub.s32 %s10, 2
      // Predicated region
      $region45: #{_lambda_.9} parent=43 // pred_check
        %p640 = pneg %p158
      $region46: #{_lambda_.9} parent=43 // pred_check_branch
        %642 = sbr.rel (%p640) target = $region48
      $region47: #{_lambda_.9} parent=43 // pred_region
        %p643 = scmp.lt.s32.totalorder %s21, 1
        %s644 = scalar_select %p643, %s21, 1
        %p645 = scmp.lt.s32.totalorder %s22, 0
        %s646 = scalar_select %p645, %s22, 0
        %s647 = sadd.s32 %s646, %s644
        %s648 = smul.addr %s647, 8
        %s649 = scalar_lea.vmem %s4, %s648
      $region48: #{_lambda_.9} parent=43 // pred_fallthru
        _
    $region44: #{_lambda_.9} parent=5 // pred_fallthru
      _
  $region6: #{_lambda_.9} parent=0 // loop_footer
    %s14 = sadd.s32 1, %s10
  $region7: #{_lambda_.9} parent=0 // loop_footer_branch
    %9 = sbr.rel target = $region3
  $region8: #{_lambda_.9} parent=0 // loop_exit
    _

// kernel: _lambda_.10
$region0: #{_lambda_.10}
  #allocation0 [shape = 'u32[]', space=smem, size = 0x4, offset = 0x4, fixed_abs, tag = 'smem constant byte address 0x4 - core index']
  #allocation1 [shape = 'u32[72,128]{1,0:T(1,128)}', space=vmem, size = 0x9000, scoped, tag = 'internal scratch']
  #allocation2 [shape = 'f32[8,32]{1,0:T(8,128)}', space=vmem, size = 0x1000, scoped, tag = 'scratch operand']
  %s0 = inlined_call_operand.vmem [shape: f32[16,32], index: 0, kind: input, shape index: {}]
  %s1 = inlined_call_operand.vmem [shape: f32[32,32], index: 1, kind: input, shape index: {}]
  %s2 = inlined_call_operand.vmem [shape: f32[1,32], index: 2, kind: input, shape index: {}]
  %s3 = inlined_call_operand.vmem [shape: f32[16,32], index: 3, kind: input, shape index: {}]
  %s4 = inlined_call_operand.vmem [shape: f32[1,32], index: 4, kind: input, shape index: {}]
  %s5 = inlined_call_operand.vmem [shape: f32[1,32], index: 5, kind: input, shape index: {}]
  %s6 = inlined_call_operand.vmem [shape: f32[16,32], index: 6, kind: output, shape index: {}]
  %s7 = sld [smem:[#allocation0]]
  $region65: #{_lambda_.10} parent=0
    _
  %s9 = ssub.s32 1, %s7
  %s10 = scalar_select 0, %s9, %s7
  loop: start=0, step=1, limit=4
  $region2: #{_lambda_.10} parent=0 // loop_pre_header
    _
  $region3: #{_lambda_.10} parent=0 // loop_header
    %s12 = sphi 0, %s16
    %p13 = scmp.ge.s32.totalorder %s12, 4
    %s19 = sphi 0, %s31
    %s20 = sphi 0, %s27
    %s21 = sphi 0, %s19
    %s22 = sphi 0, %s20
    %s23 = sphi 0, %s21
    %s24 = sphi 0, %s22
    %s36 = sphi 0, %s38
    %s39 = sphi 0, %s36
    %s40 = sphi 0, %s39
    %s56 = sphi 0, %s40
    %s62 = sphi 0, %s64
    %s65 = sphi 0, %s62
    %s66 = sphi 0, %s65
    %s82 = sphi 0, %s66
    %s86 = sphi 0, %s86
    %s88 = sphi 0, %s86
    %s89 = sphi 0, %s88
    %s103 = sphi 0, %s89
    %s109 = sphi 0, %s111
    %s112 = sphi 0, %s109
    %s113 = sphi 0, %s112
    %s129 = sphi 0, %s113
    %s133 = sphi 0, %s133
    %s135 = sphi 0, %s133
    %s136 = sphi 0, %s135
    %s150 = sphi 0, %s136
    %s154 = sphi 0, %s154
    %s156 = sphi 0, %s154
    %s157 = sphi 0, %s156
    %s171 = sphi 0, %s157
    %s177 = sphi 0, %s179
    %s180 = sphi 0, %s177
    %s181 = sphi 0, %s180
    %s197 = sphi 0, %s181
  $region4: #{_lambda_.10} parent=0 // loop_header_branch
    %15 = sbr.rel (%p13) target = $region8
  $region5: #{_lambda_.10} parent=0 // loop_body
    %s17 = ssub.s32 %s12, 1
    %s18 = ssub.s32 %s12, 2
    %s25 = sadd.s32 1, %s20
    %p26 = scmp.ge.s32.totalorder %s25, 1
    %s27 = scalar_select %p26, 0, %s25
    %s28 = sadd.s32 1, %s19
    %s29 = scalar_select %p26, %s28, %s19
    %p30 = scmp.ge.s32.totalorder %s29, 2
    %s31 = scalar_select %p30, 0, %s29
    %s32 = ssub.s32 %s19, %s31
    %s33 = ssub.s32 %s20, %s27
    %s34 = sor.u32 %s32, %s33
    %p35 = scmp.eq.s32.totalorder %s34, 0
    %s37 = sadd.s32 %s36, 1
    %s38 = scalar_select %p35, %s36, %s37
    %p41 = pneg %p35
    %p42 = scmp.eq.s32.totalorder %s12, 1
    %p43 = por %p41, %p42
    %p44 = scmp.ne.s32.totalorder %s36, %s39
    %p45 = scmp.eq.s32.totalorder %s12, 0
    %p46 = por %p44, %p45
    %p47 = scmp.ne.s32.totalorder %s36, %s39
    %p48 = scmp.eq.s32.totalorder %s17, 1
    %p49 = por %p47, %p48
    %p50 = scmp.ne.s32.totalorder %s39, %s40
    %p51 = scmp.eq.s32.totalorder %s17, 0
    %p52 = por %p50, %p51
    %p53 = scmp.ne.s32.totalorder %s39, %s40
    %p54 = scmp.eq.s32.totalorder %s18, 1
    %p55 = por %p53, %p54
    %p57 = scmp.ne.s32.totalorder %s40, %s56
    %p58 = scmp.eq.s32.totalorder %s18, 0
    %p59 = por %p57, %p58
    %s60 = ssub.s32 %s20, %s27
    %p61 = scmp.eq.s32.totalorder %s60, 0
    %s63 = sadd.s32 %s62, 1
    %s64 = scalar_select %p61, %s62, %s63
    %p67 = pneg %p61
    %p68 = scmp.eq.s32.totalorder %s12, 1
    %p69 = por %p67, %p68
    %p70 = scmp.ne.s32.totalorder %s62, %s65
    %p71 = scmp.eq.s32.totalorder %s12, 0
    %p72 = por %p70, %p71
    %p73 = scmp.ne.s32.totalorder %s62, %s65
    %p74 = scmp.eq.s32.totalorder %s17, 1
    %p75 = por %p73, %p74
    %p76 = scmp.ne.s32.totalorder %s65, %s66
    %p77 = scmp.eq.s32.totalorder %s17, 0
    %p78 = por %p76, %p77
    %p79 = scmp.ne.s32.totalorder %s65, %s66
    %p80 = scmp.eq.s32.totalorder %s18, 1
    %p81 = por %p79, %p80
    %p83 = scmp.ne.s32.totalorder %s66, %s82
    %p84 = scmp.eq.s32.totalorder %s18, 0
    %p85 = por %p83, %p84
    %s87 = sadd.s32 %s86, 1
    %p90 = scmp.eq.s32.totalorder %s12, 1
    %p91 = scmp.ne.s32.totalorder %s86, %s88
    %p92 = scmp.eq.s32.totalorder %s12, 0
    %p93 = por %p91, %p92
    %p94 = scmp.ne.s32.totalorder %s86, %s88
    %p95 = scmp.eq.s32.totalorder %s17, 1
    %p96 = por %p94, %p95
    %p97 = scmp.ne.s32.totalorder %s88, %s89
    %p98 = scmp.eq.s32.totalorder %s17, 0
    %p99 = por %p97, %p98
    %p100 = scmp.ne.s32.totalorder %s88, %s89
    %p101 = scmp.eq.s32.totalorder %s18, 1
    %p102 = por %p100, %p101
    %p104 = scmp.ne.s32.totalorder %s89, %s103
    %p105 = scmp.eq.s32.totalorder %s18, 0
    %p106 = por %p104, %p105
    %s107 = ssub.s32 %s19, %s31
    %p108 = scmp.eq.s32.totalorder %s107, 0
    %s110 = sadd.s32 %s109, 1
    %s111 = scalar_select %p108, %s109, %s110
    %p114 = pneg %p108
    %p115 = scmp.eq.s32.totalorder %s12, 1
    %p116 = por %p114, %p115
    %p117 = scmp.ne.s32.totalorder %s109, %s112
    %p118 = scmp.eq.s32.totalorder %s12, 0
    %p119 = por %p117, %p118
    %p120 = scmp.ne.s32.totalorder %s109, %s112
    %p121 = scmp.eq.s32.totalorder %s17, 1
    %p122 = por %p120, %p121
    %p123 = scmp.ne.s32.totalorder %s112, %s113
    %p124 = scmp.eq.s32.totalorder %s17, 0
    %p125 = por %p123, %p124
    %p126 = scmp.ne.s32.totalorder %s112, %s113
    %p127 = scmp.eq.s32.totalorder %s18, 1
    %p128 = por %p126, %p127
    %p130 = scmp.ne.s32.totalorder %s113, %s129
    %p131 = scmp.eq.s32.totalorder %s18, 0
    %p132 = por %p130, %p131
    %s134 = sadd.s32 %s133, 1
    %p137 = scmp.eq.s32.totalorder %s12, 1
    %p138 = scmp.ne.s32.totalorder %s133, %s135
    %p139 = scmp.eq.s32.totalorder %s12, 0
    %p140 = por %p138, %p139
    %p141 = scmp.ne.s32.totalorder %s133, %s135
    %p142 = scmp.eq.s32.totalorder %s17, 1
    %p143 = por %p141, %p142
    %p144 = scmp.ne.s32.totalorder %s135, %s136
    %p145 = scmp.eq.s32.totalorder %s17, 0
    %p146 = por %p144, %p145
    %p147 = scmp.ne.s32.totalorder %s135, %s136
    %p148 = scmp.eq.s32.totalorder %s18, 1
    %p149 = por %p147, %p148
    %p151 = scmp.ne.s32.totalorder %s136, %s150
    %p152 = scmp.eq.s32.totalorder %s18, 0
    %p153 = por %p151, %p152
    %s155 = sadd.s32 %s154, 1
    %p158 = scmp.eq.s32.totalorder %s12, 1
    %p159 = scmp.ne.s32.totalorder %s154, %s156
    %p160 = scmp.eq.s32.totalorder %s12, 0
    %p161 = por %p159, %p160
    %p162 = scmp.ne.s32.totalorder %s154, %s156
    %p163 = scmp.eq.s32.totalorder %s17, 1
    %p164 = por %p162, %p163
    %p165 = scmp.ne.s32.totalorder %s156, %s157
    %p166 = scmp.eq.s32.totalorder %s17, 0
    %p167 = por %p165, %p166
    %p168 = scmp.ne.s32.totalorder %s156, %s157
    %p169 = scmp.eq.s32.totalorder %s18, 1
    %p170 = por %p168, %p169
    %p172 = scmp.ne.s32.totalorder %s157, %s171
    %p173 = scmp.eq.s32.totalorder %s18, 0
    %p174 = por %p172, %p173
    %s175 = ssub.s32 %s19, %s31
    %p176 = scmp.eq.s32.totalorder %s175, 0
    %s178 = sadd.s32 %s177, 1
    %s179 = scalar_select %p176, %s177, %s178
    %p182 = pneg %p176
    %p183 = scmp.eq.s32.totalorder %s12, 1
    %p184 = por %p182, %p183
    %p185 = scmp.ne.s32.totalorder %s177, %s180
    %p186 = scmp.eq.s32.totalorder %s12, 0
    %p187 = por %p185, %p186
    %p188 = scmp.ne.s32.totalorder %s177, %s180
    %p189 = scmp.eq.s32.totalorder %s17, 1
    %p190 = por %p188, %p189
    %p191 = scmp.ne.s32.totalorder %s180, %s181
    %p192 = scmp.eq.s32.totalorder %s17, 0
    %p193 = por %p191, %p192
    %p194 = scmp.ne.s32.totalorder %s180, %s181
    %p195 = scmp.eq.s32.totalorder %s18, 1
    %p196 = por %p194, %p195
    %p198 = scmp.ne.s32.totalorder %s181, %s197
    %p199 = scmp.eq.s32.totalorder %s18, 0
    %p200 = por %p198, %p199
    %p201 = scmp.le.s32.totalorder 1, %s12
    %p202 = scmp.lt.s32.totalorder %s12, 3
    %p203 = pnand %p201, %p202
    %p204 = pneg %p203
    // Predicated region
    $region9: #{_lambda_.10} parent=5 // pred_check
      _
    $region10: #{_lambda_.10} parent=5 // pred_check_branch
      %206 = sbr.rel (%p203) target = $region12
    $region11: #{_lambda_.10} parent=5 // pred_region
      %s207 = ssub.s32 %s12, 1
      // Predicated region
      $region13: #{_lambda_.10} parent=11 // pred_check
        %p208 = pneg %p78
      $region14: #{_lambda_.10} parent=11 // pred_check_branch
        %210 = sbr.rel (%p208) target = $region16
      $region15: #{_lambda_.10} parent=11 // pred_region
        %s211 = smul.u32 4, %s22
        %p212 = scmp.lt.s32.totalorder %s211, 3
        %s213 = scalar_select %p212, %s211, 3
        %s214 = smul.addr %s213, 8
        %s215 = scalar_lea.vmem %s1, %s214
        %s216 = smul.u32 4, %s22
      $region16: #{_lambda_.10} parent=11 // pred_fallthru
        _
      // Predicated region
      $region17: #{_lambda_.10} parent=11 // pred_check
        %p217 = pneg %p99
      $region18: #{_lambda_.10} parent=11 // pred_check_branch
        %219 = sbr.rel (%p217) target = $region20
      $region19: #{_lambda_.10} parent=11 // pred_region
        _
      $region20: #{_lambda_.10} parent=11 // pred_fallthru
        _
      // Predicated region
      $region21: #{_lambda_.10} parent=11 // pred_check
        %p220 = pneg %p146
      $region22: #{_lambda_.10} parent=11 // pred_check_branch
        %222 = sbr.rel (%p220) target = $region24
      $region23: #{_lambda_.10} parent=11 // pred_region
        _
      $region24: #{_lambda_.10} parent=11 // pred_fallthru
        _
      // Predicated region
      $region25: #{_lambda_.10} parent=11 // pred_check
        %p223 = pneg %p167
      $region26: #{_lambda_.10} parent=11 // pred_check_branch
        %225 = sbr.rel (%p223) target = $region28
      $region27: #{_lambda_.10} parent=11 // pred_region
        _
      $region28: #{_lambda_.10} parent=11 // pred_fallthru
        _
    $region12: #{_lambda_.10} parent=5 // pred_fallthru
      _
    %p226 = scmp.lt.s32.totalorder %s12, 2
    // Predicated region
    $region29: #{_lambda_.10} parent=5 // pred_check
      %p227 = pneg %p226
    $region30: #{_lambda_.10} parent=5 // pred_check_branch
      %229 = sbr.rel (%p227) target = $region32
    $region31: #{_lambda_.10} parent=5 // pred_region
      // Predicated region
      $region33: #{_lambda_.10} parent=31 // pred_check
        %p230 = pneg %p46
      $region34: #{_lambda_.10} parent=31 // pred_check_branch
        %232 = sbr.rel (%p230) target = $region36
      $region35: #{_lambda_.10} parent=31 // pred_region
        %p233 = scmp.lt.s32.totalorder %s19, 1
        %s234 = scalar_select %p233, %s19, 1
        %p235 = scmp.lt.s32.totalorder %s20, 0
        %s236 = scalar_select %p235, %s20, 0
        %s237 = sadd.s32 %s236, %s234
        %s238 = smul.addr %s237, 8
        %s239 = scalar_lea.vmem %s0, %s238
      $region36: #{_lambda_.10} parent=31 // pred_fallthru
        _
      // Predicated region
      $region37: #{_lambda_.10} parent=31 // pred_check
        %p240 = pneg %p119
      $region38: #{_lambda_.10} parent=31 // pred_check_branch
        %242 = sbr.rel (%p240) target = $region40
      $region39: #{_lambda_.10} parent=31 // pred_region
        %p243 = scmp.lt.s32.totalorder %s19, 1
        %s244 = scalar_select %p243, %s19, 1
        %s245 = smul.addr %s244, 8
        %s246 = scalar_lea.vmem %s3, %s245
      $region40: #{_lambda_.10} parent=31 // pred_fallthru
        _
    $region32: #{_lambda_.10} parent=5 // pred_fallthru
      _
    %p247 = scmp.le.s32.totalorder 1, %s12
    %p248 = scmp.lt.s32.totalorder %s12, 3
    %p249 = pnand %p247, %p248
    %p250 = pneg %p249
    // Predicated region
    $region41: #{_lambda_.10} parent=5 // pred_check
      _
    $region42: #{_lambda_.10} parent=5 // pred_check_branch
      %252 = sbr.rel (%p249) target = $region44
    $region43: #{_lambda_.10} parent=5 // pred_region
      %s253 = ssub.s32 %s12, 1
      %p254 = scmp.lt.s32.totalorder %s21, 1
      %s255 = scalar_select %p254, %s21, 1
      %p256 = scmp.lt.s32.totalorder %s22, 0
      %s257 = scalar_select %p256, %s22, 0
      %s258 = sadd.s32 %s257, %s255
      %s259 = smul.addr %s258, 8
      %s260 = scalar_lea.vmem %s0, %s259
      %p261 = pneg %p52
      %p262 = pneg %p49
      %s263 = smul.u32 4, %s22
      %p264 = scmp.lt.s32.totalorder %s263, 3
      %s265 = scalar_select %p264, %s263, 3
      %s266 = smul.addr %s265, 8
      %s267 = scalar_lea.vmem %s1, %s266
      %p268 = pneg %p78
      %p269 = pneg %p75
      %p270 = pneg %p99
      %p271 = pneg %p96
      %p272 = scmp.lt.s32.totalorder %s21, 1
      %s273 = scalar_select %p272, %s21, 1
      %s274 = smul.addr %s273, 8
      %s275 = scalar_lea.vmem %s3, %s274
      %p276 = pneg %p125
      %p277 = pneg %p122
      %p278 = pneg %p146
      %p279 = pneg %p143
      %p280 = pneg %p167
      %p281 = pneg %p164
      %p282 = pneg %p193
      %p283 = pneg %p190
      %p284 = scmp.lt.s32.totalorder %s21, 1
      %s285 = scalar_select %p284, %s21, 1
      %s286 = smul.addr %s285, 8
      %s287 = scalar_lea.vmem %s6, %s286
      %p288 = scmp.lt.s32.totalorder %s21, 1
      %s289 = scalar_select %p288, %s21, 1
      %p290 = scmp.lt.s32.totalorder %s22, 0
      %s291 = scalar_select %p290, %s22, 0
      %s292 = sadd.s32 %s291, %s289
      %s293 = smul.addr %s292, 8
      %s294 = scalar_lea.vmem %s0, %s293
      %s295 = smul.u32 4, %s22
      %p296 = scmp.lt.s32.totalorder %s295, 3
      %s297 = scalar_select %p296, %s295, 3
      %s298 = smul.addr %s297, 8
      %s299 = scalar_lea.vmem %s1, %s298
      %s300 = smul.u32 4, %s22
      %p301 = scmp.lt.s32.totalorder %s21, 1
      %s302 = scalar_select %p301, %s21, 1
      %s303 = smul.addr %s302, 8
      %s304 = scalar_lea.vmem %s3, %s303
      %p305 = scmp.lt.s32.totalorder %s21, 1
      %s306 = scalar_select %p305, %s21, 1
      %s307 = smul.addr %s306, 8
      %s308 = scalar_lea.vmem %s6, %s307
      %p309 = scmp.eq.s32.totalorder %s22, 0
      // Predicated region
      $region45: #{_lambda_.10} parent=43 // pred_check
        %p310 = pneg %p309
      $region46: #{_lambda_.10} parent=43 // pred_check_branch
        %312 = sbr.rel (%p310) target = $region48
      $region47: #{_lambda_.10} parent=43 // pred_region
        %vm313 = vcmask 261120
        %314 = vst.msk [vmem:[#allocation2] sm:$0xff] %vm313, 0.0
      $region48: #{_lambda_.10} parent=43 // pred_fallthru
        _
      %v315 = vld [vmem:[#allocation2] sm:$0xff]
      %v316 = vld [vmem:[%s294] sm:$0xff]
      %v317 = vld [vmem:[%s299] sm:$0xff]
      %v318 = vld [vmem:[%s299 + $0x8] sm:$0xff]
      %v319 = vld [vmem:[%s299 + $0x10] sm:$0xff]
      %v320 = vld [vmem:[%s299 + $0x18] sm:$0xff]
      %vm321 = vcmask 261120
      %v323 = vsel %vm321, %v316, 0
      %325 = vmatpush.msra.mxu0 0.0
      %326 = vmatpush.msra.mxu0 0.0
      %327 = vmatpush.msra.mxu0 0.0
      %328 = vmatpush.msra.mxu0 0.0
      %329 = vmatpush.msra.mxu0 0.0
      %330 = vmatpush.msra.mxu0 0.0
      %331 = vmatpush.msra.mxu0 0.0
      %332 = vmatpush.msra.mxu0 0.0
      %333 = vmatpush.msra.mxu0 0.0
      %334 = vmatpush.msra.mxu0 0.0
      %335 = vmatpush.msra.mxu0 0.0
      %336 = vmatpush.msra.mxu0 0.0
      %337 = vmatpush.msra.mxu0 %v320
      %338 = vmatpush.msra.mxu0 %v319
      %339 = vmatpush.msra.mxu0 %v318
      %340 = vmatpush.msra.mxu0 %v317
      %341 = vmatmul.f32.gmra.mxu0 %v323
      %v342 = vpop.f32.mrf.mxu0
      %v343 = vadd.f32 0.0, %v342
      %344 = vdwg.mxu0
      %v345 = vadd.f32 %v315, %v343
      %346 = vst.msk [vmem:[#allocation2] sm:$0xff] %vm321, %v345
      // Predicated region
      $region49: #{_lambda_.10} parent=43 // pred_check
        %p347 = pneg %p309
      $region50: #{_lambda_.10} parent=43 // pred_check_branch
        %349 = sbr.rel (%p347) target = $region52
      $region51: #{_lambda_.10} parent=43 // pred_region
        %v350 = vld [vmem:[#allocation2] sm:$0xff]
        %v351 = vld [vmem:[%s2] sm:$0x1]
        %v353 = vperm.slane %v351, 0
        %v355 = vadd.f32 %v350, %v353
        %v356 = vld [vmem:[%s304] sm:$0xff]
        %v357 = vadd.f32 %v355, %v356
        %v358 = vsel %vm321, %v357, 0.0
        %359 = vadd.xlane.f32.xlu0 %v358
        %v360 = vpop.xlane.xlu0 %359
        %v361 = vrcp.pop 32.0
        %v362 = vmul.f32 32.0, %v361
        %v363 = vsub.f32 1.0, %v362
        %v364 = vmul.f32 %v361, %v363
        %v365 = vadd.f32 %v361, %v364
        %vm366 = vweird.f32 %v361
        %v367 = vsel %vm366, %v361, %v365
        %v368 = vmul.f32 %v360, %v367
        %v369 = vsub.f32 %v357, %v368
        %v370 = vmul.f32 %v369, %v369
        %v371 = vsel %vm321, %v370, 0.0
        %372 = vadd.xlane.f32.xlu0 %v371
        %v373 = vpop.xlane.xlu0 %372
        %v374 = vmul.f32 %v373, %v367
        %v375 = vadd.f32 %v374, 1e-05
        %v376 = vrsqrt.pop %v375
        %v377 = vmul.f32 %v376, %v375
        %v378 = vmul.f32 %v377, %v376
        %v379 = vmul.f32 0.5, %v378
        %v380 = vsub.f32 1.5, %v379
        %v381 = vmul.f32 %v376, %v380
        %vm382 = vweird.f32 %v375
        %vm383 = vweird.f32 %v376
        %vm384 = vmor %vm382, %vm383
        %v385 = vsel %vm384, %v376, %v381
        %v386 = vmul.f32 %v369, %v385
        %v387 = vld [vmem:[%s4] sm:$0x1]
        %v389 = vperm.slane %v387, 0
        %v391 = vmul.f32 %v386, %v389
        %v392 = vld [vmem:[%s5] sm:$0x1]
        %v394 = vperm.slane %v392, 0
        %v396 = vadd.f32 %v391, %v394
        %397 = vst.msk [vmem:[%s308] sm:$0xff] %vm321, %v396
      $region52: #{_lambda_.10} parent=43 // pred_fallthru
        _
      %p398 = scmp.lt.s32.totalorder %s21, 1
      %s399 = scalar_select %p398, %s21, 1
      %s400 = smul.addr %s399, 8
      %s401 = scalar_lea.vmem %s6, %s400
      // Predicated region
      $region53: #{_lambda_.10} parent=43 // pred_check
        %p402 = pneg %p190
      $region54: #{_lambda_.10} parent=43 // pred_check_branch
        %404 = sbr.rel (%p402) target = $region56
      $region55: #{_lambda_.10} parent=43 // pred_region
        _
      $region56: #{_lambda_.10} parent=43 // pred_fallthru
        _
    $region44: #{_lambda_.10} parent=5 // pred_fallthru
      _
    %p405 = scmp.le.s32.totalorder 2, %s12
    // Predicated region
    $region57: #{_lambda_.10} parent=5 // pred_check
      %p406 = pneg %p405
    $region58: #{_lambda_.10} parent=5 // pred_check_branch
      %408 = sbr.rel (%p406) target = $region60
    $region59: #{_lambda_.10} parent=5 // pred_region
      %s409 = ssub.s32 %s12, 2
      // Predicated region
      $region61: #{_lambda_.10} parent=59 // pred_check
        %p410 = pneg %p196
      $region62: #{_lambda_.10} parent=59 // pred_check_branch
        %412 = sbr.rel (%p410) target = $region64
      $region63: #{_lambda_.10} parent=59 // pred_region
        %p413 = scmp.lt.s32.totalorder %s23, 1
        %s414 = scalar_select %p413, %s23, 1
        %s415 = smul.addr %s414, 8
        %s416 = scalar_lea.vmem %s6, %s415
      $region64: #{_lambda_.10} parent=59 // pred_fallthru
        _
    $region60: #{_lambda_.10} parent=5 // pred_fallthru
      _
  $region6: #{_lambda_.10} parent=0 // loop_footer
    %s16 = sadd.s32 1, %s12
  $region7: #{_lambda_.10} parent=0 // loop_footer_branch
    %11 = sbr.rel target = $region3
  $region8: #{_lambda_.10} parent=0 // loop_exit
    _

// kernel: _lambda_.15
$region0: #{_lambda_.15}
  #allocation0 [shape = 'u32[]', space=smem, size = 0x4, offset = 0x4, fixed_abs, tag = 'smem constant byte address 0x4 - core index']
  #allocation1 [shape = 'u32[72,128]{1,0:T(1,128)}', space=vmem, size = 0x9000, scoped, tag = 'internal scratch']
  #allocation2 [shape = 'f32[8,32]{1,0:T(8,128)}', space=vmem, size = 0x1000, scoped, tag = 'scratch operand']
  %s0 = inlined_call_operand.vmem [shape: f32[16,32], index: 0, kind: input, shape index: {}]
  %s1 = inlined_call_operand.vmem [shape: f32[32,64], index: 1, kind: input, shape index: {}]
  %s2 = inlined_call_operand.vmem [shape: f32[1,64], index: 2, kind: input, shape index: {}]
  %s3 = inlined_call_operand.vmem [shape: f32[64,32], index: 3, kind: input, shape index: {}]
  %s4 = inlined_call_operand.vmem [shape: f32[1,32], index: 4, kind: input, shape index: {}]
  %s5 = inlined_call_operand.vmem [shape: f32[1,32], index: 5, kind: input, shape index: {}]
  %s6 = inlined_call_operand.vmem [shape: f32[1,32], index: 6, kind: input, shape index: {}]
  %s7 = inlined_call_operand.hbm [shape: f32[16,32], index: 7, kind: output, shape index: {}]
  %s8 = sld [smem:[#allocation0]]
  $region69: #{_lambda_.15} parent=0
    _
  %s10 = ssub.s32 1, %s8
  %s11 = scalar_select 0, %s10, %s8
  $region1: #{_lambda_.15} parent=0
    #allocation3 [shape = 'u8[8192]{0}', space=vmem, size = 0x2000, scoped, tag = 'output window, operand 0']
    #allocation4 [shape = 's32[2]{0}', space=sflag, size = 0x8, scoped, tag = 'scoped memory for _lambda_.15']
    %12 = vsyncpa [#allocation4], 0
    %s13 = scalar_lea.sflag [#allocation4], 1
    %14 = vsyncpa %s13, 0
    loop: start=0, step=1, limit=4
    $region2: #{_lambda_.15} parent=1 // loop_pre_header
      _
    $region3: #{_lambda_.15} parent=1 // loop_header
      %s16 = sphi 0, %s20
      %p17 = scmp.ge.s32.totalorder %s16, 4
      %s23 = sphi 0, %s35
      %s24 = sphi 0, %s31
      %s25 = sphi 0, %s23
      %s26 = sphi 0, %s24
      %s27 = sphi 0, %s25
      %s28 = sphi 0, %s26
      %s38 = sphi 0, %s40
      %s41 = sphi 0, %s38
      %s42 = sphi 0, %s41
      %s58 = sphi 0, %s42
      %s64 = sphi 0, %s66
      %s67 = sphi 0, %s64
      %s68 = sphi 0, %s67
      %s84 = sphi 0, %s68
      %s90 = sphi 0, %s92
      %s93 = sphi 0, %s90
      %s94 = sphi 0, %s93
      %s110 = sphi 0, %s94
      %s116 = sphi 0, %s118
      %s119 = sphi 0, %s116
      %s120 = sphi 0, %s119
      %s136 = sphi 0, %s120
      %s140 = sphi 0, %s140
      %s142 = sphi 0, %s140
      %s143 = sphi 0, %s142
      %s157 = sphi 0, %s143
      %s161 = sphi 0, %s161
      %s163 = sphi 0, %s161
      %s164 = sphi 0, %s163
      %s178 = sphi 0, %s164
      %s182 = sphi 0, %s182
      %s184 = sphi 0, %s182
      %s185 = sphi 0, %s184
      %s199 = sphi 0, %s185
      %s205 = sphi 0, %s207
      %s208 = sphi 0, %s205
      %s209 = sphi 0, %s208
      %s225 = sphi 0, %s209
    $region4: #{_lambda_.15} parent=1 // loop_header_branch
      %19 = sbr.rel (%p17) target = $region8
    $region5: #{_lambda_.15} parent=1 // loop_body
      %s21 = ssub.s32 %s16, 1
      %s22 = ssub.s32 %s16, 2
      %s29 = sadd.s32 1, %s24
      %p30 = scmp.ge.s32.totalorder %s29, 1
      %s31 = scalar_select %p30, 0, %s29
      %s32 = sadd.s32 1, %s23
      %s33 = scalar_select %p30, %s32, %s23
      %p34 = scmp.ge.s32.totalorder %s33, 2
      %s35 = scalar_select %p34, 0, %s33
      %s36 = ssub.s32 %s23, %s35
      %p37 = scmp.eq.s32.totalorder %s36, 0
      %s39 = sadd.s32 %s38, 1
      %s40 = scalar_select %p37, %s38, %s39
      %p43 = pneg %p37
      %p44 = scmp.eq.s32.totalorder %s16, 1
      %p45 = por %p43, %p44
      %p46 = scmp.ne.s32.totalorder %s38, %s41
      %p47 = scmp.eq.s32.totalorder %s16, 0
      %p48 = por %p46, %p47
      %p49 = scmp.ne.s32.totalorder %s38, %s41
      %p50 = scmp.eq.s32.totalorder %s21, 1
      %p51 = por %p49, %p50
      %p52 = scmp.ne.s32.totalorder %s41, %s42
      %p53 = scmp.eq.s32.totalorder %s21, 0
      %p54 = por %p52, %p53
      %p55 = scmp.ne.s32.totalorder %s41, %s42
      %p56 = scmp.eq.s32.totalorder %s22, 1
      %p57 = por %p55, %p56
      %p59 = scmp.ne.s32.totalorder %s42, %s58
      %p60 = scmp.eq.s32.totalorder %s22, 0
      %p61 = por %p59, %p60
      %s62 = ssub.s32 %s24, %s31
      %p63 = scmp.eq.s32.totalorder %s62, 0
      %s65 = sadd.s32 %s64, 1
      %s66 = scalar_select %p63, %s64, %s65
      %p69 = pneg %p63
      %p70 = scmp.eq.s32.totalorder %s16, 1
      %p71 = por %p69, %p70
      %p72 = scmp.ne.s32.totalorder %s64, %s67
      %p73 = scmp.eq.s32.totalorder %s16, 0
      %p74 = por %p72, %p73
      %p75 = scmp.ne.s32.totalorder %s64, %s67
      %p76 = scmp.eq.s32.totalorder %s21, 1
      %p77 = por %p75, %p76
      %p78 = scmp.ne.s32.totalorder %s67, %s68
      %p79 = scmp.eq.s32.totalorder %s21, 0
      %p80 = por %p78, %p79
      %p81 = scmp.ne.s32.totalorder %s67, %s68
      %p82 = scmp.eq.s32.totalorder %s22, 1
      %p83 = por %p81, %p82
      %p85 = scmp.ne.s32.totalorder %s68, %s84
      %p86 = scmp.eq.s32.totalorder %s22, 0
      %p87 = por %p85, %p86
      %s88 = ssub.s32 %s24, %s31
      %p89 = scmp.eq.s32.totalorder %s88, 0
      %s91 = sadd.s32 %s90, 1
      %s92 = scalar_select %p89, %s90, %s91
      %p95 = pneg %p89
      %p96 = scmp.eq.s32.totalorder %s16, 1
      %p97 = por %p95, %p96
      %p98 = scmp.ne.s32.totalorder %s90, %s93
      %p99 = scmp.eq.s32.totalorder %s16, 0
      %p100 = por %p98, %p99
      %p101 = scmp.ne.s32.totalorder %s90, %s93
      %p102 = scmp.eq.s32.totalorder %s21, 1
      %p103 = por %p101, %p102
      %p104 = scmp.ne.s32.totalorder %s93, %s94
      %p105 = scmp.eq.s32.totalorder %s21, 0
      %p106 = por %p104, %p105
      %p107 = scmp.ne.s32.totalorder %s93, %s94
      %p108 = scmp.eq.s32.totalorder %s22, 1
      %p109 = por %p107, %p108
      %p111 = scmp.ne.s32.totalorder %s94, %s110
      %p112 = scmp.eq.s32.totalorder %s22, 0
      %p113 = por %p111, %p112
      %s114 = ssub.s32 %s24, %s31
      %p115 = scmp.eq.s32.totalorder %s114, 0
      %s117 = sadd.s32 %s116, 1
      %s118 = scalar_select %p115, %s116, %s117
      %p121 = pneg %p115
      %p122 = scmp.eq.s32.totalorder %s16, 1
      %p123 = por %p121, %p122
      %p124 = scmp.ne.s32.totalorder %s116, %s119
      %p125 = scmp.eq.s32.totalorder %s16, 0
      %p126 = por %p124, %p125
      %p127 = scmp.ne.s32.totalorder %s116, %s119
      %p128 = scmp.eq.s32.totalorder %s21, 1
      %p129 = por %p127, %p128
      %p130 = scmp.ne.s32.totalorder %s119, %s120
      %p131 = scmp.eq.s32.totalorder %s21, 0
      %p132 = por %p130, %p131
      %p133 = scmp.ne.s32.totalorder %s119, %s120
      %p134 = scmp.eq.s32.totalorder %s22, 1
      %p135 = por %p133, %p134
      %p137 = scmp.ne.s32.totalorder %s120, %s136
      %p138 = scmp.eq.s32.totalorder %s22, 0
      %p139 = por %p137, %p138
      %s141 = sadd.s32 %s140, 1
      %p144 = scmp.eq.s32.totalorder %s16, 1
      %p145 = scmp.ne.s32.totalorder %s140, %s142
      %p146 = scmp.eq.s32.totalorder %s16, 0
      %p147 = por %p145, %p146
      %p148 = scmp.ne.s32.totalorder %s140, %s142
      %p149 = scmp.eq.s32.totalorder %s21, 1
      %p150 = por %p148, %p149
      %p151 = scmp.ne.s32.totalorder %s142, %s143
      %p152 = scmp.eq.s32.totalorder %s21, 0
      %p153 = por %p151, %p152
      %p154 = scmp.ne.s32.totalorder %s142, %s143
      %p155 = scmp.eq.s32.totalorder %s22, 1
      %p156 = por %p154, %p155
      %p158 = scmp.ne.s32.totalorder %s143, %s157
      %p159 = scmp.eq.s32.totalorder %s22, 0
      %p160 = por %p158, %p159
      %s162 = sadd.s32 %s161, 1
      %p165 = scmp.eq.s32.totalorder %s16, 1
      %p166 = scmp.ne.s32.totalorder %s161, %s163
      %p167 = scmp.eq.s32.totalorder %s16, 0
      %p168 = por %p166, %p167
      %p169 = scmp.ne.s32.totalorder %s161, %s163
      %p170 = scmp.eq.s32.totalorder %s21, 1
      %p171 = por %p169, %p170
      %p172 = scmp.ne.s32.totalorder %s163, %s164
      %p173 = scmp.eq.s32.totalorder %s21, 0
      %p174 = por %p172, %p173
      %p175 = scmp.ne.s32.totalorder %s163, %s164
      %p176 = scmp.eq.s32.totalorder %s22, 1
      %p177 = por %p175, %p176
      %p179 = scmp.ne.s32.totalorder %s164, %s178
      %p180 = scmp.eq.s32.totalorder %s22, 0
      %p181 = por %p179, %p180
      %s183 = sadd.s32 %s182, 1
      %p186 = scmp.eq.s32.totalorder %s16, 1
      %p187 = scmp.ne.s32.totalorder %s182, %s184
      %p188 = scmp.eq.s32.totalorder %s16, 0
      %p189 = por %p187, %p188
      %p190 = scmp.ne.s32.totalorder %s182, %s184
      %p191 = scmp.eq.s32.totalorder %s21, 1
      %p192 = por %p190, %p191
      %p193 = scmp.ne.s32.totalorder %s184, %s185
      %p194 = scmp.eq.s32.totalorder %s21, 0
      %p195 = por %p193, %p194
      %p196 = scmp.ne.s32.totalorder %s184, %s185
      %p197 = scmp.eq.s32.totalorder %s22, 1
      %p198 = por %p196, %p197
      %p200 = scmp.ne.s32.totalorder %s185, %s199
      %p201 = scmp.eq.s32.totalorder %s22, 0
      %p202 = por %p200, %p201
      %s203 = ssub.s32 %s23, %s35
      %p204 = scmp.eq.s32.totalorder %s203, 0
      %s206 = sadd.s32 %s205, 1
      %s207 = scalar_select %p204, %s205, %s206
      %p210 = pneg %p204
      %p211 = scmp.eq.s32.totalorder %s16, 1
      %p212 = por %p210, %p211
      %p213 = scmp.ne.s32.totalorder %s205, %s208
      %p214 = scmp.eq.s32.totalorder %s16, 0
      %p215 = por %p213, %p214
      %p216 = scmp.ne.s32.totalorder %s205, %s208
      %p217 = scmp.eq.s32.totalorder %s21, 1
      %p218 = por %p216, %p217
      %p219 = scmp.ne.s32.totalorder %s208, %s209
      %p220 = scmp.eq.s32.totalorder %s21, 0
      %p221 = por %p219, %p220
      %p222 = scmp.ne.s32.totalorder %s208, %s209
      %p223 = scmp.eq.s32.totalorder %s22, 1
      %p224 = por %p222, %p223
      %p226 = scmp.ne.s32.totalorder %s209, %s225
      %p227 = scmp.eq.s32.totalorder %s22, 0
      %p228 = por %p226, %p227
      %p229 = scmp.le.s32.totalorder 1, %s16
      %p230 = scmp.lt.s32.totalorder %s16, 3
      %p231 = pnand %p229, %p230
      %p232 = pneg %p231
      // Predicated region
      $region9: #{_lambda_.15} parent=5 // pred_check
        _
      $region10: #{_lambda_.15} parent=5 // pred_check_branch
        %234 = sbr.rel (%p231) target = $region12
      $region11: #{_lambda_.15} parent=5 // pred_region
        %s235 = ssub.s32 %s16, 1
        // Predicated region
        $region13: #{_lambda_.15} parent=11 // pred_check
          %p236 = pneg %p80
        $region14: #{_lambda_.15} parent=11 // pred_check_branch
          %238 = sbr.rel (%p236) target = $region16
        $region15: #{_lambda_.15} parent=11 // pred_region
          %p239 = scmp.lt.s32.totalorder %s26, 0
          %s240 = scalar_select %p239, %s26, 0
          %s241 = smul.addr %s240, 8
          %s242 = scalar_lea.vmem %s1, %s241
        $region16: #{_lambda_.15} parent=11 // pred_fallthru
          _
        // Predicated region
        $region17: #{_lambda_.15} parent=11 // pred_check
          %p243 = pneg %p106
        $region18: #{_lambda_.15} parent=11 // pred_check_branch
          %245 = sbr.rel (%p243) target = $region20
        $region19: #{_lambda_.15} parent=11 // pred_region
          %p246 = scmp.lt.s32.totalorder %s26, 0
          %s247 = scalar_select %p246, %s26, 0
          %s248 = scalar_lea.vmem %s2, %s247
        $region20: #{_lambda_.15} parent=11 // pred_fallthru
          _
        // Predicated region
        $region21: #{_lambda_.15} parent=11 // pred_check
          %p249 = pneg %p132
        $region22: #{_lambda_.15} parent=11 // pred_check_branch
          %251 = sbr.rel (%p249) target = $region24
        $region23: #{_lambda_.15} parent=11 // pred_region
          %s252 = smul.u32 8, %s26
          %p253 = scmp.lt.s32.totalorder %s252, 7
          %s254 = scalar_select %p253, %s252, 7
          %s255 = smul.addr %s254, 8
          %s256 = scalar_lea.vmem %s3, %s255
          %s257 = smul.u32 8, %s26
        $region24: #{_lambda_.15} parent=11 // pred_fallthru
          _
        // Predicated region
        $region25: #{_lambda_.15} parent=11 // pred_check
          %p258 = pneg %p153
        $region26: #{_lambda_.15} parent=11 // pred_check_branch
          %260 = sbr.rel (%p258) target = $region28
        $region27: #{_lambda_.15} parent=11 // pred_region
          _
        $region28: #{_lambda_.15} parent=11 // pred_fallthru
          _
        // Predicated region
        $region29: #{_lambda_.15} parent=11 // pred_check
          %p261 = pneg %p174
        $region30: #{_lambda_.15} parent=11 // pred_check_branch
          %263 = sbr.rel (%p261) target = $region32
        $region31: #{_lambda_.15} parent=11 // pred_region
          _
        $region32: #{_lambda_.15} parent=11 // pred_fallthru
          _
        // Predicated region
        $region33: #{_lambda_.15} parent=11 // pred_check
          %p264 = pneg %p195
        $region34: #{_lambda_.15} parent=11 // pred_check_branch
          %266 = sbr.rel (%p264) target = $region36
        $region35: #{_lambda_.15} parent=11 // pred_region
          _
        $region36: #{_lambda_.15} parent=11 // pred_fallthru
          _
      $region12: #{_lambda_.15} parent=5 // pred_fallthru
        _
      %p267 = scmp.lt.s32.totalorder %s16, 2
      // Predicated region
      $region37: #{_lambda_.15} parent=5 // pred_check
        %p268 = pneg %p267
      $region38: #{_lambda_.15} parent=5 // pred_check_branch
        %270 = sbr.rel (%p268) target = $region40
      $region39: #{_lambda_.15} parent=5 // pred_region
        // Predicated region
        $region41: #{_lambda_.15} parent=39 // pred_check
          %p271 = pneg %p48
        $region42: #{_lambda_.15} parent=39 // pred_check_branch
          %273 = sbr.rel (%p271) target = $region44
        $region43: #{_lambda_.15} parent=39 // pred_region
          %p274 = scmp.lt.s32.totalorder %s23, 1
          %s275 = scalar_select %p274, %s23, 1
          %s276 = smul.addr %s275, 8
          %s277 = scalar_lea.vmem %s0, %s276
        $region44: #{_lambda_.15} parent=39 // pred_fallthru
          _
      $region40: #{_lambda_.15} parent=5 // pred_fallthru
        _
      %p278 = scmp.le.s32.totalorder 1, %s16
      %p279 = scmp.lt.s32.totalorder %s16, 3
      %p280 = pnand %p278, %p279
      %p281 = pneg %p280
      // Predicated region
      $region45: #{_lambda_.15} parent=5 // pred_check
        _
      $region46: #{_lambda_.15} parent=5 // pred_check_branch
        %283 = sbr.rel (%p280) target = $region48
      $region47: #{_lambda_.15} parent=5 // pred_region
        %s284 = ssub.s32 %s16, 1
        %p285 = scmp.lt.s32.totalorder %s25, 1
        %s286 = scalar_select %p285, %s25, 1
        %s287 = smul.addr %s286, 8
        %s288 = scalar_lea.vmem %s0, %s287
        %p289 = pneg %p54
        %p290 = pneg %p51
        %p291 = scmp.lt.s32.totalorder %s26, 0
        %s292 = scalar_select %p291, %s26, 0
        %s293 = smul.addr %s292, 8
        %s294 = scalar_lea.vmem %s1, %s293
        %p295 = pneg %p80
        %p296 = pneg %p77
        %p297 = scmp.lt.s32.totalorder %s26, 0
        %s298 = scalar_select %p297, %s26, 0
        %s299 = scalar_lea.vmem %s2, %s298
        %p300 = pneg %p106
        %p301 = pneg %p103
        %s302 = smul.u32 8, %s26
        %p303 = scmp.lt.s32.totalorder %s302, 7
        %s304 = scalar_select %p303, %s302, 7
        %s305 = smul.addr %s304, 8
        %s306 = scalar_lea.vmem %s3, %s305
        %p307 = pneg %p132
        %p308 = pneg %p129
        %p309 = pneg %p153
        %p310 = pneg %p150
        %p311 = pneg %p174
        %p312 = pneg %p171
        %p313 = pneg %p195
        %p314 = pneg %p192
        %p315 = pneg %p221
        %p316 = pneg %p218
        %s317 = sand.u32 %s208, 1
        %s318 = scalar_lea.sflag [#allocation4], %s317
        %s319 = sand.u32 %s208, 1
        %s320 = smul.addr %s319, 8
        %s321 = scalar_lea.vmem [#allocation3], %s320
        %p322 = scmp.lt.s32.totalorder %s25, 1
        %s323 = scalar_select %p322, %s25, 1
        %s324 = smul.addr %s323, 8
        %s325 = scalar_lea.vmem %s0, %s324
        %p326 = scmp.lt.s32.totalorder %s26, 0
        %s327 = scalar_select %p326, %s26, 0
        %s328 = smul.addr %s327, 8
        %s329 = scalar_lea.vmem %s1, %s328
        %p330 = scmp.lt.s32.totalorder %s26, 0
        %s331 = scalar_select %p330, %s26, 0
        %s332 = scalar_lea.vmem %s2, %s331
        %s333 = smul.u32 8, %s26
        %p334 = scmp.lt.s32.totalorder %s333, 7
        %s335 = scalar_select %p334, %s333, 7
        %s336 = smul.addr %s335, 8
        %s337 = scalar_lea.vmem %s3, %s336
        %s338 = smul.u32 8, %s26
        %p339 = scmp.eq.s32.totalorder %s26, 0
        // Predicated region
        $region49: #{_lambda_.15} parent=47 // pred_check
          %p340 = pneg %p339
        $region50: #{_lambda_.15} parent=47 // pred_check_branch
          %342 = sbr.rel (%p340) target = $region52
        $region51: #{_lambda_.15} parent=47 // pred_region
          %vm343 = vcmask 261120
          %344 = vst.msk [vmem:[#allocation2] sm:$0xff] %vm343, 0.0
        $region52: #{_lambda_.15} parent=47 // pred_fallthru
          _
        %v345 = vld [vmem:[%s325] sm:$0xff]
        %v346 = vld [vmem:[%s329] sm:$0xff]
        %v347 = vld [vmem:[%s329 + $0x8] sm:$0xff]
        %v348 = vld [vmem:[%s329 + $0x10] sm:$0xff]
        %v349 = vld [vmem:[%s329 + $0x18] sm:$0xff]
        %v350 = vld [vmem:[%s332] sm:$0x1]
        %v352 = vperm.slane %v350, 0
        %vm354 = vcmask 261120
        %v356 = vsel %vm354, %v345, 0
        %358 = vmatpush.msra.mxu0 0.0
        %359 = vmatpush.msra.mxu0 0.0
        %360 = vmatpush.msra.mxu0 0.0
        %361 = vmatpush.msra.mxu0 0.0
        %362 = vmatpush.msra.mxu0 0.0
        %363 = vmatpush.msra.mxu0 0.0
        %364 = vmatpush.msra.mxu0 0.0
        %365 = vmatpush.msra.mxu0 0.0
        %366 = vmatpush.msra.mxu0 0.0
        %367 = vmatpush.msra.mxu0 0.0
        %368 = vmatpush.msra.mxu0 0.0
        %369 = vmatpush.msra.mxu0 0.0
        %370 = vmatpush.msra.mxu0 %v349
        %371 = vmatpush.msra.mxu0 %v348
        %372 = vmatpush.msra.mxu0 %v347
        %373 = vmatpush.msra.mxu0 %v346
        %374 = vmatmul.f32.gmra.mxu0 %v356
        %v375 = vpop.f32.mrf.mxu0
        %v376 = vadd.f32 %v352, %v375
        %377 = vdwg.mxu0
        %v378 = vmax.f32 %v376, 0.0
        %v379 = vld [vmem:[#allocation2] sm:$0xff]
        %v380 = vld [vmem:[%s337] sm:$0xff]
        %v381 = vld [vmem:[%s337 + $0x8] sm:$0xff]
        %v382 = vld [vmem:[%s337 + $0x10] sm:$0xff]
        %v383 = vld [vmem:[%s337 + $0x18] sm:$0xff]
        %v384 = vld [vmem:[%s337 + $0x20] sm:$0xff]
        %v385 = vld [vmem:[%s337 + $0x28] sm:$0xff]
        %v386 = vld [vmem:[%s337 + $0x30] sm:$0xff]
        %v387 = vld [vmem:[%s337 + $0x38] sm:$0xff]
        %vm388 = vcmask 523264
        %v390 = vsel %vm388, %v378, 0
        %392 = vmatpush.msra.mxu0 0.0
        %393 = vmatpush.msra.mxu0 0.0
        %394 = vmatpush.msra.mxu0 0.0
        %395 = vmatpush.msra.mxu0 0.0
        %396 = vmatpush.msra.mxu0 0.0
        %397 = vmatpush.msra.mxu0 0.0
        %398 = vmatpush.msra.mxu0 0.0
        %399 = vmatpush.msra.mxu0 0.0
        %400 = vmatpush.msra.mxu0 %v387
        %401 = vmatpush.msra.mxu0 %v386
        %402 = vmatpush.msra.mxu0 %v385
        %403 = vmatpush.msra.mxu0 %v384
        %404 = vmatpush.msra.mxu0 %v383
        %405 = vmatpush.msra.mxu0 %v382
        %406 = vmatpush.msra.mxu0 %v381
        %407 = vmatpush.msra.mxu0 %v380
        %408 = vmatmul.f32.gmra.mxu0 %v390
        %v409 = vpop.f32.mrf.mxu0
        %v410 = vadd.f32 0.0, %v409
        %411 = vdwg.mxu0
        %v412 = vadd.f32 %v379, %v410
        %413 = vst.msk [vmem:[#allocation2] sm:$0xff] %vm354, %v412
        // Predicated region
        $region53: #{_lambda_.15} parent=47 // pred_check
          %p414 = pneg %p339
        $region54: #{_lambda_.15} parent=47 // pred_check_branch
          %416 = sbr.rel (%p414) target = $region56
        $region55: #{_lambda_.15} parent=47 // pred_region
          %v417 = vld [vmem:[#allocation2] sm:$0xff]
          %v418 = vld [vmem:[%s4] sm:$0x1]
          %v420 = vperm.slane %v418, 0
          %v422 = vadd.f32 %v417, %v420
          %v423 = vld [vmem:[%s325] sm:$0xff]
          %v424 = vadd.f32 %v422, %v423
          %v425 = vsel %vm354, %v424, 0.0
          %426 = vadd.xlane.f32.xlu0 %v425
          %v427 = vpop.xlane.xlu0 %426
          %v428 = vrcp.pop 32.0
          %v429 = vmul.f32 32.0, %v428
          %v430 = vsub.f32 1.0, %v429
          %v431 = vmul.f32 %v428, %v430
          %v432 = vadd.f32 %v428, %v431
          %vm433 = vweird.f32 %v428
          %v434 = vsel %vm433, %v428, %v432
          %v435 = vmul.f32 %v427, %v434
          %v436 = vsub.f32 %v424, %v435
          %v437 = vmul.f32 %v436, %v436
          %v438 = vsel %vm354, %v437, 0.0
          %439 = vadd.xlane.f32.xlu0 %v438
          %v440 = vpop.xlane.xlu0 %439
          %v441 = vmul.f32 %v440, %v434
          %v442 = vadd.f32 %v441, 1e-05
          %v443 = vrsqrt.pop %v442
          %v444 = vmul.f32 %v443, %v442
          %v445 = vmul.f32 %v444, %v443
          %v446 = vmul.f32 0.5, %v445
          %v447 = vsub.f32 1.5, %v446
          %v448 = vmul.f32 %v443, %v447
          %vm449 = vweird.f32 %v442
          %vm450 = vweird.f32 %v443
          %vm451 = vmor %vm449, %vm450
          %v452 = vsel %vm451, %v443, %v448
          %v453 = vmul.f32 %v436, %v452
          %v454 = vld [vmem:[%s5] sm:$0x1]
          %v456 = vperm.slane %v454, 0
          %v458 = vmul.f32 %v453, %v456
          %v459 = vld [vmem:[%s6] sm:$0x1]
          %v461 = vperm.slane %v459, 0
          %v463 = vadd.f32 %v458, %v461
          %464 = vst.msk [vmem:[%s321] sm:$0xff] %vm354, %v463
        $region56: #{_lambda_.15} parent=47 // pred_fallthru
          _
        %s465 = sand.u32 %s208, 1
        %s466 = scalar_lea.sflag [#allocation4], %s465
        %s467 = sand.u32 %s208, 1
        %s468 = smul.addr %s467, 8
        %s469 = scalar_lea.vmem [#allocation3], %s468
        // Predicated region
        $region57: #{_lambda_.15} parent=47 // pred_check
          %p470 = pneg %p218
        $region58: #{_lambda_.15} parent=47 // pred_check_branch
          %472 = sbr.rel (%p470) target = $region60
        $region59: #{_lambda_.15} parent=47 // pred_region
          %474 = vsyncadd %s466, 0
          %s475 = smul.addr %s25, 8
          %s476 = scalar_lea.hbm %s7, %s475
          %s478 = sshll.u32 %s469, 4
          %s479 = int_to_ptr.vmem [resolvable:$true] %s478
          %s480 = sshll.u32 %s476, 4
          %s481 = int_to_ptr.hbm [resolvable:$true] %s480
          %483 = dma.vmem_to_hbm [thread:$0]  %s479, 128, %s481, %s466
        $region60: #{_lambda_.15} parent=47 // pred_fallthru
          _
      $region48: #{_lambda_.15} parent=5 // pred_fallthru
        _
      %p484 = scmp.le.s32.totalorder 2, %s16
      // Predicated region
      $region61: #{_lambda_.15} parent=5 // pred_check
        %p485 = pneg %p484
      $region62: #{_lambda_.15} parent=5 // pred_check_branch
        %487 = sbr.rel (%p485) target = $region64
      $region63: #{_lambda_.15} parent=5 // pred_region
        %s488 = ssub.s32 %s16, 2
        // Predicated region
        $region65: #{_lambda_.15} parent=63 // pred_check
          %p489 = pneg %p224
        $region66: #{_lambda_.15} parent=63 // pred_check_branch
          %491 = sbr.rel (%p489) target = $region68
        $region67: #{_lambda_.15} parent=63 // pred_region
          %s492 = sand.u32 %s209, 1
          %s493 = scalar_lea.sflag [#allocation4], %s492
          %s494 = sand.u32 %s209, 1
          %s495 = smul.addr %s494, 8
          %s496 = scalar_lea.vmem [#allocation3], %s495
          %498 = dma.done %s493, 128
        $region68: #{_lambda_.15} parent=63 // pred_fallthru
          _
      $region64: #{_lambda_.15} parent=5 // pred_fallthru
        _
    $region6: #{_lambda_.15} parent=1 // loop_footer
      %s20 = sadd.s32 1, %s16
    $region7: #{_lambda_.15} parent=1 // loop_footer_branch
      %15 = sbr.rel target = $region3
    $region8: #{_lambda_.15} parent=1 // loop_exit
      _
    %499 = vsyncpa [#allocation4], 1
    %s500 = scalar_lea.sflag [#allocation4], 1
    %501 = vsyncpa %s500, 1

// kernel: _lambda_.13
$region0: #{_lambda_.13}
  #allocation0 [shape = 'u32[]', space=smem, size = 0x4, offset = 0x4, fixed_abs, tag = 'smem constant byte address 0x4 - core index']
  #allocation1 [shape = 'u32[72,128]{1,0:T(1,128)}', space=vmem, size = 0x9000, scoped, tag = 'internal scratch']
  %s0 = inlined_call_operand.vmem [shape: f32[2,8,32], index: 0, kind: input, shape index: {}]
  %s1 = inlined_call_operand.vmem [shape: f32[2,16,32], index: 1, kind: input, shape index: {}]
  %s2 = inlined_call_operand.vmem [shape: f32[2,16,32], index: 2, kind: input, shape index: {}]
  %s3 = inlined_call_operand.vmem [shape: f32[2,8,32], index: 3, kind: output, shape index: {}]
  %s4 = sld [smem:[#allocation0]]
  $region45: #{_lambda_.13} parent=0
    _
  %s6 = ssub.s32 1, %s4
  %s7 = scalar_select 0, %s6, %s4
  loop: start=0, step=1, limit=4
  $region2: #{_lambda_.13} parent=0 // loop_pre_header
    _
  $region3: #{_lambda_.13} parent=0 // loop_header
    %s9 = sphi 0, %s13
    %p10 = scmp.ge.s32.totalorder %s9, 4
    %s16 = sphi 0, %s28
    %s17 = sphi 0, %s24
    %s18 = sphi 0, %s16
    %s19 = sphi 0, %s17
    %s20 = sphi 0, %s18
    %s21 = sphi 0, %s19
    %s33 = sphi 0, %s35
    %s36 = sphi 0, %s33
    %s37 = sphi 0, %s36
    %s53 = sphi 0, %s37
    %s61 = sphi 0, %s63
    %s64 = sphi 0, %s61
    %s65 = sphi 0, %s64
    %s81 = sphi 0, %s65
    %s89 = sphi 0, %s91
    %s92 = sphi 0, %s89
    %s93 = sphi 0, %s92
    %s109 = sphi 0, %s93
    %s117 = sphi 0, %s119
    %s120 = sphi 0, %s117
    %s121 = sphi 0, %s120
    %s137 = sphi 0, %s121
  $region4: #{_lambda_.13} parent=0 // loop_header_branch
    %12 = sbr.rel (%p10) target = $region8
  $region5: #{_lambda_.13} parent=0 // loop_body
    %s14 = ssub.s32 %s9, 1
    %s15 = ssub.s32 %s9, 2
    %s22 = sadd.s32 1, %s17
    %p23 = scmp.ge.s32.totalorder %s22, 1
    %s24 = scalar_select %p23, 0, %s22
    %s25 = sadd.s32 1, %s16
    %s26 = scalar_select %p23, %s25, %s16
    %p27 = scmp.ge.s32.totalorder %s26, 2
    %s28 = scalar_select %p27, 0, %s26
    %s29 = ssub.s32 %s16, %s28
    %s30 = ssub.s32 %s17, %s24
    %s31 = sor.u32 %s29, %s30
    %p32 = scmp.eq.s32.totalorder %s31, 0
    %s34 = sadd.s32 %s33, 1
    %s35 = scalar_select %p32, %s33, %s34
    %p38 = pneg %p32
    %p39 = scmp.eq.s32.totalorder %s9, 1
    %p40 = por %p38, %p39
    %p41 = scmp.ne.s32.totalorder %s33, %s36
    %p42 = scmp.eq.s32.totalorder %s9, 0
    %p43 = por %p41, %p42
    %p44 = scmp.ne.s32.totalorder %s33, %s36
    %p45 = scmp.eq.s32.totalorder %s14, 1
    %p46 = por %p44, %p45
    %p47 = scmp.ne.s32.totalorder %s36, %s37
    %p48 = scmp.eq.s32.totalorder %s14, 0
    %p49 = por %p47, %p48
    %p50 = scmp.ne.s32.totalorder %s36, %s37
    %p51 = scmp.eq.s32.totalorder %s15, 1
    %p52 = por %p50, %p51
    %p54 = scmp.ne.s32.totalorder %s37, %s53
    %p55 = scmp.eq.s32.totalorder %s15, 0
    %p56 = por %p54, %p55
    %s57 = ssub.s32 %s16, %s28
    %s58 = ssub.s32 %s17, %s24
    %s59 = sor.u32 %s57, %s58
    %p60 = scmp.eq.s32.totalorder %s59, 0
    %s62 = sadd.s32 %s61, 1
    %s63 = scalar_select %p60, %s61, %s62
    %p66 = pneg %p60
    %p67 = scmp.eq.s32.totalorder %s9, 1
    %p68 = por %p66, %p67
    %p69 = scmp.ne.s32.totalorder %s61, %s64
    %p70 = scmp.eq.s32.totalorder %s9, 0
    %p71 = por %p69, %p70
    %p72 = scmp.ne.s32.totalorder %s61, %s64
    %p73 = scmp.eq.s32.totalorder %s14, 1
    %p74 = por %p72, %p73
    %p75 = scmp.ne.s32.totalorder %s64, %s65
    %p76 = scmp.eq.s32.totalorder %s14, 0
    %p77 = por %p75, %p76
    %p78 = scmp.ne.s32.totalorder %s64, %s65
    %p79 = scmp.eq.s32.totalorder %s15, 1
    %p80 = por %p78, %p79
    %p82 = scmp.ne.s32.totalorder %s65, %s81
    %p83 = scmp.eq.s32.totalorder %s15, 0
    %p84 = por %p82, %p83
    %s85 = ssub.s32 %s16, %s28
    %s86 = ssub.s32 %s17, %s24
    %s87 = sor.u32 %s85, %s86
    %p88 = scmp.eq.s32.totalorder %s87, 0
    %s90 = sadd.s32 %s89, 1
    %s91 = scalar_select %p88, %s89, %s90
    %p94 = pneg %p88
    %p95 = scmp.eq.s32.totalorder %s9, 1
    %p96 = por %p94, %p95
    %p97 = scmp.ne.s32.totalorder %s89, %s92
    %p98 = scmp.eq.s32.totalorder %s9, 0
    %p99 = por %p97, %p98
    %p100 = scmp.ne.s32.totalorder %s89, %s92
    %p101 = scmp.eq.s32.totalorder %s14, 1
    %p102 = por %p100, %p101
    %p103 = scmp.ne.s32.totalorder %s92, %s93
    %p104 = scmp.eq.s32.totalorder %s14, 0
    %p105 = por %p103, %p104
    %p106 = scmp.ne.s32.totalorder %s92, %s93
    %p107 = scmp.eq.s32.totalorder %s15, 1
    %p108 = por %p106, %p107
    %p110 = scmp.ne.s32.totalorder %s93, %s109
    %p111 = scmp.eq.s32.totalorder %s15, 0
    %p112 = por %p110, %p111
    %s113 = ssub.s32 %s16, %s28
    %s114 = ssub.s32 %s17, %s24
    %s115 = sor.u32 %s113, %s114
    %p116 = scmp.eq.s32.totalorder %s115, 0
    %s118 = sadd.s32 %s117, 1
    %s119 = scalar_select %p116, %s117, %s118
    %p122 = pneg %p116
    %p123 = scmp.eq.s32.totalorder %s9, 1
    %p124 = por %p122, %p123
    %p125 = scmp.ne.s32.totalorder %s117, %s120
    %p126 = scmp.eq.s32.totalorder %s9, 0
    %p127 = por %p125, %p126
    %p128 = scmp.ne.s32.totalorder %s117, %s120
    %p129 = scmp.eq.s32.totalorder %s14, 1
    %p130 = por %p128, %p129
    %p131 = scmp.ne.s32.totalorder %s120, %s121
    %p132 = scmp.eq.s32.totalorder %s14, 0
    %p133 = por %p131, %p132
    %p134 = scmp.ne.s32.totalorder %s120, %s121
    %p135 = scmp.eq.s32.totalorder %s15, 1
    %p136 = por %p134, %p135
    %p138 = scmp.ne.s32.totalorder %s121, %s137
    %p139 = scmp.eq.s32.totalorder %s15, 0
    %p140 = por %p138, %p139
    %p141 = scmp.le.s32.totalorder 1, %s9
    %p142 = scmp.lt.s32.totalorder %s9, 3
    %p143 = pnand %p141, %p142
    %p144 = pneg %p143
    // Predicated region
    $region9: #{_lambda_.13} parent=5 // pred_check
      _
    $region10: #{_lambda_.13} parent=5 // pred_check_branch
      %146 = sbr.rel (%p143) target = $region12
    $region11: #{_lambda_.13} parent=5 // pred_region
      %s147 = ssub.s32 %s9, 1
    $region12: #{_lambda_.13} parent=5 // pred_fallthru
      _
    %p148 = scmp.lt.s32.totalorder %s9, 2
    // Predicated region
    $region13: #{_lambda_.13} parent=5 // pred_check
      %p149 = pneg %p148
    $region14: #{_lambda_.13} parent=5 // pred_check_branch
      %151 = sbr.rel (%p149) target = $region16
    $region15: #{_lambda_.13} parent=5 // pred_region
      // Predicated region
      $region17: #{_lambda_.13} parent=15 // pred_check
        %p152 = pneg %p43
      $region18: #{_lambda_.13} parent=15 // pred_check_branch
        %154 = sbr.rel (%p152) target = $region20
      $region19: #{_lambda_.13} parent=15 // pred_region
        %p155 = scmp.lt.s32.totalorder %s16, 1
        %s156 = scalar_select %p155, %s16, 1
        %p157 = scmp.lt.s32.totalorder %s17, 0
        %s158 = scalar_select %p157, %s17, 0
        %s159 = sadd.s32 %s158, %s156
        %s160 = smul.addr %s159, 8
        %s161 = scalar_lea.vmem %s0, %s160
      $region20: #{_lambda_.13} parent=15 // pred_fallthru
        _
      // Predicated region
      $region21: #{_lambda_.13} parent=15 // pred_check
        %p162 = pneg %p71
      $region22: #{_lambda_.13} parent=15 // pred_check_branch
        %164 = sbr.rel (%p162) target = $region24
      $region23: #{_lambda_.13} parent=15 // pred_region
        %p165 = scmp.lt.s32.totalorder %s16, 1
        %s166 = scalar_select %p165, %s16, 1
        %p167 = scmp.lt.s32.totalorder %s17, 0
        %s168 = scalar_select %p167, %s17, 0
        %s169 = smul.addr %s166, 2
        %s170 = sadd.s32 %s168, %s169
        %s171 = smul.addr %s170, 8
        %s172 = scalar_lea.vmem %s1, %s171
      $region24: #{_lambda_.13} parent=15 // pred_fallthru
        _
      // Predicated region
      $region25: #{_lambda_.13} parent=15 // pred_check
        %p173 = pneg %p99
      $region26: #{_lambda_.13} parent=15 // pred_check_branch
        %175 = sbr.rel (%p173) target = $region28
      $region27: #{_lambda_.13} parent=15 // pred_region
        %p176 = scmp.lt.s32.totalorder %s16, 1
        %s177 = scalar_select %p176, %s16, 1
        %p178 = scmp.lt.s32.totalorder %s17, 0
        %s179 = scalar_select %p178, %s17, 0
        %s180 = smul.addr %s177, 2
        %s181 = sadd.s32 %s179, %s180
        %s182 = smul.addr %s181, 8
        %s183 = scalar_lea.vmem %s2, %s182
      $region28: #{_lambda_.13} parent=15 // pred_fallthru
        _
    $region16: #{_lambda_.13} parent=5 // pred_fallthru
      _
    %p184 = scmp.le.s32.totalorder 1, %s9
    %p185 = scmp.lt.s32.totalorder %s9, 3
    %p186 = pnand %p184, %p185
    %p187 = pneg %p186
    // Predicated region
    $region29: #{_lambda_.13} parent=5 // pred_check
      _
    $region30: #{_lambda_.13} parent=5 // pred_check_branch
      %189 = sbr.rel (%p186) target = $region32
    $region31: #{_lambda_.13} parent=5 // pred_region
      %s190 = ssub.s32 %s9, 1
      %p191 = scmp.lt.s32.totalorder %s18, 1
      %s192 = scalar_select %p191, %s18, 1
      %p193 = scmp.lt.s32.totalorder %s19, 0
      %s194 = scalar_select %p193, %s19, 0
      %s195 = sadd.s32 %s194, %s192
      %s196 = smul.addr %s195, 8
      %s197 = scalar_lea.vmem %s0, %s196
      %p198 = pneg %p49
      %p199 = pneg %p46
      %p200 = scmp.lt.s32.totalorder %s18, 1
      %s201 = scalar_select %p200, %s18, 1
      %p202 = scmp.lt.s32.totalorder %s19, 0
      %s203 = scalar_select %p202, %s19, 0
      %s204 = smul.addr %s201, 2
      %s205 = sadd.s32 %s203, %s204
      %s206 = smul.addr %s205, 8
      %s207 = scalar_lea.vmem %s1, %s206
      %p208 = pneg %p77
      %p209 = pneg %p74
      %p210 = scmp.lt.s32.totalorder %s18, 1
      %s211 = scalar_select %p210, %s18, 1
      %p212 = scmp.lt.s32.totalorder %s19, 0
      %s213 = scalar_select %p212, %s19, 0
      %s214 = smul.addr %s211, 2
      %s215 = sadd.s32 %s213, %s214
      %s216 = smul.addr %s215, 8
      %s217 = scalar_lea.vmem %s2, %s216
      %p218 = pneg %p105
      %p219 = pneg %p102
      %p220 = pneg %p133
      %p221 = pneg %p130
      %p222 = scmp.lt.s32.totalorder %s18, 1
      %s223 = scalar_select %p222, %s18, 1
      %p224 = scmp.lt.s32.totalorder %s19, 0
      %s225 = scalar_select %p224, %s19, 0
      %s226 = sadd.s32 %s225, %s223
      %s227 = smul.addr %s226, 8
      %s228 = scalar_lea.vmem %s3, %s227
      %p229 = scmp.lt.s32.totalorder %s18, 1
      %s230 = scalar_select %p229, %s18, 1
      %p231 = scmp.lt.s32.totalorder %s19, 0
      %s232 = scalar_select %p231, %s19, 0
      %s233 = sadd.s32 %s232, %s230
      %s234 = smul.addr %s233, 8
      %s235 = scalar_lea.vmem %s0, %s234
      %p236 = scmp.lt.s32.totalorder %s18, 1
      %s237 = scalar_select %p236, %s18, 1
      %p238 = scmp.lt.s32.totalorder %s19, 0
      %s239 = scalar_select %p238, %s19, 0
      %s240 = smul.addr %s237, 2
      %s241 = sadd.s32 %s239, %s240
      %s242 = smul.addr %s241, 8
      %s243 = scalar_lea.vmem %s1, %s242
      %p244 = scmp.lt.s32.totalorder %s18, 1
      %s245 = scalar_select %p244, %s18, 1
      %p246 = scmp.lt.s32.totalorder %s19, 0
      %s247 = scalar_select %p246, %s19, 0
      %s248 = smul.addr %s245, 2
      %s249 = sadd.s32 %s247, %s248
      %s250 = smul.addr %s249, 8
      %s251 = scalar_lea.vmem %s2, %s250
      %p252 = scmp.lt.s32.totalorder %s18, 1
      %s253 = scalar_select %p252, %s18, 1
      %p254 = scmp.lt.s32.totalorder %s19, 0
      %s255 = scalar_select %p254, %s19, 0
      %s256 = sadd.s32 %s255, %s253
      %s257 = smul.addr %s256, 8
      %s258 = scalar_lea.vmem %s3, %s257
      %v259 = vld [vmem:[%s235] sm:$0xff]
      %v260 = vld [vmem:[%s243] sm:$0xff]
      %v261 = vld [vmem:[%s243 + $0x8] sm:$0xff]
      %v262 = vld [vmem:[%s251] sm:$0xff]
      %v263 = vld [vmem:[%s251 + $0x8] sm:$0xff]
      %vm264 = vcmask 64512
      %v266 = vsel %vm264, %v259, 0
      %v269 = vsel %vm264, %v260, 0
      %v272 = vsel %vm264, %v261, 0
      %274 = vmatpush.xpose.msra.mxu0 0.0
      %275 = vmatpush.xpose.msra.mxu0 0.0
      %276 = vmatpush.xpose.msra.mxu0 0.0
      %277 = vmatpush.xpose.msra.mxu0 0.0
      %278 = vmatpush.xpose.msra.mxu0 0.0
      %279 = vmatpush.xpose.msra.mxu0 0.0
      %280 = vmatpush.xpose.msra.mxu0 0.0
      %281 = vmatpush.xpose.msra.mxu0 0.0
      %282 = vmatpush.xpose.msra.mxu0 0.0
      %283 = vmatpush.xpose.msra.mxu0 0.0
      %284 = vmatpush.xpose.msra.mxu0 0.0
      %285 = vmatpush.xpose.msra.mxu0 0.0
      %286 = vmatpush.xpose.msra.mxu0 0.0
      %287 = vmatpush.xpose.msra.mxu0 0.0
      %288 = vmatpush.xpose.msra.mxu0 %v272
      %289 = vmatpush.xpose.msra.mxu0 %v269
      %290 = vmatmul.f32.gmra.mxu0 %v266
      %v291 = vpop.f32.mrf.mxu0
      %v292 = vadd.f32 0.0, %v291
      %293 = vdwg.mxu0
      %v294 = vmul.f32 %v292, 0.35355338
      %vm295 = vcmask 130048
      %v296 = vsel %vm295, %v294, -inf
      %297 = vmax.xlane.f32.xlu0 %v296
      %v298 = vpop.xlane.xlu0 %297
      %v299 = vsub.f32 %v294, %v298
      %v300 = vmul.f32 %v299, 1.442695
      %v301 = vpow.pop %v300
      %v302 = vsel %vm295, %v301, 0.0
      %303 = vadd.xlane.f32.xlu0 %v302
      %v304 = vpop.xlane.xlu0 %303
      %v306 = vsel %vm295, %v301, 0
      %308 = vmatpush.msra.mxu0 0.0
      %309 = vmatpush.msra.mxu0 0.0
      %310 = vmatpush.msra.mxu0 0.0
      %311 = vmatpush.msra.mxu0 0.0
      %312 = vmatpush.msra.mxu0 0.0
      %313 = vmatpush.msra.mxu0 0.0
      %314 = vmatpush.msra.mxu0 0.0
      %315 = vmatpush.msra.mxu0 0.0
      %316 = vmatpush.msra.mxu0 0.0
      %317 = vmatpush.msra.mxu0 0.0
      %318 = vmatpush.msra.mxu0 0.0
      %319 = vmatpush.msra.mxu0 0.0
      %320 = vmatpush.msra.mxu0 0.0
      %321 = vmatpush.msra.mxu0 0.0
      %322 = vmatpush.msra.mxu0 %v263
      %323 = vmatpush.msra.mxu0 %v262
      %324 = vmatmul.f32.gmra.mxu0 %v306
      %v325 = vpop.f32.mrf.mxu0
      %v326 = vadd.f32 0.0, %v325
      %327 = vdwg.mxu0
      %v328 = vrcp.pop %v304
      %v329 = vmul.f32 %v304, %v328
      %v330 = vsub.f32 1.0, %v329
      %v331 = vmul.f32 %v328, %v330
      %v332 = vadd.f32 %v328, %v331
      %vm333 = vweird.f32 %v304
      %vm334 = vweird.f32 %v328
      %vm335 = vmor %vm333, %vm334
      %v336 = vsel %vm335, %v328, %v332
      %v337 = vand.u32 2147483647, %v304
      %vm338 = vcmp.eq.f32.partialorder %v337, 8.507059e+37
      %v339 = vand.u32 %v304, 2147483648
      %v340 = vor.u32 1.1754944e-38, %v339
      %v341 = vsel %vm338, %v340, %v336
      %v342 = vmul.f32 1.0, %v341
      %v343 = vmul.f32 %v326, %v342
      %344 = vrot.lane.b32.xlu0 %v259, 120
      %v345 = vpop.permute.xlu0 %344
      %346 = vrot.lane.b32.xlu0 %v260, 120
      %v347 = vpop.permute.xlu0 %346
      %348 = vrot.lane.b32.xlu0 %v261, 120
      %v349 = vpop.permute.xlu0 %348
      %v350 = vsel %vm264, %v345, 0
      %v352 = vsel %vm264, %v347, 0
      %v354 = vsel %vm264, %v349, 0
      %356 = vmatpush.xpose.msra.mxu0 0.0
      %357 = vmatpush.xpose.msra.mxu0 0.0
      %358 = vmatpush.xpose.msra.mxu0 0.0
      %359 = vmatpush.xpose.msra.mxu0 0.0
      %360 = vmatpush.xpose.msra.mxu0 0.0
      %361 = vmatpush.xpose.msra.mxu0 0.0
      %362 = vmatpush.xpose.msra.mxu0 0.0
      %363 = vmatpush.xpose.msra.mxu0 0.0
      %364 = vmatpush.xpose.msra.mxu0 0.0
      %365 = vmatpush.xpose.msra.mxu0 0.0
      %366 = vmatpush.xpose.msra.mxu0 0.0
      %367 = vmatpush.xpose.msra.mxu0 0.0
      %368 = vmatpush.xpose.msra.mxu0 0.0
      %369 = vmatpush.xpose.msra.mxu0 0.0
      %370 = vmatpush.xpose.msra.mxu0 %v354
      %371 = vmatpush.xpose.msra.mxu0 %v352
      %372 = vmatmul.f32.gmra.mxu0 %v350
      %v373 = vpop.f32.mrf.mxu0
      %v374 = vadd.f32 0.0, %v373
      %375 = vdwg.mxu0
      %v376 = vmul.f32 %v374, 0.35355338
      %v377 = vsel %vm295, %v376, -inf
      %378 = vmax.xlane.f32.xlu0 %v377
      %v379 = vpop.xlane.xlu0 %378
      %v380 = vsub.f32 %v376, %v379
      %v381 = vmul.f32 %v380, 1.442695
      %v382 = vpow.pop %v381
      %v383 = vsel %vm295, %v382, 0.0
      %384 = vadd.xlane.f32.xlu0 %v383
      %v385 = vpop.xlane.xlu0 %384
      %388 = vrot.lane.b32.xlu0 %v262, 120
      %v389 = vpop.permute.xlu0 %388
      %390 = vrot.lane.b32.xlu0 %v263, 120
      %v391 = vpop.permute.xlu0 %390
      %v395 = vsel %vm295, %v382, 0
      %397 = vmatpush.msra.mxu0 0.0
      %398 = vmatpush.msra.mxu0 0.0
      %399 = vmatpush.msra.mxu0 0.0
      %400 = vmatpush.msra.mxu0 0.0
      %401 = vmatpush.msra.mxu0 0.0
      %402 = vmatpush.msra.mxu0 0.0
      %403 = vmatpush.msra.mxu0 0.0
      %404 = vmatpush.msra.mxu0 0.0
      %405 = vmatpush.msra.mxu0 0.0
      %406 = vmatpush.msra.mxu0 0.0
      %407 = vmatpush.msra.mxu0 0.0
      %408 = vmatpush.msra.mxu0 0.0
      %409 = vmatpush.msra.mxu0 0.0
      %410 = vmatpush.msra.mxu0 0.0
      %411 = vmatpush.msra.mxu0 %v391
      %412 = vmatpush.msra.mxu0 %v389
      %413 = vmatmul.f32.gmra.mxu0 %v395
      %v414 = vpop.f32.mrf.mxu0
      %v415 = vadd.f32 0.0, %v414
      %416 = vdwg.mxu0
      %v417 = vrcp.pop %v385
      %v418 = vmul.f32 %v385, %v417
      %v419 = vsub.f32 1.0, %v418
      %v420 = vmul.f32 %v417, %v419
      %v421 = vadd.f32 %v417, %v420
      %vm422 = vweird.f32 %v385
      %vm423 = vweird.f32 %v417
      %vm424 = vmor %vm422, %vm423
      %v425 = vsel %vm424, %v417, %v421
      %v426 = vand.u32 2147483647, %v385
      %vm427 = vcmp.eq.f32.partialorder %v426, 8.507059e+37
      %v428 = vand.u32 %v385, 2147483648
      %v429 = vor.u32 1.1754944e-38, %v428
      %v430 = vsel %vm427, %v429, %v425
      %v431 = vmul.f32 1.0, %v430
      %v432 = vmul.f32 %v415, %v431
      %433 = vrot.lane.b32.xlu0 %v259, 112
      %v434 = vpop.permute.xlu0 %433
      %435 = vrot.lane.b32.xlu0 %v260, 112
      %v436 = vpop.permute.xlu0 %435
      %437 = vrot.lane.b32.xlu0 %v261, 112
      %v438 = vpop.permute.xlu0 %437
      %v439 = vsel %vm264, %v434, 0
      %v441 = vsel %vm264, %v436, 0
      %v443 = vsel %vm264, %v438, 0
      %445 = vmatpush.xpose.msra.mxu0 0.0
      %446 = vmatpush.xpose.msra.mxu0 0.0
      %447 = vmatpush.xpose.msra.mxu0 0.0
      %448 = vmatpush.xpose.msra.mxu0 0.0
      %449 = vmatpush.xpose.msra.mxu0 0.0
      %450 = vmatpush.xpose.msra.mxu0 0.0
      %451 = vmatpush.xpose.msra.mxu0 0.0
      %452 = vmatpush.xpose.msra.mxu0 0.0
      %453 = vmatpush.xpose.msra.mxu0 0.0
      %454 = vmatpush.xpose.msra.mxu0 0.0
      %455 = vmatpush.xpose.msra.mxu0 0.0
      %456 = vmatpush.xpose.msra.mxu0 0.0
      %457 = vmatpush.xpose.msra.mxu0 0.0
      %458 = vmatpush.xpose.msra.mxu0 0.0
      %459 = vmatpush.xpose.msra.mxu0 %v443
      %460 = vmatpush.xpose.msra.mxu0 %v441
      %461 = vmatmul.f32.gmra.mxu0 %v439
      %v462 = vpop.f32.mrf.mxu0
      %v463 = vadd.f32 0.0, %v462
      %464 = vdwg.mxu0
      %v465 = vmul.f32 %v463, 0.35355338
      %v466 = vsel %vm295, %v465, -inf
      %467 = vmax.xlane.f32.xlu0 %v466
      %v468 = vpop.xlane.xlu0 %467
      %v469 = vsub.f32 %v465, %v468
      %v470 = vmul.f32 %v469, 1.442695
      %v471 = vpow.pop %v470
      %v472 = vsel %vm295, %v471, 0.0
      %473 = vadd.xlane.f32.xlu0 %v472
      %v474 = vpop.xlane.xlu0 %473
      %475 = vrot.lane.b32.xlu0 %v262, 112
      %v476 = vpop.permute.xlu0 %475
      %477 = vrot.lane.b32.xlu0 %v263, 112
      %v478 = vpop.permute.xlu0 %477
      %v482 = vsel %vm295, %v471, 0
      %484 = vmatpush.msra.mxu0 0.0
      %485 = vmatpush.msra.mxu0 0.0
      %486 = vmatpush.msra.mxu0 0.0
      %487 = vmatpush.msra.mxu0 0.0
      %488 = vmatpush.msra.mxu0 0.0
      %489 = vmatpush.msra.mxu0 0.0
      %490 = vmatpush.msra.mxu0 0.0
      %491 = vmatpush.msra.mxu0 0.0
      %492 = vmatpush.msra.mxu0 0.0
      %493 = vmatpush.msra.mxu0 0.0
      %494 = vmatpush.msra.mxu0 0.0
      %495 = vmatpush.msra.mxu0 0.0
      %496 = vmatpush.msra.mxu0 0.0
      %497 = vmatpush.msra.mxu0 0.0
      %498 = vmatpush.msra.mxu0 %v478
      %499 = vmatpush.msra.mxu0 %v476
      %500 = vmatmul.f32.gmra.mxu0 %v482
      %v501 = vpop.f32.mrf.mxu0
      %v502 = vadd.f32 0.0, %v501
      %503 = vdwg.mxu0
      %v504 = vrcp.pop %v474
      %v505 = vmul.f32 %v474, %v504
      %v506 = vsub.f32 1.0, %v505
      %v507 = vmul.f32 %v504, %v506
      %v508 = vadd.f32 %v504, %v507
      %vm509 = vweird.f32 %v474
      %vm510 = vweird.f32 %v504
      %vm511 = vmor %vm509, %vm510
      %v512 = vsel %vm511, %v504, %v508
      %v513 = vand.u32 2147483647, %v474
      %vm514 = vcmp.eq.f32.partialorder %v513, 8.507059e+37
      %v515 = vand.u32 %v474, 2147483648
      %v516 = vor.u32 1.1754944e-38, %v515
      %v517 = vsel %vm514, %v516, %v512
      %v518 = vmul.f32 1.0, %v517
      %v519 = vmul.f32 %v502, %v518
      %520 = vrot.lane.b32.xlu0 %v259, 104
      %v521 = vpop.permute.xlu0 %520
      %522 = vrot.lane.b32.xlu0 %v260, 104
      %v523 = vpop.permute.xlu0 %522
      %524 = vrot.lane.b32.xlu0 %v261, 104
      %v525 = vpop.permute.xlu0 %524
      %v526 = vsel %vm264, %v521, 0
      %v528 = vsel %vm264, %v523, 0
      %v530 = vsel %vm264, %v525, 0
      %532 = vmatpush.xpose.msra.mxu0 0.0
      %533 = vmatpush.xpose.msra.mxu0 0.0
      %534 = vmatpush.xpose.msra.mxu0 0.0
      %535 = vmatpush.xpose.msra.mxu0 0.0
      %536 = vmatpush.xpose.msra.mxu0 0.0
      %537 = vmatpush.xpose.msra.mxu0 0.0
      %538 = vmatpush.xpose.msra.mxu0 0.0
      %539 = vmatpush.xpose.msra.mxu0 0.0
      %540 = vmatpush.xpose.msra.mxu0 0.0
      %541 = vmatpush.xpose.msra.mxu0 0.0
      %542 = vmatpush.xpose.msra.mxu0 0.0
      %543 = vmatpush.xpose.msra.mxu0 0.0
      %544 = vmatpush.xpose.msra.mxu0 0.0
      %545 = vmatpush.xpose.msra.mxu0 0.0
      %546 = vmatpush.xpose.msra.mxu0 %v530
      %547 = vmatpush.xpose.msra.mxu0 %v528
      %548 = vmatmul.f32.gmra.mxu0 %v526
      %v549 = vpop.f32.mrf.mxu0
      %v550 = vadd.f32 0.0, %v549
      %551 = vdwg.mxu0
      %v552 = vmul.f32 %v550, 0.35355338
      %v553 = vsel %vm295, %v552, -inf
      %554 = vmax.xlane.f32.xlu0 %v553
      %v555 = vpop.xlane.xlu0 %554
      %v556 = vsub.f32 %v552, %v555
      %v557 = vmul.f32 %v556, 1.442695
      %v558 = vpow.pop %v557
      %v559 = vsel %vm295, %v558, 0.0
      %560 = vadd.xlane.f32.xlu0 %v559
      %v561 = vpop.xlane.xlu0 %560
      %562 = vrot.lane.b32.xlu0 %v262, 104
      %v563 = vpop.permute.xlu0 %562
      %564 = vrot.lane.b32.xlu0 %v263, 104
      %v565 = vpop.permute.xlu0 %564
      %v569 = vsel %vm295, %v558, 0
      %571 = vmatpush.msra.mxu0 0.0
      %572 = vmatpush.msra.mxu0 0.0
      %573 = vmatpush.msra.mxu0 0.0
      %574 = vmatpush.msra.mxu0 0.0
      %575 = vmatpush.msra.mxu0 0.0
      %576 = vmatpush.msra.mxu0 0.0
      %577 = vmatpush.msra.mxu0 0.0
      %578 = vmatpush.msra.mxu0 0.0
      %579 = vmatpush.msra.mxu0 0.0
      %580 = vmatpush.msra.mxu0 0.0
      %581 = vmatpush.msra.mxu0 0.0
      %582 = vmatpush.msra.mxu0 0.0
      %583 = vmatpush.msra.mxu0 0.0
      %584 = vmatpush.msra.mxu0 0.0
      %585 = vmatpush.msra.mxu0 %v565
      %586 = vmatpush.msra.mxu0 %v563
      %587 = vmatmul.f32.gmra.mxu0 %v569
      %v588 = vpop.f32.mrf.mxu0
      %v589 = vadd.f32 0.0, %v588
      %590 = vdwg.mxu0
      %v591 = vrcp.pop %v561
      %v592 = vmul.f32 %v561, %v591
      %v593 = vsub.f32 1.0, %v592
      %v594 = vmul.f32 %v591, %v593
      %v595 = vadd.f32 %v591, %v594
      %vm596 = vweird.f32 %v561
      %vm597 = vweird.f32 %v591
      %vm598 = vmor %vm596, %vm597
      %v599 = vsel %vm598, %v591, %v595
      %v600 = vand.u32 2147483647, %v561
      %vm601 = vcmp.eq.f32.partialorder %v600, 8.507059e+37
      %v602 = vand.u32 %v561, 2147483648
      %v603 = vor.u32 1.1754944e-38, %v602
      %v604 = vsel %vm601, %v603, %v599
      %v605 = vmul.f32 1.0, %v604
      %v606 = vmul.f32 %v589, %v605
      %608 = vrot.lane.b32.xlu0 %v432, 8
      %v609 = vpop.permute.xlu0 %608
      %612 = vrot.lane.b32.xlu0 %v519, 16
      %v613 = vpop.permute.xlu0 %612
      %616 = vrot.lane.b32.xlu0 %v606, 24
      %v617 = vpop.permute.xlu0 %616
      %v619 = vsel %vm264, %v343, %v609
      %v620 = vsel %vm295, %v619, %v613
      %vm621 = vcmask 195584
      %v622 = vsel %vm621, %v620, %v617
      %vm623 = vcmask 261120
      %624 = vst.msk [vmem:[%s258] sm:$0xff] %vm623, %v622
      %p625 = scmp.lt.s32.totalorder %s18, 1
      %s626 = scalar_select %p625, %s18, 1
      %p627 = scmp.lt.s32.totalorder %s19, 0
      %s628 = scalar_select %p627, %s19, 0
      %s629 = sadd.s32 %s628, %s626
      %s630 = smul.addr %s629, 8
      %s631 = scalar_lea.vmem %s3, %s630
      // Predicated region
      $region33: #{_lambda_.13} parent=31 // pred_check
        %p632 = pneg %p130
      $region34: #{_lambda_.13} parent=31 // pred_check_branch
        %634 = sbr.rel (%p632) target = $region36
      $region35: #{_lambda_.13} parent=31 // pred_region
        _
      $region36: #{_lambda_.13} parent=31 // pred_fallthru
        _
    $region32: #{_lambda_.13} parent=5 // pred_fallthru
      _
    %p635 = scmp.le.s32.totalorder 2, %s9
    // Predicated region
    $region37: #{_lambda_.13} parent=5 // pred_check
      %p636 = pneg %p635
    $region38: #{_lambda_.13} parent=5 // pred_check_branch
      %638 = sbr.rel (%p636) target = $region40
    $region39: #{_lambda_.13} parent=5 // pred_region
      %s639 = ssub.s32 %s9, 2
      // Predicated region
      $region41: #{_lambda_.13} parent=39 // pred_check
        %p640 = pneg %p136
      $region42: #{_lambda_.13} parent=39 // pred_check_branch
        %642 = sbr.rel (%p640) target = $region44
      $region43: #{_lambda_.13} parent=39 // pred_region
        %p643 = scmp.lt.s32.totalorder %s20, 1
        %s644 = scalar_select %p643, %s20, 1
        %p645 = scmp.lt.s32.totalorder %s21, 0
        %s646 = scalar_select %p645, %s21, 0
        %s647 = sadd.s32 %s646, %s644
        %s648 = smul.addr %s647, 8
        %s649 = scalar_lea.vmem %s3, %s648
      $region44: #{_lambda_.13} parent=39 // pred_fallthru
        _
    $region40: #{_lambda_.13} parent=5 // pred_fallthru
      _
  $region6: #{_lambda_.13} parent=0 // loop_footer
    %s13 = sadd.s32 1, %s9
  $region7: #{_lambda_.13} parent=0 // loop_footer_branch
    %8 = sbr.rel target = $region3
  $region8: #{_lambda_.13} parent=0 // loop_exit
    _

// kernel: _lambda_.11
$region0: #{_lambda_.11}
  #allocation0 [shape = 'u32[]', space=smem, size = 0x4, offset = 0x4, fixed_abs, tag = 'smem constant byte address 0x4 - core index']
  #allocation1 [shape = 'u32[72,128]{1,0:T(1,128)}', space=vmem, size = 0x9000, scoped, tag = 'internal scratch']
  #allocation2 [shape = 'f32[8,32]{1,0:T(8,128)}', space=vmem, size = 0x1000, scoped, tag = 'scratch operand']
  %s0 = inlined_call_operand.vmem [shape: f32[16,32], index: 0, kind: input, shape index: {}]
  %s1 = inlined_call_operand.vmem [shape: f32[32,32], index: 1, kind: input, shape index: {}]
  %s2 = inlined_call_operand.vmem [shape: f32[1,32], index: 2, kind: input, shape index: {}]
  %s3 = inlined_call_operand.vmem [shape: f32[16,32], index: 3, kind: output, shape index: {}]
  %s4 = sld [smem:[#allocation0]]
  $region53: #{_lambda_.11} parent=0
    _
  %s6 = ssub.s32 1, %s4
  %s7 = scalar_select 0, %s6, %s4
  loop: start=0, step=1, limit=4
  $region2: #{_lambda_.11} parent=0 // loop_pre_header
    _
  $region3: #{_lambda_.11} parent=0 // loop_header
    %s9 = sphi 0, %s13
    %p10 = scmp.ge.s32.totalorder %s9, 4
    %s16 = sphi 0, %s28
    %s17 = sphi 0, %s24
    %s18 = sphi 0, %s16
    %s19 = sphi 0, %s17
    %s20 = sphi 0, %s18
    %s21 = sphi 0, %s19
    %s33 = sphi 0, %s35
    %s36 = sphi 0, %s33
    %s37 = sphi 0, %s36
    %s53 = sphi 0, %s37
    %s59 = sphi 0, %s61
    %s62 = sphi 0, %s59
    %s63 = sphi 0, %s62
    %s79 = sphi 0, %s63
    %s83 = sphi 0, %s83
    %s85 = sphi 0, %s83
    %s86 = sphi 0, %s85
    %s100 = sphi 0, %s86
    %s106 = sphi 0, %s108
    %s109 = sphi 0, %s106
    %s110 = sphi 0, %s109
    %s126 = sphi 0, %s110
  $region4: #{_lambda_.11} parent=0 // loop_header_branch
    %12 = sbr.rel (%p10) target = $region8
  $region5: #{_lambda_.11} parent=0 // loop_body
    %s14 = ssub.s32 %s9, 1
    %s15 = ssub.s32 %s9, 2
    %s22 = sadd.s32 1, %s17
    %p23 = scmp.ge.s32.totalorder %s22, 1
    %s24 = scalar_select %p23, 0, %s22
    %s25 = sadd.s32 1, %s16
    %s26 = scalar_select %p23, %s25, %s16
    %p27 = scmp.ge.s32.totalorder %s26, 2
    %s28 = scalar_select %p27, 0, %s26
    %s29 = ssub.s32 %s16, %s28
    %s30 = ssub.s32 %s17, %s24
    %s31 = sor.u32 %s29, %s30
    %p32 = scmp.eq.s32.totalorder %s31, 0
    %s34 = sadd.s32 %s33, 1
    %s35 = scalar_select %p32, %s33, %s34
    %p38 = pneg %p32
    %p39 = scmp.eq.s32.totalorder %s9, 1
    %p40 = por %p38, %p39
    %p41 = scmp.ne.s32.totalorder %s33, %s36
    %p42 = scmp.eq.s32.totalorder %s9, 0
    %p43 = por %p41, %p42
    %p44 = scmp.ne.s32.totalorder %s33, %s36
    %p45 = scmp.eq.s32.totalorder %s14, 1
    %p46 = por %p44, %p45
    %p47 = scmp.ne.s32.totalorder %s36, %s37
    %p48 = scmp.eq.s32.totalorder %s14, 0
    %p49 = por %p47, %p48
    %p50 = scmp.ne.s32.totalorder %s36, %s37
    %p51 = scmp.eq.s32.totalorder %s15, 1
    %p52 = por %p50, %p51
    %p54 = scmp.ne.s32.totalorder %s37, %s53
    %p55 = scmp.eq.s32.totalorder %s15, 0
    %p56 = por %p54, %p55
    %s57 = ssub.s32 %s17, %s24
    %p58 = scmp.eq.s32.totalorder %s57, 0
    %s60 = sadd.s32 %s59, 1
    %s61 = scalar_select %p58, %s59, %s60
    %p64 = pneg %p58
    %p65 = scmp.eq.s32.totalorder %s9, 1
    %p66 = por %p64, %p65
    %p67 = scmp.ne.s32.totalorder %s59, %s62
    %p68 = scmp.eq.s32.totalorder %s9, 0
    %p69 = por %p67, %p68
    %p70 = scmp.ne.s32.totalorder %s59, %s62
    %p71 = scmp.eq.s32.totalorder %s14, 1
    %p72 = por %p70, %p71
    %p73 = scmp.ne.s32.totalorder %s62, %s63
    %p74 = scmp.eq.s32.totalorder %s14, 0
    %p75 = por %p73, %p74
    %p76 = scmp.ne.s32.totalorder %s62, %s63
    %p77 = scmp.eq.s32.totalorder %s15, 1
    %p78 = por %p76, %p77
    %p80 = scmp.ne.s32.totalorder %s63, %s79
    %p81 = scmp.eq.s32.totalorder %s15, 0
    %p82 = por %p80, %p81
    %s84 = sadd.s32 %s83, 1
    %p87 = scmp.eq.s32.totalorder %s9, 1
    %p88 = scmp.ne.s32.totalorder %s83, %s85
    %p89 = scmp.eq.s32.totalorder %s9, 0
    %p90 = por %p88, %p89
    %p91 = scmp.ne.s32.totalorder %s83, %s85
    %p92 = scmp.eq.s32.totalorder %s14, 1
    %p93 = por %p91, %p92
    %p94 = scmp.ne.s32.totalorder %s85, %s86
    %p95 = scmp.eq.s32.totalorder %s14, 0
    %p96 = por %p94, %p95
    %p97 = scmp.ne.s32.totalorder %s85, %s86
    %p98 = scmp.eq.s32.totalorder %s15, 1
    %p99 = por %p97, %p98
    %p101 = scmp.ne.s32.totalorder %s86, %s100
    %p102 = scmp.eq.s32.totalorder %s15, 0
    %p103 = por %p101, %p102
    %s104 = ssub.s32 %s16, %s28
    %p105 = scmp.eq.s32.totalorder %s104, 0
    %s107 = sadd.s32 %s106, 1
    %s108 = scalar_select %p105, %s106, %s107
    %p111 = pneg %p105
    %p112 = scmp.eq.s32.totalorder %s9, 1
    %p113 = por %p111, %p112
    %p114 = scmp.ne.s32.totalorder %s106, %s109
    %p115 = scmp.eq.s32.totalorder %s9, 0
    %p116 = por %p114, %p115
    %p117 = scmp.ne.s32.totalorder %s106, %s109
    %p118 = scmp.eq.s32.totalorder %s14, 1
    %p119 = por %p117, %p118
    %p120 = scmp.ne.s32.totalorder %s109, %s110
    %p121 = scmp.eq.s32.totalorder %s14, 0
    %p122 = por %p120, %p121
    %p123 = scmp.ne.s32.totalorder %s109, %s110
    %p124 = scmp.eq.s32.totalorder %s15, 1
    %p125 = por %p123, %p124
    %p127 = scmp.ne.s32.totalorder %s110, %s126
    %p128 = scmp.eq.s32.totalorder %s15, 0
    %p129 = por %p127, %p128
    %p130 = scmp.le.s32.totalorder 1, %s9
    %p131 = scmp.lt.s32.totalorder %s9, 3
    %p132 = pnand %p130, %p131
    %p133 = pneg %p132
    // Predicated region
    $region9: #{_lambda_.11} parent=5 // pred_check
      _
    $region10: #{_lambda_.11} parent=5 // pred_check_branch
      %135 = sbr.rel (%p132) target = $region12
    $region11: #{_lambda_.11} parent=5 // pred_region
      %s136 = ssub.s32 %s9, 1
      // Predicated region
      $region13: #{_lambda_.11} parent=11 // pred_check
        %p137 = pneg %p75
      $region14: #{_lambda_.11} parent=11 // pred_check_branch
        %139 = sbr.rel (%p137) target = $region16
      $region15: #{_lambda_.11} parent=11 // pred_region
        %s140 = smul.u32 4, %s19
        %p141 = scmp.lt.s32.totalorder %s140, 3
        %s142 = scalar_select %p141, %s140, 3
        %s143 = smul.addr %s142, 8
        %s144 = scalar_lea.vmem %s1, %s143
        %s145 = smul.u32 4, %s19
      $region16: #{_lambda_.11} parent=11 // pred_fallthru
        _
      // Predicated region
      $region17: #{_lambda_.11} parent=11 // pred_check
        %p146 = pneg %p96
      $region18: #{_lambda_.11} parent=11 // pred_check_branch
        %148 = sbr.rel (%p146) target = $region20
      $region19: #{_lambda_.11} parent=11 // pred_region
        _
      $region20: #{_lambda_.11} parent=11 // pred_fallthru
        _
    $region12: #{_lambda_.11} parent=5 // pred_fallthru
      _
    %p149 = scmp.lt.s32.totalorder %s9, 2
    // Predicated region
    $region21: #{_lambda_.11} parent=5 // pred_check
      %p150 = pneg %p149
    $region22: #{_lambda_.11} parent=5 // pred_check_branch
      %152 = sbr.rel (%p150) target = $region24
    $region23: #{_lambda_.11} parent=5 // pred_region
      // Predicated region
      $region25: #{_lambda_.11} parent=23 // pred_check
        %p153 = pneg %p43
      $region26: #{_lambda_.11} parent=23 // pred_check_branch
        %155 = sbr.rel (%p153) target = $region28
      $region27: #{_lambda_.11} parent=23 // pred_region
        %p156 = scmp.lt.s32.totalorder %s16, 1
        %s157 = scalar_select %p156, %s16, 1
        %p158 = scmp.lt.s32.totalorder %s17, 0
        %s159 = scalar_select %p158, %s17, 0
        %s160 = sadd.s32 %s159, %s157
        %s161 = smul.addr %s160, 8
        %s162 = scalar_lea.vmem %s0, %s161
      $region28: #{_lambda_.11} parent=23 // pred_fallthru
        _
    $region24: #{_lambda_.11} parent=5 // pred_fallthru
      _
    %p163 = scmp.le.s32.totalorder 1, %s9
    %p164 = scmp.lt.s32.totalorder %s9, 3
    %p165 = pnand %p163, %p164
    %p166 = pneg %p165
    // Predicated region
    $region29: #{_lambda_.11} parent=5 // pred_check
      _
    $region30: #{_lambda_.11} parent=5 // pred_check_branch
      %168 = sbr.rel (%p165) target = $region32
    $region31: #{_lambda_.11} parent=5 // pred_region
      %s169 = ssub.s32 %s9, 1
      %p170 = scmp.lt.s32.totalorder %s18, 1
      %s171 = scalar_select %p170, %s18, 1
      %p172 = scmp.lt.s32.totalorder %s19, 0
      %s173 = scalar_select %p172, %s19, 0
      %s174 = sadd.s32 %s173, %s171
      %s175 = smul.addr %s174, 8
      %s176 = scalar_lea.vmem %s0, %s175
      %p177 = pneg %p49
      %p178 = pneg %p46
      %s179 = smul.u32 4, %s19
      %p180 = scmp.lt.s32.totalorder %s179, 3
      %s181 = scalar_select %p180, %s179, 3
      %s182 = smul.addr %s181, 8
      %s183 = scalar_lea.vmem %s1, %s182
      %p184 = pneg %p75
      %p185 = pneg %p72
      %p186 = pneg %p96
      %p187 = pneg %p93
      %p188 = pneg %p122
      %p189 = pneg %p119
      %p190 = scmp.lt.s32.totalorder %s18, 1
      %s191 = scalar_select %p190, %s18, 1
      %s192 = smul.addr %s191, 8
      %s193 = scalar_lea.vmem %s3, %s192
      %p194 = scmp.lt.s32.totalorder %s18, 1
      %s195 = scalar_select %p194, %s18, 1
      %p196 = scmp.lt.s32.totalorder %s19, 0
      %s197 = scalar_select %p196, %s19, 0
      %s198 = sadd.s32 %s197, %s195
      %s199 = smul.addr %s198, 8
      %s200 = scalar_lea.vmem %s0, %s199
      %s201 = smul.u32 4, %s19
      %p202 = scmp.lt.s32.totalorder %s201, 3
      %s203 = scalar_select %p202, %s201, 3
      %s204 = smul.addr %s203, 8
      %s205 = scalar_lea.vmem %s1, %s204
      %s206 = smul.u32 4, %s19
      %p207 = scmp.lt.s32.totalorder %s18, 1
      %s208 = scalar_select %p207, %s18, 1
      %s209 = smul.addr %s208, 8
      %s210 = scalar_lea.vmem %s3, %s209
      %p211 = scmp.eq.s32.totalorder %s19, 0
      // Predicated region
      $region33: #{_lambda_.11} parent=31 // pred_check
        %p212 = pneg %p211
      $region34: #{_lambda_.11} parent=31 // pred_check_branch
        %214 = sbr.rel (%p212) target = $region36
      $region35: #{_lambda_.11} parent=31 // pred_region
        %vm215 = vcmask 261120
        %216 = vst.msk [vmem:[#allocation2] sm:$0xff] %vm215, 0.0
      $region36: #{_lambda_.11} parent=31 // pred_fallthru
        _
      %v217 = vld [vmem:[#allocation2] sm:$0xff]
      %v218 = vld [vmem:[%s200] sm:$0xff]
      %v219 = vld [vmem:[%s205] sm:$0xff]
      %v220 = vld [vmem:[%s205 + $0x8] sm:$0xff]
      %v221 = vld [vmem:[%s205 + $0x10] sm:$0xff]
      %v222 = vld [vmem:[%s205 + $0x18] sm:$0xff]
      %vm223 = vcmask 261120
      %v225 = vsel %vm223, %v218, 0
      %227 = vmatpush.msra.mxu0 0.0
      %228 = vmatpush.msra.mxu0 0.0
      %229 = vmatpush.msra.mxu0 0.0
      %230 = vmatpush.msra.mxu0 0.0
      %231 = vmatpush.msra.mxu0 0.0
      %232 = vmatpush.msra.mxu0 0.0
      %233 = vmatpush.msra.mxu0 0.0
      %234 = vmatpush.msra.mxu0 0.0
      %235 = vmatpush.msra.mxu0 0.0
      %236 = vmatpush.msra.mxu0 0.0
      %237 = vmatpush.msra.mxu0 0.0
      %238 = vmatpush.msra.mxu0 0.0
      %239 = vmatpush.msra.mxu0 %v222
      %240 = vmatpush.msra.mxu0 %v221
      %241 = vmatpush.msra.mxu0 %v220
      %242 = vmatpush.msra.mxu0 %v219
      %243 = vmatmul.f32.gmra.mxu0 %v225
      %v244 = vpop.f32.mrf.mxu0
      %v245 = vadd.f32 0.0, %v244
      %246 = vdwg.mxu0
      %v247 = vadd.f32 %v217, %v245
      %248 = vst.msk [vmem:[#allocation2] sm:$0xff] %vm223, %v247
      // Predicated region
      $region37: #{_lambda_.11} parent=31 // pred_check
        %p249 = pneg %p211
      $region38: #{_lambda_.11} parent=31 // pred_check_branch
        %251 = sbr.rel (%p249) target = $region40
      $region39: #{_lambda_.11} parent=31 // pred_region
        %v252 = vld [vmem:[#allocation2] sm:$0xff]
        %v253 = vld [vmem:[%s2] sm:$0x1]
        %v255 = vperm.slane %v253, 0
        %v257 = vadd.f32 %v252, %v255
        %258 = vst.msk [vmem:[%s210] sm:$0xff] %vm223, %v257
      $region40: #{_lambda_.11} parent=31 // pred_fallthru
        _
      %p259 = scmp.lt.s32.totalorder %s18, 1
      %s260 = scalar_select %p259, %s18, 1
      %s261 = smul.addr %s260, 8
      %s262 = scalar_lea.vmem %s3, %s261
      // Predicated region
      $region41: #{_lambda_.11} parent=31 // pred_check
        %p263 = pneg %p119
      $region42: #{_lambda_.11} parent=31 // pred_check_branch
        %265 = sbr.rel (%p263) target = $region44
      $region43: #{_lambda_.11} parent=31 // pred_region
        _
      $region44: #{_lambda_.11} parent=31 // pred_fallthru
        _
    $region32: #{_lambda_.11} parent=5 // pred_fallthru
      _
    %p266 = scmp.le.s32.totalorder 2, %s9
    // Predicated region
    $region45: #{_lambda_.11} parent=5 // pred_check
      %p267 = pneg %p266
    $region46: #{_lambda_.11} parent=5 // pred_check_branch
      %269 = sbr.rel (%p267) target = $region48
    $region47: #{_lambda_.11} parent=5 // pred_region
      %s270 = ssub.s32 %s9, 2
      // Predicated region
      $region49: #{_lambda_.11} parent=47 // pred_check
        %p271 = pneg %p125
      $region50: #{_lambda_.11} parent=47 // pred_check_branch
        %273 = sbr.rel (%p271) target = $region52
      $region51: #{_lambda_.11} parent=47 // pred_region
        %p274 = scmp.lt.s32.totalorder %s20, 1
        %s275 = scalar_select %p274, %s20, 1
        %s276 = smul.addr %s275, 8
        %s277 = scalar_lea.vmem %s3, %s276
      $region52: #{_lambda_.11} parent=47 // pred_fallthru
        _
    $region48: #{_lambda_.11} parent=5 // pred_fallthru
      _
  $region6: #{_lambda_.11} parent=0 // loop_footer
    %s13 = sadd.s32 1, %s9
  $region7: #{_lambda_.11} parent=0 // loop_footer_branch
    %8 = sbr.rel target = $region3
  $region8: #{_lambda_.11} parent=0 // loop_exit
    _

</llo_original>
